<compile_context>
chip_gen: v5e
topology: v5e:2x2
jax: 0.10.0
libtpu: 0.0.40
codegen_flags: <defaults>
</compile_context>

<pallas_src>
import jax
import jax.numpy as jnp
import numpy as np
from jax.experimental import pallas as pl
from jax.experimental.pallas import tpu as pltpu

H = 128       # hidden_size (128-aligned so gate slices land on lane boundaries)
V = 512       # output_size (small synthetic vocab, multiple of 128)
TM_MAX = 256  # max node-tile rows per MXU pass (v5e's 4x128 MXU just consumes it in
              # 128-row chunks, so one constant is fine across generations)


def tree_decoder_kernel(tok_ref, parent_ref, h0_ref, c0_ref,
                        emb_ref, w_gates_ref, b_ref, w_out_ref, b_out_ref,
                        logp_ref, h1_ref, c1_ref,
                        x_slab):
    tm = parent_ref.shape[0]
    h = h0_ref.shape[-1]
    v = emb_ref.shape[0]

    # Embedding gather as one-hot @ table on the MXU (exact bf16 row select; an
    # out-of-range token yields a zero row instead of an unchecked OOB read).
    tok = tok_ref[...]                                                  # (TM, 1) i32
    col = jax.lax.broadcasted_iota(jnp.int32, (tm, v), 1)
    onehot = (col == tok).astype(emb_ref.dtype)                         # (TM, V) bf16
    emb = jnp.dot(onehot, emb_ref[...],
                  preferred_element_type=jnp.float32)                   # (TM, H) f32

    # relu(cat(emb, parent)) and h0 written into a lane-aligned slab (no concat relayout).
    x_slab[:, 0 * h:1 * h] = jnp.maximum(emb, 0.0).astype(x_slab.dtype)
    x_slab[:, 1 * h:2 * h] = jnp.maximum(parent_ref[...], 0.0).astype(x_slab.dtype)
    x_slab[:, 2 * h:3 * h] = h0_ref[...].astype(x_slab.dtype)

    # Fused single-timestep LSTM cell: one (TM, 3H) @ (3H, 4H) matmul, gates [i, f, g, o].
    gates = (jnp.dot(x_slab[...], w_gates_ref[...],
                     preferred_element_type=jnp.float32) + b_ref[...])  # (TM, 4H) f32
    # sigmoid(x) == 0.5*(tanh(0.5*x)+1): one EUP push per gate instead of exp+reciprocal.
    i_g = 0.5 * (jnp.tanh(0.5 * gates[:, 0 * h:1 * h]) + 1.0)
    f_g = 0.5 * (jnp.tanh(0.5 * gates[:, 1 * h:2 * h]) + 1.0)
    g_g = jnp.tanh(gates[:, 2 * h:3 * h])
    o_g = 0.5 * (jnp.tanh(0.5 * gates[:, 3 * h:4 * h]) + 1.0)
    c1 = f_g * c0_ref[...] + i_g * g_g
    h1 = o_g * jnp.tanh(c1)
    h1_ref[...] = h1
    c1_ref[...] = c1

    # out(h1) followed by numerically-stable LogSoftmax(dim=1).
    # (h1 is cast to bf16 to keep the MXU on its fast bf16 path; the reference keeps it
    #  f32 — documented extra rounding step, well inside the test tolerance.)
    logits = (jnp.dot(h1.astype(w_out_ref.dtype), w_out_ref[...],
                      preferred_element_type=jnp.float32) + b_out_ref[...])  # (TM, V) f32
    m = jnp.max(logits, axis=1, keepdims=True)
    lse = jnp.log(jnp.sum(jnp.exp(logits - m), axis=1, keepdims=True))
    # Fused final subtraction (single pass over the (TM,V) slab) + bf16 store.
    logp_ref[...] = (logits - (m + lse)).astype(logp_ref.dtype)


def _pick_tile(n):
    """Node-tile rows: up to 256 for big batches, down to the 8-row sublane granule
    for tiny/interactive batches (so N=1 does not pad to a full 128/256-row tile)."""
    return min(TM_MAX, max(8, ((n + 7) // 8) * 8))


def tree_decoder_forward_batch(params, tokens, parents, h0, c0):
    """Batched decode step for N independent tree nodes.

    tokens: (N,) int32; parents/h0/c0: (N, H) float32.
    Returns (logp (N, V) bf16, h1 (N, H) f32, c1 (N, H) f32).
    """
    n = tokens.shape[0]
    tm = _pick_tile(n)
    n_pad = ((n + tm - 1) // tm) * tm
    pad = n_pad - n

    tok2d = jnp.asarray(tokens, jnp.int32).reshape(n, 1)
    parents = jnp.asarray(parents, jnp.float32)
    h0 = jnp.asarray(h0, jnp.float32)
    c0 = jnp.asarray(c0, jnp.float32)
    if pad:
        tok2d = jnp.pad(tok2d, ((0, pad), (0, 0)))        # pad token 0 is a valid row
        parents = jnp.pad(parents, ((0, pad), (0, 0)))
        h0 = jnp.pad(h0, ((0, pad), (0, 0)))
        c0 = jnp.pad(c0, ((0, pad), (0, 0)))

    grid_spec = pltpu.PrefetchScalarGridSpec(
        num_scalar_prefetch=0,
        grid=(n_pad // tm,),
        in_specs=[
            pl.BlockSpec((tm, 1), lambda i: (i, 0)),          # token ids (per node)
            pl.BlockSpec((tm, H), lambda i: (i, 0)),          # parent
            pl.BlockSpec((tm, H), lambda i: (i, 0)),          # h0
            pl.BlockSpec((tm, H), lambda i: (i, 0)),          # c0
            # Constant (0,0) index maps: weights DMA'd once, VMEM-resident across steps.
            # TODO(synk): pipeline_mode=pl.Buffered(1) on these would drop the unused
            # second buffer (~0.6 MiB here) once the vocab grows to multi-MiB.
            pl.BlockSpec((V, H), lambda i: (0, 0)),           # embedding table
            pl.BlockSpec((3 * H, 4 * H), lambda i: (0, 0)),   # fused [W_ih; W_hh]^T
            pl.BlockSpec((1, 4 * H), lambda i: (0, 0)),       # b_ih + b_hh
            pl.BlockSpec((H, V), lambda i: (0, 0)),           # W_out^T
            pl.BlockSpec((1, V), lambda i: (0, 0)),           # b_out
        ],
        out_specs=(
            pl.BlockSpec((tm, V), lambda i: (i, 0)),          # log-probs (bf16)
            pl.BlockSpec((tm, H), lambda i: (i, 0)),          # h1
            pl.BlockSpec((tm, H), lambda i: (i, 0)),          # c1
        ),
        scratch_shapes=[pltpu.VMEM((tm, 3 * H), jnp.bfloat16)],   # [relu(emb)|relu(parent)|h0]
    )
    out_shapes = (
        jax.ShapeDtypeStruct((n_pad, V), jnp.bfloat16),   # bf16 halves dominant writeback
        jax.ShapeDtypeStruct((n_pad, H), jnp.float32),
        jax.ShapeDtypeStruct((n_pad, H), jnp.float32),
    )
    logp, h1, c1 = pl.pallas_call(
        tree_decoder_kernel,
        out_shape=out_shapes,
        grid_spec=grid_spec,
        compiler_params=pltpu.CompilerParams(
            dimension_semantics=("parallel",)),               # node tiles independent (v7x 2-TC)
    )(tok2d, parents, h0, c0,
      params["embed"], params["w_gates"], params["b"],
      params["w_out"], params["b_out"])
    return logp[:n], h1[:n], c1[:n]


def tree_decoder_forward(params, token, parent, hidden=None):
    """Single-node API matching TreeDecoder.forward: token (1,), parent (1,1,H)."""
    tok = jnp.asarray(token, jnp.int32).reshape((1,))
    p = jnp.asarray(parent, jnp.float32).reshape(1, H)
    if hidden is None:
        h0 = jnp.zeros((1, H), jnp.float32)
        c0 = jnp.zeros((1, H), jnp.float32)
    else:
        h0 = jnp.asarray(hidden[0], jnp.float32).reshape(1, H)
        c0 = jnp.asarray(hidden[1], jnp.float32).reshape(1, H)
    logp, h1, c1 = tree_decoder_forward_batch(params, tok, p, h0, c0)
    return logp.astype(jnp.float32), (h1.reshape(1, 1, H), c1.reshape(1, 1, H))


def init_params(key):
    ks = jax.random.split(key, 6)
    s = 0.1
    w_ih = jax.random.normal(ks[1], (2 * H, 4 * H), jnp.float32) * s
    w_hh = jax.random.normal(ks[2], (H, 4 * H), jnp.float32) * s
    return dict(
        embed=(jax.random.normal(ks[0], (V, H), jnp.float32) * s).astype(jnp.bfloat16),
        w_gates=jnp.concatenate([w_ih, w_hh], axis=0).astype(jnp.bfloat16),  # (3H, 4H)
        b=jax.random.normal(ks[3], (1, 4 * H), jnp.float32) * s,             # b_ih + b_hh
        w_out=(jax.random.normal(ks[4], (H, V), jnp.float32) * s).astype(jnp.bfloat16),
        b_out=jax.random.normal(ks[5], (1, V), jnp.float32) * s,
    )


def reference_forward_batch(params, tokens, parents, h0, c0):
    """Pure-JAX f32 reference with identical semantics to the PyTorch forward."""
    emb_tab = params["embed"].astype(jnp.float32)
    w_gates = params["w_gates"].astype(jnp.float32)
    w_out = params["w_out"].astype(jnp.float32)
    emb = emb_tab[tokens]                                                # (N, H)
    x = jnp.maximum(jnp.concatenate([emb, parents], axis=1), 0.0)        # relu(cat(emb, parent))
    xh = jnp.concatenate([x, h0], axis=1)                                # (N, 3H)
    gates = xh @ w_gates + params["b"]
    i = jax.nn.sigmoid(gates[:, :H])
    f = jax.nn.sigmoid(gates[:, H:2 * H])
    g = jnp.tanh(gates[:, 2 * H:3 * H])
    o = jax.nn.sigmoid(gates[:, 3 * H:])
    c1 = f * c0 + i * g
    h1 = o * jnp.tanh(c1)
    logits = h1 @ w_out + params["b_out"]
    return jax.nn.log_softmax(logits, axis=1), h1, c1


if __name__ == "__main__":
    key = jax.random.PRNGKey(0)
    pkey, k1, k2, k3, k4 = jax.random.split(key, 5)
    params = init_params(pkey)

    # --- batched path: 600 independent tree nodes -> TM=256, grid of 3 tiles ---
    N = 600
    tokens = jax.random.randint(k1, (N,), 0, V, dtype=jnp.int32)   # must be < V (no HW OOB check)
    parents = jax.random.normal(k2, (N, H), jnp.float32)
    h0 = jax.random.normal(k3, (N, H), jnp.float32) * 0.5
    c0 = jax.random.normal(k4, (N, H), jnp.float32) * 0.5

    logp, h1, c1 = tree_decoder_forward_batch(params, tokens, parents, h0, c0)
    jax.block_until_ready((logp, h1, c1))

    ref_logp, ref_h1, ref_c1 = reference_forward_batch(params, tokens, parents, h0, c0)
    np.testing.assert_allclose(np.asarray(logp.astype(jnp.float32)), np.asarray(ref_logp),
                               rtol=2e-2, atol=5e-2)   # logp stored bf16 (extra 0.4% rounding)
    np.testing.assert_allclose(np.asarray(h1), np.asarray(ref_h1), rtol=2e-2, atol=2e-2)
    np.testing.assert_allclose(np.asarray(c1), np.asarray(ref_c1), rtol=2e-2, atol=2e-2)

    # --- single-node path (original PyTorch forward signature, hidden=None): TM shrinks to 8 ---
    token = jnp.array([7], dtype=jnp.int32)
    parent = parents[:1].reshape(1, 1, H)
    logp1, (h11, c11) = tree_decoder_forward(params, token, parent, hidden=None)
    jax.block_until_ready((logp1, h11, c11))
    rl, rh, rc = reference_forward_batch(params, token, parent.reshape(1, H),
                                         jnp.zeros((1, H), jnp.float32),
                                         jnp.zeros((1, H), jnp.float32))
    np.testing.assert_allclose(np.asarray(logp1), np.asarray(rl), rtol=2e-2, atol=5e-2)
    np.testing.assert_allclose(np.asarray(h11).reshape(1, H), np.asarray(rh), rtol=2e-2, atol=2e-2)
    np.testing.assert_allclose(np.asarray(c11).reshape(1, H), np.asarray(rc), rtol=2e-2, atol=2e-2)

    print("KERNEL_OK")
</pallas_src>

<mosaic_0001>
module attributes {stable_mosaic.version = 11 : i64} {
  func.func @tree_decoder_kernel(%arg0: i32, %arg1: memref<256x1xi32, #tpu.memory_space<vmem>>, %arg2: memref<256x128xf32, #tpu.memory_space<vmem>>, %arg3: memref<256x128xf32, #tpu.memory_space<vmem>>, %arg4: memref<256x128xf32, #tpu.memory_space<vmem>>, %arg5: memref<512x128xbf16, #tpu.memory_space<vmem>>, %arg6: memref<384x512xbf16, #tpu.memory_space<vmem>>, %arg7: memref<1x512xf32, #tpu.memory_space<vmem>>, %arg8: memref<128x512xbf16, #tpu.memory_space<vmem>>, %arg9: memref<1x512xf32, #tpu.memory_space<vmem>>, %arg10: memref<256x512xbf16, #tpu.memory_space<vmem>>, %arg11: memref<256x128xf32, #tpu.memory_space<vmem>>, %arg12: memref<256x128xf32, #tpu.memory_space<vmem>>, %arg13: memref<256x384xbf16, #tpu.memory_space<vmem>>) attributes {dimension_semantics = [#tpu.dimension_semantics<parallel>], iteration_bounds = array<i64: 3>, scalar_prefetch = 0 : i64, scratch_operands = 1 : i64, tpu.core_type = #tpu.core_type<tc>, window_params = [{transform_indices = @transform_0, window_bounds = array<i64: 256, 1>}, {transform_indices = @transform_1, window_bounds = array<i64: 256, 128>}, {transform_indices = @transform_2, window_bounds = array<i64: 256, 128>}, {transform_indices = @transform_3, window_bounds = array<i64: 256, 128>}, {pipeline_mode = #tpu.pipeline_mode<synchronous>, transform_indices = @transform_4, window_bounds = array<i64: 512, 128>}, {pipeline_mode = #tpu.pipeline_mode<synchronous>, transform_indices = @transform_5, window_bounds = array<i64: 384, 512>}, {pipeline_mode = #tpu.pipeline_mode<synchronous>, transform_indices = @transform_6, window_bounds = array<i64: 1, 512>}, {pipeline_mode = #tpu.pipeline_mode<synchronous>, transform_indices = @transform_7, window_bounds = array<i64: 128, 512>}, {pipeline_mode = #tpu.pipeline_mode<synchronous>, transform_indices = @transform_8, window_bounds = array<i64: 1, 512>}, {transform_indices = @transform_9, window_bounds = array<i64: 256, 512>}, {transform_indices = @transform_10, window_bounds = array<i64: 256, 128>}, {transform_indices = @transform_11, window_bounds = array<i64: 256, 128>}]} {
    %c0 = arith.constant 0 : index
    %c0_0 = arith.constant 0 : index
    %0 = vector.load %arg1[%c0, %c0_0] : memref<256x1xi32, #tpu.memory_space<vmem>>, vector<256x1xi32>
    %1 = tpu.iota {dimensions = array<i32: 1>} : vector<256x512xi32>
    %2 = vector.broadcast %0 : vector<256x1xi32> to vector<256x512xi32>
    %3 = arith.cmpi eq, %1, %2 : vector<256x512xi32>
    %4 = arith.extui %3 : vector<256x512xi1> to vector<256x512xi32>
    %5 = arith.sitofp %4 : vector<256x512xi32> to vector<256x512xf32>
    %6 = arith.truncf %5 : vector<256x512xf32> to vector<256x512xbf16>
    %c0_1 = arith.constant 0 : index
    %c0_2 = arith.constant 0 : index
    %7 = vector.load %arg5[%c0_1, %c0_2] : memref<512x128xbf16, #tpu.memory_space<vmem>>, vector<512x128xbf16>
    %cst = arith.constant dense<0.000000e+00> : vector<256x128xf32>
    %8 = tpu.matmul %6, %7, %cst {dimension_numbers = #tpu.dot_dimension_numbers<[1], [0], [0], [1], [0, 0, 1, 1], [], []>} : vector<256x512xbf16>, vector<512x128xbf16>, vector<256x128xf32> -> vector<256x128xf32>
    %cst_3 = arith.constant 0.000000e+00 : f32
    %9 = vector.broadcast %cst_3 : f32 to vector<256x128xf32>
    %10 = arith.maximumf %8, %9 : vector<256x128xf32>
    %11 = arith.truncf %10 : vector<256x128xf32> to vector<256x128xbf16>
    %c0_4 = arith.constant 0 : index
    %c0_5 = arith.constant 0 : index
    %12 = vector.load %arg13[%c0_4, %c0_5] : memref<256x384xbf16, #tpu.memory_space<vmem>>, vector<256x128xbf16>
    tpu.vector_store %arg13[%c0_4, %c0_5], %11 {strides = array<i32>} : memref<256x384xbf16, #tpu.memory_space<vmem>>, vector<256x128xbf16>,
    %c0_6 = arith.constant 0 : index
    %c0_7 = arith.constant 0 : index
    %13 = vector.load %arg2[%c0_6, %c0_7] : memref<256x128xf32, #tpu.memory_space<vmem>>, vector<256x128xf32>
    %cst_8 = arith.constant 0.000000e+00 : f32
    %14 = vector.broadcast %cst_8 : f32 to vector<256x128xf32>
    %15 = arith.maximumf %13, %14 : vector<256x128xf32>
    %16 = arith.truncf %15 : vector<256x128xf32> to vector<256x128xbf16>
    %c0_9 = arith.constant 0 : index
    %c128 = arith.constant 128 : index
    %17 = vector.load %arg13[%c0_9, %c128] : memref<256x384xbf16, #tpu.memory_space<vmem>>, vector<256x128xbf16>
    tpu.vector_store %arg13[%c0_9, %c128], %16 {strides = array<i32>} : memref<256x384xbf16, #tpu.memory_space<vmem>>, vector<256x128xbf16>,
    %c0_10 = arith.constant 0 : index
    %c0_11 = arith.constant 0 : index
    %18 = vector.load %arg3[%c0_10, %c0_11] : memref<256x128xf32, #tpu.memory_space<vmem>>, vector<256x128xf32>
    %19 = arith.truncf %18 : vector<256x128xf32> to vector<256x128xbf16>
    %c0_12 = arith.constant 0 : index
    %c256 = arith.constant 256 : index
    %20 = vector.load %arg13[%c0_12, %c256] : memref<256x384xbf16, #tpu.memory_space<vmem>>, vector<256x128xbf16>
    tpu.vector_store %arg13[%c0_12, %c256], %19 {strides = array<i32>} : memref<256x384xbf16, #tpu.memory_space<vmem>>, vector<256x128xbf16>,
    %c0_13 = arith.constant 0 : index
    %c0_14 = arith.constant 0 : index
    %21 = vector.load %arg13[%c0_13, %c0_14] : memref<256x384xbf16, #tpu.memory_space<vmem>>, vector<256x384xbf16>
    %c0_15 = arith.constant 0 : index
    %c0_16 = arith.constant 0 : index
    %22 = vector.load %arg6[%c0_15, %c0_16] : memref<384x512xbf16, #tpu.memory_space<vmem>>, vector<384x512xbf16>
    %cst_17 = arith.constant dense<0.000000e+00> : vector<256x512xf32>
    %23 = tpu.matmul %21, %22, %cst_17 {dimension_numbers = #tpu.dot_dimension_numbers<[1], [0], [0], [1], [0, 0, 1, 1], [], []>} : vector<256x384xbf16>, vector<384x512xbf16>, vector<256x512xf32> -> vector<256x512xf32>
    %c0_18 = arith.constant 0 : index
    %c0_19 = arith.constant 0 : index
    %24 = vector.load %arg7[%c0_18, %c0_19] : memref<1x512xf32, #tpu.memory_space<vmem>>, vector<1x512xf32>
    %25 = vector.broadcast %24 : vector<1x512xf32> to vector<256x512xf32>
    %26 = arith.addf %23, %25 : vector<256x512xf32>
    %27 = vector.extract_strided_slice %26 {offsets = [0, 0], sizes = [256, 128], strides = [1, 1]} : vector<256x512xf32> to vector<256x128xf32>
    %cst_20 = arith.constant 5.000000e-01 : f32
    %28 = vector.broadcast %cst_20 : f32 to vector<256x128xf32>
    %29 = arith.mulf %28, %27 : vector<256x128xf32>
    %30 = math.tanh %29 : vector<256x128xf32>
    %cst_21 = arith.constant 1.000000e+00 : f32
    %31 = vector.broadcast %cst_21 : f32 to vector<256x128xf32>
    %32 = arith.addf %30, %31 : vector<256x128xf32>
    %cst_22 = arith.constant 5.000000e-01 : f32
    %33 = vector.broadcast %cst_22 : f32 to vector<256x128xf32>
    %34 = arith.mulf %33, %32 : vector<256x128xf32>
    %35 = vector.extract_strided_slice %26 {offsets = [0, 128], sizes = [256, 128], strides = [1, 1]} : vector<256x512xf32> to vector<256x128xf32>
    %cst_23 = arith.constant 5.000000e-01 : f32
    %36 = vector.broadcast %cst_23 : f32 to vector<256x128xf32>
    %37 = arith.mulf %36, %35 : vector<256x128xf32>
    %38 = math.tanh %37 : vector<256x128xf32>
    %cst_24 = arith.constant 1.000000e+00 : f32
    %39 = vector.broadcast %cst_24 : f32 to vector<256x128xf32>
    %40 = arith.addf %38, %39 : vector<256x128xf32>
    %cst_25 = arith.constant 5.000000e-01 : f32
    %41 = vector.broadcast %cst_25 : f32 to vector<256x128xf32>
    %42 = arith.mulf %41, %40 : vector<256x128xf32>
    %43 = vector.extract_strided_slice %26 {offsets = [0, 256], sizes = [256, 128], strides = [1, 1]} : vector<256x512xf32> to vector<256x128xf32>
    %44 = math.tanh %43 : vector<256x128xf32>
    %45 = vector.extract_strided_slice %26 {offsets = [0, 384], sizes = [256, 128], strides = [1, 1]} : vector<256x512xf32> to vector<256x128xf32>
    %cst_26 = arith.constant 5.000000e-01 : f32
    %46 = vector.broadcast %cst_26 : f32 to vector<256x128xf32>
    %47 = arith.mulf %46, %45 : vector<256x128xf32>
    %48 = math.tanh %47 : vector<256x128xf32>
    %cst_27 = arith.constant 1.000000e+00 : f32
    %49 = vector.broadcast %cst_27 : f32 to vector<256x128xf32>
    %50 = arith.addf %48, %49 : vector<256x128xf32>
    %cst_28 = arith.constant 5.000000e-01 : f32
    %51 = vector.broadcast %cst_28 : f32 to vector<256x128xf32>
    %52 = arith.mulf %51, %50 : vector<256x128xf32>
    %c0_29 = arith.constant 0 : index
    %c0_30 = arith.constant 0 : index
    %53 = vector.load %arg4[%c0_29, %c0_30] : memref<256x128xf32, #tpu.memory_space<vmem>>, vector<256x128xf32>
    %54 = arith.mulf %42, %53 : vector<256x128xf32>
    %55 = arith.mulf %34, %44 : vector<256x128xf32>
    %56 = arith.addf %54, %55 : vector<256x128xf32>
    %57 = math.tanh %56 : vector<256x128xf32>
    %58 = arith.mulf %52, %57 : vector<256x128xf32>
    %c0_31 = arith.constant 0 : index
    %c0_32 = arith.constant 0 : index
    %59 = vector.load %arg11[%c0_31, %c0_32] : memref<256x128xf32, #tpu.memory_space<vmem>>, vector<256x128xf32>
    tpu.vector_store %arg11[%c0_31, %c0_32], %58 {strides = array<i32>} : memref<256x128xf32, #tpu.memory_space<vmem>>, vector<256x128xf32>,
    %c0_33 = arith.constant 0 : index
    %c0_34 = arith.constant 0 : index
    %60 = vector.load %arg12[%c0_33, %c0_34] : memref<256x128xf32, #tpu.memory_space<vmem>>, vector<256x128xf32>
    tpu.vector_store %arg12[%c0_33, %c0_34], %56 {strides = array<i32>} : memref<256x128xf32, #tpu.memory_space<vmem>>, vector<256x128xf32>,
    %61 = arith.truncf %58 : vector<256x128xf32> to vector<256x128xbf16>
    %c0_35 = arith.constant 0 : index
    %c0_36 = arith.constant 0 : index
    %62 = vector.load %arg8[%c0_35, %c0_36] : memref<128x512xbf16, #tpu.memory_space<vmem>>, vector<128x512xbf16>
    %cst_37 = arith.constant dense<0.000000e+00> : vector<256x512xf32>
    %63 = tpu.matmul %61, %62, %cst_37 {dimension_numbers = #tpu.dot_dimension_numbers<[1], [0], [0], [1], [0, 0, 1, 1], [], []>} : vector<256x128xbf16>, vector<128x512xbf16>, vector<256x512xf32> -> vector<256x512xf32>
    %c0_38 = arith.constant 0 : index
    %c0_39 = arith.constant 0 : index
    %64 = vector.load %arg9[%c0_38, %c0_39] : memref<1x512xf32, #tpu.memory_space<vmem>>, vector<1x512xf32>
    %65 = vector.broadcast %64 : vector<1x512xf32> to vector<256x512xf32>
    %66 = arith.addf %63, %65 : vector<256x512xf32>
    %cst_40 = arith.constant dense<0xFF800000> : vector<256xf32>
    %67 = vector.multi_reduction <maximumf>, %66, %cst_40 [1] : vector<256x512xf32> to vector<256xf32>
    %68 = vector.shape_cast %67 : vector<256xf32> to vector<256x1xf32>
    %69 = vector.broadcast %68 : vector<256x1xf32> to vector<256x512xf32>
    %70 = arith.subf %66, %69 : vector<256x512xf32>
    %71 = math.exp %70 : vector<256x512xf32>
    %cst_41 = arith.constant dense<0.000000e+00> : vector<256xf32>
    %72 = vector.multi_reduction <add>, %71, %cst_41 [1] : vector<256x512xf32> to vector<256xf32>
    %73 = vector.shape_cast %72 : vector<256xf32> to vector<256x1xf32>
    %74 = math.log %73 : vector<256x1xf32>
    %75 = arith.addf %68, %74 : vector<256x1xf32>
    %76 = vector.broadcast %75 : vector<256x1xf32> to vector<256x512xf32>
    %77 = arith.subf %66, %76 : vector<256x512xf32>
    %78 = arith.truncf %77 : vector<256x512xf32> to vector<256x512xbf16>
    %c0_42 = arith.constant 0 : index
    %c0_43 = arith.constant 0 : index
    %79 = vector.load %arg10[%c0_42, %c0_43] : memref<256x512xbf16, #tpu.memory_space<vmem>>, vector<256x512xbf16>
    tpu.vector_store %arg10[%c0_42, %c0_43], %78 {strides = array<i32>} : memref<256x512xbf16, #tpu.memory_space<vmem>>, vector<256x512xbf16>,
    return
  }
  func.func @transform_0(%arg0: i32) -> (i32, i32) {
    %c0_i32 = arith.constant 0 : i32
    %c0_i32_0 = arith.constant 0 : i32
    return %arg0, %c0_i32 : i32, i32
  }
  func.func @transform_1(%arg0: i32) -> (i32, i32) {
    %c0_i32 = arith.constant 0 : i32
    %c0_i32_0 = arith.constant 0 : i32
    return %arg0, %c0_i32 : i32, i32
  }
  func.func @transform_2(%arg0: i32) -> (i32, i32) {
    %c0_i32 = arith.constant 0 : i32
    %c0_i32_0 = arith.constant 0 : i32
    return %arg0, %c0_i32 : i32, i32
  }
  func.func @transform_3(%arg0: i32) -> (i32, i32) {
    %c0_i32 = arith.constant 0 : i32
    %c0_i32_0 = arith.constant 0 : i32
    return %arg0, %c0_i32 : i32, i32
  }
  func.func @transform_4(%arg0: i32) -> (i32, i32) {
    %c0_i32 = arith.constant 0 : i32
    %c0_i32_0 = arith.constant 0 : i32
    %c0_i32_1 = arith.constant 0 : i32
    return %c0_i32, %c0_i32_0 : i32, i32
  }
  func.func @transform_5(%arg0: i32) -> (i32, i32) {
    %c0_i32 = arith.constant 0 : i32
    %c0_i32_0 = arith.constant 0 : i32
    %c0_i32_1 = arith.constant 0 : i32
    return %c0_i32, %c0_i32_0 : i32, i32
  }
  func.func @transform_6(%arg0: i32) -> (i32, i32) {
    %c0_i32 = arith.constant 0 : i32
    %c0_i32_0 = arith.constant 0 : i32
    %c0_i32_1 = arith.constant 0 : i32
    return %c0_i32, %c0_i32_0 : i32, i32
  }
  func.func @transform_7(%arg0: i32) -> (i32, i32) {
    %c0_i32 = arith.constant 0 : i32
    %c0_i32_0 = arith.constant 0 : i32
    %c0_i32_1 = arith.constant 0 : i32
    return %c0_i32, %c0_i32_0 : i32, i32
  }
  func.func @transform_8(%arg0: i32) -> (i32, i32) {
    %c0_i32 = arith.constant 0 : i32
    %c0_i32_0 = arith.constant 0 : i32
    %c0_i32_1 = arith.constant 0 : i32
    return %c0_i32, %c0_i32_0 : i32, i32
  }
  func.func @transform_9(%arg0: i32) -> (i32, i32) {
    %c0_i32 = arith.constant 0 : i32
    %c0_i32_0 = arith.constant 0 : i32
    return %arg0, %c0_i32 : i32, i32
  }
  func.func @transform_10(%arg0: i32) -> (i32, i32) {
    %c0_i32 = arith.constant 0 : i32
    %c0_i32_0 = arith.constant 0 : i32
    return %arg0, %c0_i32 : i32, i32
  }
  func.func @transform_11(%arg0: i32) -> (i32, i32) {
    %c0_i32 = arith.constant 0 : i32
    %c0_i32_0 = arith.constant 0 : i32
    return %arg0, %c0_i32 : i32, i32
  }
}

</mosaic_0001>

<llo_original>
// kernel: tpu_custom_call.1
$region0: #{tpu_custom_call.1}
  #allocation0 [shape = 'u32[]', space=smem, size = 0x4, offset = 0x4, fixed_abs, tag = 'smem constant byte address 0x4 - core index']
  #allocation1 [shape = 'u32[72,128]{1,0:T(1,128)}', space=vmem, size = 0x9000, scoped, tag = 'internal scratch']
  #allocation2 [shape = 'bf16[256,384]{1,0:T(8,128)(2,1)}', space=vmem, size = 0x30000, scoped, tag = 'scratch operand']
  %s0 = inlined_call_operand.vmem [shape: s32[768,1], index: 0, kind: input, shape index: {}]
  %s1 = inlined_call_operand.vmem [shape: f32[768,128], index: 1, kind: input, shape index: {}]
  %s2 = inlined_call_operand.hbm [shape: f32[768,128], index: 2, kind: input, shape index: {}]
  %s3 = inlined_call_operand.hbm [shape: f32[768,128], index: 3, kind: input, shape index: {}]
  %s4 = inlined_call_operand.hbm [shape: bf16[512,128], index: 4, kind: input, shape index: {}]
  %s5 = inlined_call_operand.hbm [shape: bf16[384,512], index: 5, kind: input, shape index: {}]
  %s6 = inlined_call_operand.vmem [shape: f32[1,512], index: 6, kind: input, shape index: {}]
  %s7 = inlined_call_operand.hbm [shape: bf16[128,512], index: 7, kind: input, shape index: {}]
  %s8 = inlined_call_operand.hbm [shape: f32[1,512], index: 8, kind: input, shape index: {}]
  %s9 = inlined_call_operand.hbm [shape: bf16[768,512], index: 9, kind: output, shape index: {0}]
  %s10 = inlined_call_operand.hbm [shape: f32[768,128], index: 10, kind: output, shape index: {1}]
  %s11 = inlined_call_operand.hbm [shape: f32[768,128], index: 11, kind: output, shape index: {2}]
  %12 = xla_tuple %s9, %s10, %s11
  %s13 = sld [smem:[#allocation0]]
  $region109: #{tpu_custom_call.1} parent=0
    _
  %s15 = ssub.s32 1, %s13
  %s16 = scalar_select 0, %s15, %s13
  $region1: #{tpu_custom_call.1} parent=0
    #allocation3 [shape = 'u8[262144]{0}', space=vmem, size = 0x40000, scoped, tag = 'input window, operand 2']
    #allocation4 [shape = 's32[2]{0}', space=sflag, size = 0x8, scoped, tag = 'scoped memory for tpu_custom_call.1']
    #allocation5 [shape = 's32[2]{0}', space=sflag, size = 0x8, scoped, tag = 'scoped memory for tpu_custom_call.1']
    #allocation6 [shape = 'u8[262144]{0}', space=vmem, size = 0x40000, scoped, tag = 'input window, operand 3']
    #allocation7 [shape = 's32[2]{0}', space=sflag, size = 0x8, scoped, tag = 'scoped memory for tpu_custom_call.1']
    #allocation8 [shape = 'u8[131072]{0}', space=vmem, size = 0x20000, scoped, tag = 'input window, operand 4, single buffered']
    #allocation9 [shape = 'u8[393216]{0}', space=vmem, size = 0x60000, scoped, tag = 'input window, operand 5, single buffered']
    #allocation10 [shape = 's32[1]{0}', space=sflag, size = 0x4, scoped, tag = 'scoped memory for tpu_custom_call.1']
    #allocation11 [shape = 'u8[131072]{0}', space=vmem, size = 0x20000, scoped, tag = 'input window, operand 7, single buffered']
    #allocation12 [shape = 'u8[2048]{0}', space=vmem, size = 0x800, scoped, tag = 'input window, operand 8, single buffered']
    #allocation13 [shape = 's32[1]{0}', space=sflag, size = 0x4, scoped, tag = 'scoped memory for tpu_custom_call.1']
    #allocation14 [shape = 'u8[524288]{0}', space=vmem, size = 0x80000, scoped, tag = 'output window, operand 0']
    #allocation15 [shape = 'u8[262144]{0}', space=vmem, size = 0x40000, scoped, tag = 'output window, operand 1']
    #allocation16 [shape = 's32[2]{0}', space=sflag, size = 0x8, scoped, tag = 'scoped memory for tpu_custom_call.1']
    #allocation17 [shape = 'u8[262144]{0}', space=vmem, size = 0x40000, scoped, tag = 'output window, operand 2']
    %17 = vsyncpa [#allocation4], 0
    %s18 = scalar_lea.sflag [#allocation4], 1
    %19 = vsyncpa %s18, 0
    %20 = vsyncpa [#allocation7], 0
    %s21 = scalar_lea.sflag [#allocation7], 1
    %22 = vsyncpa %s21, 0
    %23 = vsyncpa [#allocation10], 0
    %24 = vsyncpa [#allocation13], 0
    %25 = vsyncpa [#allocation5], 0
    %s26 = scalar_lea.sflag [#allocation5], 1
    %27 = vsyncpa %s26, 0
    %28 = vsyncpa [#allocation16], 0
    %s29 = scalar_lea.sflag [#allocation16], 1
    %30 = vsyncpa %s29, 0
    loop: start=0, step=1, limit=5
    $region2: #{tpu_custom_call.1} parent=1 // loop_pre_header
      _
    $region3: #{tpu_custom_call.1} parent=1 // loop_header
      %s32 = sphi 0, %s36
      %p33 = scmp.ge.s32.totalorder %s32, 5
      %s42 = sphi 0, %s44
      %s45 = sphi 0, %s42
      %s46 = sphi 0, %s45
      %s62 = sphi 0, %s46
      %s68 = sphi 0, %s70
      %s71 = sphi 0, %s68
      %s72 = sphi 0, %s71
      %s88 = sphi 0, %s72
      %s94 = sphi 0, %s96
      %s97 = sphi 0, %s94
      %s98 = sphi 0, %s97
      %s114 = sphi 0, %s98
      %s120 = sphi 0, %s122
      %s123 = sphi 0, %s120
      %s124 = sphi 0, %s123
      %s140 = sphi 0, %s124
      %s144 = sphi 0, %s144
      %s146 = sphi 0, %s144
      %s147 = sphi 0, %s146
      %s161 = sphi 0, %s147
      %s165 = sphi 0, %s165
      %s167 = sphi 0, %s165
      %s168 = sphi 0, %s167
      %s182 = sphi 0, %s168
      %s186 = sphi 0, %s186
      %s188 = sphi 0, %s186
      %s189 = sphi 0, %s188
      %s203 = sphi 0, %s189
      %s207 = sphi 0, %s207
      %s209 = sphi 0, %s207
      %s210 = sphi 0, %s209
      %s224 = sphi 0, %s210
      %s228 = sphi 0, %s228
      %s230 = sphi 0, %s228
      %s231 = sphi 0, %s230
      %s245 = sphi 0, %s231
      %s251 = sphi 0, %s253
      %s254 = sphi 0, %s251
      %s255 = sphi 0, %s254
      %s271 = sphi 0, %s255
      %s277 = sphi 0, %s279
      %s280 = sphi 0, %s277
      %s281 = sphi 0, %s280
      %s297 = sphi 0, %s281
      %s303 = sphi 0, %s305
      %s306 = sphi 0, %s303
      %s307 = sphi 0, %s306
      %s323 = sphi 0, %s307
    $region4: #{tpu_custom_call.1} parent=1 // loop_header_branch
      %35 = sbr.rel (%p33) target = $region8
    $region5: #{tpu_custom_call.1} parent=1 // loop_body
      %s37 = ssub.s32 %s32, 1
      %s38 = ssub.s32 %s32, 2
      %s39 = sadd.s32 %s32, 1
      %s40 = ssub.s32 %s32, %s39
      %p41 = scmp.eq.s32.totalorder %s40, 0
      %s43 = sadd.s32 %s42, 1
      %s44 = scalar_select %p41, %s42, %s43
      %p47 = pneg %p41
      %p48 = scmp.eq.s32.totalorder %s32, 2
      %p49 = por %p47, %p48
      %p50 = scmp.ne.s32.totalorder %s42, %s45
      %p51 = scmp.eq.s32.totalorder %s32, 0
      %p52 = por %p50, %p51
      %p53 = scmp.ne.s32.totalorder %s42, %s45
      %p54 = scmp.eq.s32.totalorder %s37, 2
      %p55 = por %p53, %p54
      %p56 = scmp.ne.s32.totalorder %s45, %s46
      %p57 = scmp.eq.s32.totalorder %s37, 0
      %p58 = por %p56, %p57
      %p59 = scmp.ne.s32.totalorder %s45, %s46
      %p60 = scmp.eq.s32.totalorder %s38, 2
      %p61 = por %p59, %p60
      %p63 = scmp.ne.s32.totalorder %s46, %s62
      %p64 = scmp.eq.s32.totalorder %s38, 0
      %p65 = por %p63, %p64
      %s66 = ssub.s32 %s32, %s39
      %p67 = scmp.eq.s32.totalorder %s66, 0
      %s69 = sadd.s32 %s68, 1
      %s70 = scalar_select %p67, %s68, %s69
      %p73 = pneg %p67
      %p74 = scmp.eq.s32.totalorder %s32, 2
      %p75 = por %p73, %p74
      %p76 = scmp.ne.s32.totalorder %s68, %s71
      %p77 = scmp.eq.s32.totalorder %s32, 0
      %p78 = por %p76, %p77
      %p79 = scmp.ne.s32.totalorder %s68, %s71
      %p80 = scmp.eq.s32.totalorder %s37, 2
      %p81 = por %p79, %p80
      %p82 = scmp.ne.s32.totalorder %s71, %s72
      %p83 = scmp.eq.s32.totalorder %s37, 0
      %p84 = por %p82, %p83
      %p85 = scmp.ne.s32.totalorder %s71, %s72
      %p86 = scmp.eq.s32.totalorder %s38, 2
      %p87 = por %p85, %p86
      %p89 = scmp.ne.s32.totalorder %s72, %s88
      %p90 = scmp.eq.s32.totalorder %s38, 0
      %p91 = por %p89, %p90
      %s92 = ssub.s32 %s32, %s39
      %p93 = scmp.eq.s32.totalorder %s92, 0
      %s95 = sadd.s32 %s94, 1
      %s96 = scalar_select %p93, %s94, %s95
      %p99 = pneg %p93
      %p100 = scmp.eq.s32.totalorder %s32, 2
      %p101 = por %p99, %p100
      %p102 = scmp.ne.s32.totalorder %s94, %s97
      %p103 = scmp.eq.s32.totalorder %s32, 0
      %p104 = por %p102, %p103
      %p105 = scmp.ne.s32.totalorder %s94, %s97
      %p106 = scmp.eq.s32.totalorder %s37, 2
      %p107 = por %p105, %p106
      %p108 = scmp.ne.s32.totalorder %s97, %s98
      %p109 = scmp.eq.s32.totalorder %s37, 0
      %p110 = por %p108, %p109
      %p111 = scmp.ne.s32.totalorder %s97, %s98
      %p112 = scmp.eq.s32.totalorder %s38, 2
      %p113 = por %p111, %p112
      %p115 = scmp.ne.s32.totalorder %s98, %s114
      %p116 = scmp.eq.s32.totalorder %s38, 0
      %p117 = por %p115, %p116
      %s118 = ssub.s32 %s32, %s39
      %p119 = scmp.eq.s32.totalorder %s118, 0
      %s121 = sadd.s32 %s120, 1
      %s122 = scalar_select %p119, %s120, %s121
      %p125 = pneg %p119
      %p126 = scmp.eq.s32.totalorder %s32, 2
      %p127 = por %p125, %p126
      %p128 = scmp.ne.s32.totalorder %s120, %s123
      %p129 = scmp.eq.s32.totalorder %s32, 0
      %p130 = por %p128, %p129
      %p131 = scmp.ne.s32.totalorder %s120, %s123
      %p132 = scmp.eq.s32.totalorder %s37, 2
      %p133 = por %p131, %p132
      %p134 = scmp.ne.s32.totalorder %s123, %s124
      %p135 = scmp.eq.s32.totalorder %s37, 0
      %p136 = por %p134, %p135
      %p137 = scmp.ne.s32.totalorder %s123, %s124
      %p138 = scmp.eq.s32.totalorder %s38, 2
      %p139 = por %p137, %p138
      %p141 = scmp.ne.s32.totalorder %s124, %s140
      %p142 = scmp.eq.s32.totalorder %s38, 0
      %p143 = por %p141, %p142
      %s145 = sadd.s32 %s144, 1
      %p148 = scmp.eq.s32.totalorder %s32, 2
      %p149 = scmp.ne.s32.totalorder %s144, %s146
      %p150 = scmp.eq.s32.totalorder %s32, 0
      %p151 = por %p149, %p150
      %p152 = scmp.ne.s32.totalorder %s144, %s146
      %p153 = scmp.eq.s32.totalorder %s37, 2
      %p154 = por %p152, %p153
      %p155 = scmp.ne.s32.totalorder %s146, %s147
      %p156 = scmp.eq.s32.totalorder %s37, 0
      %p157 = por %p155, %p156
      %p158 = scmp.ne.s32.totalorder %s146, %s147
      %p159 = scmp.eq.s32.totalorder %s38, 2
      %p160 = por %p158, %p159
      %p162 = scmp.ne.s32.totalorder %s147, %s161
      %p163 = scmp.eq.s32.totalorder %s38, 0
      %p164 = por %p162, %p163
      %s166 = sadd.s32 %s165, 1
      %p169 = scmp.eq.s32.totalorder %s32, 2
      %p170 = scmp.ne.s32.totalorder %s165, %s167
      %p171 = scmp.eq.s32.totalorder %s32, 0
      %p172 = por %p170, %p171
      %p173 = scmp.ne.s32.totalorder %s165, %s167
      %p174 = scmp.eq.s32.totalorder %s37, 2
      %p175 = por %p173, %p174
      %p176 = scmp.ne.s32.totalorder %s167, %s168
      %p177 = scmp.eq.s32.totalorder %s37, 0
      %p178 = por %p176, %p177
      %p179 = scmp.ne.s32.totalorder %s167, %s168
      %p180 = scmp.eq.s32.totalorder %s38, 2
      %p181 = por %p179, %p180
      %p183 = scmp.ne.s32.totalorder %s168, %s182
      %p184 = scmp.eq.s32.totalorder %s38, 0
      %p185 = por %p183, %p184
      %s187 = sadd.s32 %s186, 1
      %p190 = scmp.eq.s32.totalorder %s32, 2
      %p191 = scmp.ne.s32.totalorder %s186, %s188
      %p192 = scmp.eq.s32.totalorder %s32, 0
      %p193 = por %p191, %p192
      %p194 = scmp.ne.s32.totalorder %s186, %s188
      %p195 = scmp.eq.s32.totalorder %s37, 2
      %p196 = por %p194, %p195
      %p197 = scmp.ne.s32.totalorder %s188, %s189
      %p198 = scmp.eq.s32.totalorder %s37, 0
      %p199 = por %p197, %p198
      %p200 = scmp.ne.s32.totalorder %s188, %s189
      %p201 = scmp.eq.s32.totalorder %s38, 2
      %p202 = por %p200, %p201
      %p204 = scmp.ne.s32.totalorder %s189, %s203
      %p205 = scmp.eq.s32.totalorder %s38, 0
      %p206 = por %p204, %p205
      %s208 = sadd.s32 %s207, 1
      %p211 = scmp.eq.s32.totalorder %s32, 2
      %p212 = scmp.ne.s32.totalorder %s207, %s209
      %p213 = scmp.eq.s32.totalorder %s32, 0
      %p214 = por %p212, %p213
      %p215 = scmp.ne.s32.totalorder %s207, %s209
      %p216 = scmp.eq.s32.totalorder %s37, 2
      %p217 = por %p215, %p216
      %p218 = scmp.ne.s32.totalorder %s209, %s210
      %p219 = scmp.eq.s32.totalorder %s37, 0
      %p220 = por %p218, %p219
      %p221 = scmp.ne.s32.totalorder %s209, %s210
      %p222 = scmp.eq.s32.totalorder %s38, 2
      %p223 = por %p221, %p222
      %p225 = scmp.ne.s32.totalorder %s210, %s224
      %p226 = scmp.eq.s32.totalorder %s38, 0
      %p227 = por %p225, %p226
      %s229 = sadd.s32 %s228, 1
      %p232 = scmp.eq.s32.totalorder %s32, 2
      %p233 = scmp.ne.s32.totalorder %s228, %s230
      %p234 = scmp.eq.s32.totalorder %s32, 0
      %p235 = por %p233, %p234
      %p236 = scmp.ne.s32.totalorder %s228, %s230
      %p237 = scmp.eq.s32.totalorder %s37, 2
      %p238 = por %p236, %p237
      %p239 = scmp.ne.s32.totalorder %s230, %s231
      %p240 = scmp.eq.s32.totalorder %s37, 0
      %p241 = por %p239, %p240
      %p242 = scmp.ne.s32.totalorder %s230, %s231
      %p243 = scmp.eq.s32.totalorder %s38, 2
      %p244 = por %p242, %p243
      %p246 = scmp.ne.s32.totalorder %s231, %s245
      %p247 = scmp.eq.s32.totalorder %s38, 0
      %p248 = por %p246, %p247
      %s249 = ssub.s32 %s32, %s39
      %p250 = scmp.eq.s32.totalorder %s249, 0
      %s252 = sadd.s32 %s251, 1
      %s253 = scalar_select %p250, %s251, %s252
      %p256 = pneg %p250
      %p257 = scmp.eq.s32.totalorder %s32, 2
      %p258 = por %p256, %p257
      %p259 = scmp.ne.s32.totalorder %s251, %s254
      %p260 = scmp.eq.s32.totalorder %s32, 0
      %p261 = por %p259, %p260
      %p262 = scmp.ne.s32.totalorder %s251, %s254
      %p263 = scmp.eq.s32.totalorder %s37, 2
      %p264 = por %p262, %p263
      %p265 = scmp.ne.s32.totalorder %s254, %s255
      %p266 = scmp.eq.s32.totalorder %s37, 0
      %p267 = por %p265, %p266
      %p268 = scmp.ne.s32.totalorder %s254, %s255
      %p269 = scmp.eq.s32.totalorder %s38, 2
      %p270 = por %p268, %p269
      %p272 = scmp.ne.s32.totalorder %s255, %s271
      %p273 = scmp.eq.s32.totalorder %s38, 0
      %p274 = por %p272, %p273
      %s275 = ssub.s32 %s32, %s39
      %p276 = scmp.eq.s32.totalorder %s275, 0
      %s278 = sadd.s32 %s277, 1
      %s279 = scalar_select %p276, %s277, %s278
      %p282 = pneg %p276
      %p283 = scmp.eq.s32.totalorder %s32, 2
      %p284 = por %p282, %p283
      %p285 = scmp.ne.s32.totalorder %s277, %s280
      %p286 = scmp.eq.s32.totalorder %s32, 0
      %p287 = por %p285, %p286
      %p288 = scmp.ne.s32.totalorder %s277, %s280
      %p289 = scmp.eq.s32.totalorder %s37, 2
      %p290 = por %p288, %p289
      %p291 = scmp.ne.s32.totalorder %s280, %s281
      %p292 = scmp.eq.s32.totalorder %s37, 0
      %p293 = por %p291, %p292
      %p294 = scmp.ne.s32.totalorder %s280, %s281
      %p295 = scmp.eq.s32.totalorder %s38, 2
      %p296 = por %p294, %p295
      %p298 = scmp.ne.s32.totalorder %s281, %s297
      %p299 = scmp.eq.s32.totalorder %s38, 0
      %p300 = por %p298, %p299
      %s301 = ssub.s32 %s32, %s39
      %p302 = scmp.eq.s32.totalorder %s301, 0
      %s304 = sadd.s32 %s303, 1
      %s305 = scalar_select %p302, %s303, %s304
      %p308 = pneg %p302
      %p309 = scmp.eq.s32.totalorder %s32, 2
      %p310 = por %p308, %p309
      %p311 = scmp.ne.s32.totalorder %s303, %s306
      %p312 = scmp.eq.s32.totalorder %s32, 0
      %p313 = por %p311, %p312
      %p314 = scmp.ne.s32.totalorder %s303, %s306
      %p315 = scmp.eq.s32.totalorder %s37, 2
      %p316 = por %p314, %p315
      %p317 = scmp.ne.s32.totalorder %s306, %s307
      %p318 = scmp.eq.s32.totalorder %s37, 0
      %p319 = por %p317, %p318
      %p320 = scmp.ne.s32.totalorder %s306, %s307
      %p321 = scmp.eq.s32.totalorder %s38, 2
      %p322 = por %p320, %p321
      %p324 = scmp.ne.s32.totalorder %s307, %s323
      %p325 = scmp.eq.s32.totalorder %s38, 0
      %p326 = por %p324, %p325
      %p327 = scmp.le.s32.totalorder 1, %s32
      %p328 = scmp.lt.s32.totalorder %s32, 4
      %p329 = pnand %p327, %p328
      %p330 = pneg %p329
      // Predicated region
      $region9: #{tpu_custom_call.1} parent=5 // pred_check
        _
      $region10: #{tpu_custom_call.1} parent=5 // pred_check_branch
        %332 = sbr.rel (%p329) target = $region12
      $region11: #{tpu_custom_call.1} parent=5 // pred_region
        %s333 = ssub.s32 %s32, 1
        // Predicated region
        $region13: #{tpu_custom_call.1} parent=11 // pred_check
          %p334 = pneg %p157
        $region14: #{tpu_custom_call.1} parent=11 // pred_check_branch
          %336 = sbr.rel (%p334) target = $region16
        $region15: #{tpu_custom_call.1} parent=11 // pred_region
          %338 = vsyncadd [#allocation7], 0
          %s339 = sshll.u32 %s4, 4
          %s340 = int_to_ptr.hbm [resolvable:$true] %s339
          %s341 = sshll.u32 [#allocation8], 4
          %s342 = int_to_ptr.vmem [resolvable:$true] %s341
          %347 = dma.hbm_to_vmem [thread:$0]  %s340, 4096, %s342, [#allocation7], 64, 64, 4
        $region16: #{tpu_custom_call.1} parent=11 // pred_fallthru
          _
        // Predicated region
        $region17: #{tpu_custom_call.1} parent=11 // pred_check
          %p348 = pneg %p178
        $region18: #{tpu_custom_call.1} parent=11 // pred_check_branch
          %350 = sbr.rel (%p348) target = $region20
        $region19: #{tpu_custom_call.1} parent=11 // pred_region
          %352 = vsyncadd [#allocation10], 0
          %s353 = sshll.u32 %s5, 4
          %s354 = int_to_ptr.hbm [resolvable:$true] %s353
          %s355 = sshll.u32 [#allocation9], 4
          %s356 = int_to_ptr.vmem [resolvable:$true] %s355
          %361 = dma.hbm_to_vmem [thread:$0]  %s354, 12288, %s356, [#allocation10], 256, 256, 16
        $region20: #{tpu_custom_call.1} parent=11 // pred_fallthru
          _
        // Predicated region
        $region21: #{tpu_custom_call.1} parent=11 // pred_check
          %p362 = pneg %p199
        $region22: #{tpu_custom_call.1} parent=11 // pred_check_branch
          %364 = sbr.rel (%p362) target = $region24
        $region23: #{tpu_custom_call.1} parent=11 // pred_region
          _
        $region24: #{tpu_custom_call.1} parent=11 // pred_fallthru
          _
        // Predicated region
        $region25: #{tpu_custom_call.1} parent=11 // pred_check
          %p365 = pneg %p220
        $region26: #{tpu_custom_call.1} parent=11 // pred_check_branch
          %367 = sbr.rel (%p365) target = $region28
        $region27: #{tpu_custom_call.1} parent=11 // pred_region
          %369 = vsyncadd [#allocation10], 0
          %s370 = sshll.u32 %s7, 4
          %s371 = int_to_ptr.hbm [resolvable:$true] %s370
          %s372 = sshll.u32 [#allocation11], 4
          %s373 = int_to_ptr.vmem [resolvable:$true] %s372
          %378 = dma.hbm_to_vmem [thread:$0]  %s371, 4096, %s373, [#allocation10], 256, 256, 16
        $region28: #{tpu_custom_call.1} parent=11 // pred_fallthru
          _
        // Predicated region
        $region29: #{tpu_custom_call.1} parent=11 // pred_check
          %p379 = pneg %p241
        $region30: #{tpu_custom_call.1} parent=11 // pred_check_branch
          %381 = sbr.rel (%p379) target = $region32
        $region31: #{tpu_custom_call.1} parent=11 // pred_region
          %383 = vsyncadd [#allocation13], 0
          %s385 = sshll.u32 %s8, 4
          %s386 = int_to_ptr.hbm [resolvable:$true] %s385
          %s387 = sshll.u32 [#allocation12], 4
          %s388 = int_to_ptr.vmem [resolvable:$true] %s387
          %390 = dma.hbm_to_vmem [thread:$0]  %s386, 64, %s388, [#allocation13]
        $region32: #{tpu_custom_call.1} parent=11 // pred_fallthru
          _
      $region12: #{tpu_custom_call.1} parent=5 // pred_fallthru
        _
      %p391 = scmp.lt.s32.totalorder %s32, 3
      // Predicated region
      $region33: #{tpu_custom_call.1} parent=5 // pred_check
        %p392 = pneg %p391
      $region34: #{tpu_custom_call.1} parent=5 // pred_check_branch
        %394 = sbr.rel (%p392) target = $region36
      $region35: #{tpu_custom_call.1} parent=5 // pred_region
        // Predicated region
        $region37: #{tpu_custom_call.1} parent=35 // pred_check
          %p395 = pneg %p52
        $region38: #{tpu_custom_call.1} parent=35 // pred_check_branch
          %397 = sbr.rel (%p395) target = $region40
        $region39: #{tpu_custom_call.1} parent=35 // pred_region
          %s398 = smul.u32 32, %s32
          %p399 = scmp.lt.s32.totalorder %s398, 95
          %s400 = scalar_select %p399, %s398, 95
          %s401 = smul.addr %s400, 8
          %s402 = scalar_lea.vmem %s0, %s401
          %s403 = smul.u32 32, %s32
        $region40: #{tpu_custom_call.1} parent=35 // pred_fallthru
          _
        // Predicated region
        $region41: #{tpu_custom_call.1} parent=35 // pred_check
          %p404 = pneg %p78
        $region42: #{tpu_custom_call.1} parent=35 // pred_check_branch
          %406 = sbr.rel (%p404) target = $region44
        $region43: #{tpu_custom_call.1} parent=35 // pred_region
          %s407 = smul.u32 32, %s32
          %p408 = scmp.lt.s32.totalorder %s407, 95
          %s409 = scalar_select %p408, %s407, 95
          %s410 = smul.addr %s409, 8
          %s411 = scalar_lea.vmem %s1, %s410
          %s412 = smul.u32 32, %s32
        $region44: #{tpu_custom_call.1} parent=35 // pred_fallthru
          _
        // Predicated region
        $region45: #{tpu_custom_call.1} parent=35 // pred_check
          %p413 = pneg %p104
        $region46: #{tpu_custom_call.1} parent=35 // pred_check_branch
          %415 = sbr.rel (%p413) target = $region48
        $region47: #{tpu_custom_call.1} parent=35 // pred_region
          %s416 = sand.u32 %s94, 1
          %s417 = scalar_lea.sflag [#allocation4], %s416
          %s418 = sand.u32 %s94, 1
          %s419 = smul.addr %s418, 256
          %s420 = scalar_lea.vmem [#allocation3], %s419
          %s421 = smul.u32 32, %s32
          %423 = vsyncadd %s417, 0
          %s424 = smul.addr %s421, 8
          %s425 = scalar_lea.hbm %s2, %s424
          %s426 = sshll.u32 %s425, 4
          %s427 = int_to_ptr.hbm [resolvable:$true] %s426
          %s428 = sshll.u32 %s420, 4
          %s429 = int_to_ptr.vmem [resolvable:$true] %s428
          %434 = dma.hbm_to_vmem [thread:$0]  %s427, 4096, %s429, %s417, 128, 128, 8
        $region48: #{tpu_custom_call.1} parent=35 // pred_fallthru
          _
        // Predicated region
        $region49: #{tpu_custom_call.1} parent=35 // pred_check
          %p435 = pneg %p130
        $region50: #{tpu_custom_call.1} parent=35 // pred_check_branch
          %437 = sbr.rel (%p435) target = $region52
        $region51: #{tpu_custom_call.1} parent=35 // pred_region
          %s438 = sand.u32 %s32, 1
          %s439 = scalar_lea.sflag [#allocation7], %s438
          %s440 = sand.u32 %s120, 1
          %s441 = smul.addr %s440, 256
          %s442 = scalar_lea.vmem [#allocation6], %s441
          %s443 = smul.u32 32, %s32
          %445 = vsyncadd %s439, 0
          %s446 = smul.addr %s443, 8
          %s447 = scalar_lea.hbm %s3, %s446
          %s448 = sshll.u32 %s447, 4
          %s449 = int_to_ptr.hbm [resolvable:$true] %s448
          %s450 = sshll.u32 %s442, 4
          %s451 = int_to_ptr.vmem [resolvable:$true] %s450
          %456 = dma.hbm_to_vmem [thread:$0]  %s449, 4096, %s451, %s439, 128, 128, 8
        $region52: #{tpu_custom_call.1} parent=35 // pred_fallthru
          _
      $region36: #{tpu_custom_call.1} parent=5 // pred_fallthru
        _
      %p457 = scmp.le.s32.totalorder 1, %s32
      %p458 = scmp.lt.s32.totalorder %s32, 4
      %p459 = pnand %p457, %p458
      %p460 = pneg %p459
      // Predicated region
      $region53: #{tpu_custom_call.1} parent=5 // pred_check
        _
      $region54: #{tpu_custom_call.1} parent=5 // pred_check_branch
        %462 = sbr.rel (%p459) target = $region56
      $region55: #{tpu_custom_call.1} parent=5 // pred_region
        %s463 = ssub.s32 %s32, 1
        %s464 = sand.u32 %s97, 1
        %s465 = scalar_lea.sflag [#allocation4], %s464
        %s466 = sand.u32 %s97, 1
        %s467 = smul.addr %s466, 256
        %s468 = scalar_lea.vmem [#allocation3], %s467
        // Predicated region
        $region57: #{tpu_custom_call.1} parent=55 // pred_check
          %p469 = pneg %p110
        $region58: #{tpu_custom_call.1} parent=55 // pred_check_branch
          %471 = sbr.rel (%p469) target = $region60
        $region59: #{tpu_custom_call.1} parent=55 // pred_region
          %473 = dma.done %s465, 4096
        $region60: #{tpu_custom_call.1} parent=55 // pred_fallthru
          _
        %s474 = sand.u32 %s37, 1
        %s475 = scalar_lea.sflag [#allocation7], %s474
        %s476 = sand.u32 %s123, 1
        %s477 = smul.addr %s476, 256
        %s478 = scalar_lea.vmem [#allocation6], %s477
        // Predicated region
        $region61: #{tpu_custom_call.1} parent=55 // pred_check
          %p479 = pneg %p136
        $region62: #{tpu_custom_call.1} parent=55 // pred_check_branch
          %481 = sbr.rel (%p479) target = $region64
        $region63: #{tpu_custom_call.1} parent=55 // pred_region
          %483 = dma.done %s475, 4096
        $region64: #{tpu_custom_call.1} parent=55 // pred_fallthru
          _
        // Predicated region
        $region65: #{tpu_custom_call.1} parent=55 // pred_check
          %p484 = pneg %p157
        $region66: #{tpu_custom_call.1} parent=55 // pred_check_branch
          %486 = sbr.rel (%p484) target = $region68
        $region67: #{tpu_custom_call.1} parent=55 // pred_region
          %488 = dma.done [#allocation7], 4096
        $region68: #{tpu_custom_call.1} parent=55 // pred_fallthru
          _
        // Predicated region
        $region69: #{tpu_custom_call.1} parent=55 // pred_check
          %p489 = pneg %p178
        $region70: #{tpu_custom_call.1} parent=55 // pred_check_branch
          %491 = sbr.rel (%p489) target = $region72
        $region71: #{tpu_custom_call.1} parent=55 // pred_region
          %493 = dma.done [#allocation10], 12288
        $region72: #{tpu_custom_call.1} parent=55 // pred_fallthru
          _
        // Predicated region
        $region73: #{tpu_custom_call.1} parent=55 // pred_check
          %p494 = pneg %p220
        $region74: #{tpu_custom_call.1} parent=55 // pred_check_branch
          %496 = sbr.rel (%p494) target = $region76
        $region75: #{tpu_custom_call.1} parent=55 // pred_region
          %498 = dma.done [#allocation10], 4096
        $region76: #{tpu_custom_call.1} parent=55 // pred_fallthru
          _
        // Predicated region
        $region77: #{tpu_custom_call.1} parent=55 // pred_check
          %p499 = pneg %p241
        $region78: #{tpu_custom_call.1} parent=55 // pred_check_branch
          %501 = sbr.rel (%p499) target = $region80
        $region79: #{tpu_custom_call.1} parent=55 // pred_region
          %503 = dma.done [#allocation13], 64
        $region80: #{tpu_custom_call.1} parent=55 // pred_fallthru
          _
        %s504 = smul.u32 32, %s37
        %p505 = scmp.lt.s32.totalorder %s504, 95
        %s506 = scalar_select %p505, %s504, 95
        %s507 = smul.addr %s506, 8
        %s508 = scalar_lea.vmem %s0, %s507
        %p509 = pneg %p58
        %p510 = pneg %p55
        %s511 = smul.u32 32, %s37
        %p512 = scmp.lt.s32.totalorder %s511, 95
        %s513 = scalar_select %p512, %s511, 95
        %s514 = smul.addr %s513, 8
        %s515 = scalar_lea.vmem %s1, %s514
        %p516 = pneg %p84
        %p517 = pneg %p81
        %s518 = sand.u32 %s97, 1
        %s519 = scalar_lea.sflag [#allocation4], %s518
        %s520 = sand.u32 %s97, 1
        %s521 = smul.addr %s520, 256
        %s522 = scalar_lea.vmem [#allocation3], %s521
        %p523 = pneg %p110
        %p524 = pneg %p107
        %s525 = sand.u32 %s37, 1
        %s526 = scalar_lea.sflag [#allocation7], %s525
        %s527 = sand.u32 %s123, 1
        %s528 = smul.addr %s527, 256
        %s529 = scalar_lea.vmem [#allocation6], %s528
        %p530 = pneg %p136
        %p531 = pneg %p133
        %p532 = pneg %p157
        %p533 = pneg %p154
        %p534 = pneg %p178
        %p535 = pneg %p175
        %p536 = pneg %p199
        %p537 = pneg %p196
        %p538 = pneg %p220
        %p539 = pneg %p217
        %p540 = pneg %p241
        %p541 = pneg %p238
        %p542 = pneg %p267
        %p543 = pneg %p264
        %s544 = sand.u32 %s254, 1
        %s545 = scalar_lea.sflag [#allocation5], %s544
        %s546 = sand.u32 %s254, 1
        %s547 = smul.addr %s546, 512
        %s548 = scalar_lea.vmem [#allocation14], %s547
        %p549 = pneg %p293
        %p550 = pneg %p290
        %s551 = sand.u32 %s37, 1
        %s552 = scalar_lea.sflag [#allocation16], %s551
        %s553 = sand.u32 %s280, 1
        %s554 = smul.addr %s553, 256
        %s555 = scalar_lea.vmem [#allocation15], %s554
        %p556 = pneg %p319
        %p557 = pneg %p316
        %s558 = sand.u32 %s37, 1
        %s559 = scalar_lea.sflag [#allocation16], %s558
        %s560 = sand.u32 %s306, 1
        %s561 = smul.addr %s560, 256
        %s562 = scalar_lea.vmem [#allocation17], %s561
        %s563 = smul.u32 32, %s37
        %p564 = scmp.lt.s32.totalorder %s563, 95
        %s565 = scalar_select %p564, %s563, 95
        %s566 = smul.addr %s565, 8
        %s567 = scalar_lea.vmem %s0, %s566
        %s568 = smul.u32 32, %s37
        %s569 = smul.u32 32, %s37
        %p570 = scmp.lt.s32.totalorder %s569, 95
        %s571 = scalar_select %p570, %s569, 95
        %s572 = smul.addr %s571, 8
        %s573 = scalar_lea.vmem %s1, %s572
        %s574 = smul.u32 32, %s37
        %s575 = smul.u32 32, %s37
        %s576 = smul.u32 32, %s37
        %s577 = smul.u32 32, %s37
        %s578 = smul.u32 32, %s37
        %s579 = smul.u32 32, %s37
        %v580 = vld [vmem:[%s567] sm:$0xff]
        %v581 = vld [vmem:[%s567 + $0x8] sm:$0xff]
        %v582 = vld [vmem:[%s567 + $0x10] sm:$0xff]
        %v583 = vld [vmem:[%s567 + $0x18] sm:$0xff]
        %v584 = vld [vmem:[%s567 + $0x20] sm:$0xff]
        %v585 = vld [vmem:[%s567 + $0x28] sm:$0xff]
        %v586 = vld [vmem:[%s567 + $0x30] sm:$0xff]
        %v587 = vld [vmem:[%s567 + $0x38] sm:$0xff]
        %v588 = vld [vmem:[%s567 + $0x40] sm:$0xff]
        %v589 = vld [vmem:[%s567 + $0x48] sm:$0xff]
        %v590 = vld [vmem:[%s567 + $0x50] sm:$0xff]
        %v591 = vld [vmem:[%s567 + $0x58] sm:$0xff]
        %v592 = vld [vmem:[%s567 + $0x60] sm:$0xff]
        %v593 = vld [vmem:[%s567 + $0x68] sm:$0xff]
        %v594 = vld [vmem:[%s567 + $0x70] sm:$0xff]
        %v595 = vld [vmem:[%s567 + $0x78] sm:$0xff]
        %v596 = vld [vmem:[%s567 + $0x80] sm:$0xff]
        %v597 = vld [vmem:[%s567 + $0x88] sm:$0xff]
        %v598 = vld [vmem:[%s567 + $0x90] sm:$0xff]
        %v599 = vld [vmem:[%s567 + $0x98] sm:$0xff]
        %v600 = vld [vmem:[%s567 + $0xa0] sm:$0xff]
        %v601 = vld [vmem:[%s567 + $0xa8] sm:$0xff]
        %v602 = vld [vmem:[%s567 + $0xb0] sm:$0xff]
        %v603 = vld [vmem:[%s567 + $0xb8] sm:$0xff]
        %v604 = vld [vmem:[%s567 + $0xc0] sm:$0xff]
        %v605 = vld [vmem:[%s567 + $0xc8] sm:$0xff]
        %v606 = vld [vmem:[%s567 + $0xd0] sm:$0xff]
        %v607 = vld [vmem:[%s567 + $0xd8] sm:$0xff]
        %v608 = vld [vmem:[%s567 + $0xe0] sm:$0xff]
        %v609 = vld [vmem:[%s567 + $0xe8] sm:$0xff]
        %v610 = vld [vmem:[%s567 + $0xf0] sm:$0xff]
        %v611 = vld [vmem:[%s567 + $0xf8] sm:$0xff]
        %v612 = vlaneseq
        %v613 = vand.u32 %v612, 127
        %v614 = vadd.s32 %v613, 128
        %v615 = vadd.s32 %v613, 256
        %v616 = vadd.s32 %v613, 384
        %617 = vset.pattern.permute.xlu0 0
        %618 = vperm.xlu0 %617, %v580
        %v619 = vpop.permute.xlu0 %618
        %620 = vset.pattern.permute.xlu0 0
        %621 = vperm.xlu0 %620, %v581
        %v622 = vpop.permute.xlu0 %621
        %623 = vset.pattern.permute.xlu0 0
        %624 = vperm.xlu0 %623, %v582
        %v625 = vpop.permute.xlu0 %624
        %626 = vset.pattern.permute.xlu0 0
        %627 = vperm.xlu0 %626, %v583
        %v628 = vpop.permute.xlu0 %627
        %629 = vset.pattern.permute.xlu0 0
        %630 = vperm.xlu0 %629, %v584
        %v631 = vpop.permute.xlu0 %630
        %632 = vset.pattern.permute.xlu0 0
        %633 = vperm.xlu0 %632, %v585
        %v634 = vpop.permute.xlu0 %633
        %635 = vset.pattern.permute.xlu0 0
        %636 = vperm.xlu0 %635, %v586
        %v637 = vpop.permute.xlu0 %636
        %638 = vset.pattern.permute.xlu0 0
        %639 = vperm.xlu0 %638, %v587
        %v640 = vpop.permute.xlu0 %639
        %641 = vset.pattern.permute.xlu0 0
        %642 = vperm.xlu0 %641, %v588
        %v643 = vpop.permute.xlu0 %642
        %644 = vset.pattern.permute.xlu0 0
        %645 = vperm.xlu0 %644, %v589
        %v646 = vpop.permute.xlu0 %645
        %647 = vset.pattern.permute.xlu0 0
        %648 = vperm.xlu0 %647, %v590
        %v649 = vpop.permute.xlu0 %648
        %650 = vset.pattern.permute.xlu0 0
        %651 = vperm.xlu0 %650, %v591
        %v652 = vpop.permute.xlu0 %651
        %653 = vset.pattern.permute.xlu0 0
        %654 = vperm.xlu0 %653, %v592
        %v655 = vpop.permute.xlu0 %654
        %656 = vset.pattern.permute.xlu0 0
        %657 = vperm.xlu0 %656, %v593
        %v658 = vpop.permute.xlu0 %657
        %659 = vset.pattern.permute.xlu0 0
        %660 = vperm.xlu0 %659, %v594
        %v661 = vpop.permute.xlu0 %660
        %662 = vset.pattern.permute.xlu0 0
        %663 = vperm.xlu0 %662, %v595
        %v664 = vpop.permute.xlu0 %663
        %665 = vset.pattern.permute.xlu0 0
        %666 = vperm.xlu0 %665, %v596
        %v667 = vpop.permute.xlu0 %666
        %668 = vset.pattern.permute.xlu0 0
        %669 = vperm.xlu0 %668, %v597
        %v670 = vpop.permute.xlu0 %669
        %671 = vset.pattern.permute.xlu0 0
        %672 = vperm.xlu0 %671, %v598
        %v673 = vpop.permute.xlu0 %672
        %674 = vset.pattern.permute.xlu0 0
        %675 = vperm.xlu0 %674, %v599
        %v676 = vpop.permute.xlu0 %675
        %677 = vset.pattern.permute.xlu0 0
        %678 = vperm.xlu0 %677, %v600
        %v679 = vpop.permute.xlu0 %678
        %680 = vset.pattern.permute.xlu0 0
        %681 = vperm.xlu0 %680, %v601
        %v682 = vpop.permute.xlu0 %681
        %683 = vset.pattern.permute.xlu0 0
        %684 = vperm.xlu0 %683, %v602
        %v685 = vpop.permute.xlu0 %684
        %686 = vset.pattern.permute.xlu0 0
        %687 = vperm.xlu0 %686, %v603
        %v688 = vpop.permute.xlu0 %687
        %689 = vset.pattern.permute.xlu0 0
        %690 = vperm.xlu0 %689, %v604
        %v691 = vpop.permute.xlu0 %690
        %692 = vset.pattern.permute.xlu0 0
        %693 = vperm.xlu0 %692, %v605
        %v694 = vpop.permute.xlu0 %693
        %695 = vset.pattern.permute.xlu0 0
        %696 = vperm.xlu0 %695, %v606
        %v697 = vpop.permute.xlu0 %696
        %698 = vset.pattern.permute.xlu0 0
        %699 = vperm.xlu0 %698, %v607
        %v700 = vpop.permute.xlu0 %699
        %701 = vset.pattern.permute.xlu0 0
        %702 = vperm.xlu0 %701, %v608
        %v703 = vpop.permute.xlu0 %702
        %704 = vset.pattern.permute.xlu0 0
        %705 = vperm.xlu0 %704, %v609
        %v706 = vpop.permute.xlu0 %705
        %707 = vset.pattern.permute.xlu0 0
        %708 = vperm.xlu0 %707, %v610
        %v709 = vpop.permute.xlu0 %708
        %710 = vset.pattern.permute.xlu0 0
        %711 = vperm.xlu0 %710, %v611
        %v712 = vpop.permute.xlu0 %711
        %vm713 = vcmp.eq.s32.totalorder %v613, %v619
        %vm714 = vcmp.eq.s32.totalorder %v614, %v619
        %vm715 = vcmp.eq.s32.totalorder %v615, %v619
        %vm716 = vcmp.eq.s32.totalorder %v616, %v619
        %vm717 = vcmp.eq.s32.totalorder %v613, %v622
        %vm718 = vcmp.eq.s32.totalorder %v614, %v622
        %vm719 = vcmp.eq.s32.totalorder %v615, %v622
        %vm720 = vcmp.eq.s32.totalorder %v616, %v622
        %vm721 = vcmp.eq.s32.totalorder %v613, %v625
        %vm722 = vcmp.eq.s32.totalorder %v614, %v625
        %vm723 = vcmp.eq.s32.totalorder %v615, %v625
        %vm724 = vcmp.eq.s32.totalorder %v616, %v625
        %vm725 = vcmp.eq.s32.totalorder %v613, %v628
        %vm726 = vcmp.eq.s32.totalorder %v614, %v628
        %vm727 = vcmp.eq.s32.totalorder %v615, %v628
        %vm728 = vcmp.eq.s32.totalorder %v616, %v628
        %vm729 = vcmp.eq.s32.totalorder %v613, %v631
        %vm730 = vcmp.eq.s32.totalorder %v614, %v631
        %vm731 = vcmp.eq.s32.totalorder %v615, %v631
        %vm732 = vcmp.eq.s32.totalorder %v616, %v631
        %vm733 = vcmp.eq.s32.totalorder %v613, %v634
        %vm734 = vcmp.eq.s32.totalorder %v614, %v634
        %vm735 = vcmp.eq.s32.totalorder %v615, %v634
        %vm736 = vcmp.eq.s32.totalorder %v616, %v634
        %vm737 = vcmp.eq.s32.totalorder %v613, %v637
        %vm738 = vcmp.eq.s32.totalorder %v614, %v637
        %vm739 = vcmp.eq.s32.totalorder %v615, %v637
        %vm740 = vcmp.eq.s32.totalorder %v616, %v637
        %vm741 = vcmp.eq.s32.totalorder %v613, %v640
        %vm742 = vcmp.eq.s32.totalorder %v614, %v640
        %vm743 = vcmp.eq.s32.totalorder %v615, %v640
        %vm744 = vcmp.eq.s32.totalorder %v616, %v640
        %vm745 = vcmp.eq.s32.totalorder %v613, %v643
        %vm746 = vcmp.eq.s32.totalorder %v614, %v643
        %vm747 = vcmp.eq.s32.totalorder %v615, %v643
        %vm748 = vcmp.eq.s32.totalorder %v616, %v643
        %vm749 = vcmp.eq.s32.totalorder %v613, %v646
        %vm750 = vcmp.eq.s32.totalorder %v614, %v646
        %vm751 = vcmp.eq.s32.totalorder %v615, %v646
        %vm752 = vcmp.eq.s32.totalorder %v616, %v646
        %vm753 = vcmp.eq.s32.totalorder %v613, %v649
        %vm754 = vcmp.eq.s32.totalorder %v614, %v649
        %vm755 = vcmp.eq.s32.totalorder %v615, %v649
        %vm756 = vcmp.eq.s32.totalorder %v616, %v649
        %vm757 = vcmp.eq.s32.totalorder %v613, %v652
        %vm758 = vcmp.eq.s32.totalorder %v614, %v652
        %vm759 = vcmp.eq.s32.totalorder %v615, %v652
        %vm760 = vcmp.eq.s32.totalorder %v616, %v652
        %vm761 = vcmp.eq.s32.totalorder %v613, %v655
        %vm762 = vcmp.eq.s32.totalorder %v614, %v655
        %vm763 = vcmp.eq.s32.totalorder %v615, %v655
        %vm764 = vcmp.eq.s32.totalorder %v616, %v655
        %vm765 = vcmp.eq.s32.totalorder %v613, %v658
        %vm766 = vcmp.eq.s32.totalorder %v614, %v658
        %vm767 = vcmp.eq.s32.totalorder %v615, %v658
        %vm768 = vcmp.eq.s32.totalorder %v616, %v658
        %vm769 = vcmp.eq.s32.totalorder %v613, %v661
        %vm770 = vcmp.eq.s32.totalorder %v614, %v661
        %vm771 = vcmp.eq.s32.totalorder %v615, %v661
        %vm772 = vcmp.eq.s32.totalorder %v616, %v661
        %vm773 = vcmp.eq.s32.totalorder %v613, %v664
        %vm774 = vcmp.eq.s32.totalorder %v614, %v664
        %vm775 = vcmp.eq.s32.totalorder %v615, %v664
        %vm776 = vcmp.eq.s32.totalorder %v616, %v664
        %vm777 = vcmp.eq.s32.totalorder %v613, %v667
        %vm778 = vcmp.eq.s32.totalorder %v614, %v667
        %vm779 = vcmp.eq.s32.totalorder %v615, %v667
        %vm780 = vcmp.eq.s32.totalorder %v616, %v667
        %vm781 = vcmp.eq.s32.totalorder %v613, %v670
        %vm782 = vcmp.eq.s32.totalorder %v614, %v670
        %vm783 = vcmp.eq.s32.totalorder %v615, %v670
        %vm784 = vcmp.eq.s32.totalorder %v616, %v670
        %vm785 = vcmp.eq.s32.totalorder %v613, %v673
        %vm786 = vcmp.eq.s32.totalorder %v614, %v673
        %vm787 = vcmp.eq.s32.totalorder %v615, %v673
        %vm788 = vcmp.eq.s32.totalorder %v616, %v673
        %vm789 = vcmp.eq.s32.totalorder %v613, %v676
        %vm790 = vcmp.eq.s32.totalorder %v614, %v676
        %vm791 = vcmp.eq.s32.totalorder %v615, %v676
        %vm792 = vcmp.eq.s32.totalorder %v616, %v676
        %vm793 = vcmp.eq.s32.totalorder %v613, %v679
        %vm794 = vcmp.eq.s32.totalorder %v614, %v679
        %vm795 = vcmp.eq.s32.totalorder %v615, %v679
        %vm796 = vcmp.eq.s32.totalorder %v616, %v679
        %vm797 = vcmp.eq.s32.totalorder %v613, %v682
        %vm798 = vcmp.eq.s32.totalorder %v614, %v682
        %vm799 = vcmp.eq.s32.totalorder %v615, %v682
        %vm800 = vcmp.eq.s32.totalorder %v616, %v682
        %vm801 = vcmp.eq.s32.totalorder %v613, %v685
        %vm802 = vcmp.eq.s32.totalorder %v614, %v685
        %vm803 = vcmp.eq.s32.totalorder %v615, %v685
        %vm804 = vcmp.eq.s32.totalorder %v616, %v685
        %vm805 = vcmp.eq.s32.totalorder %v613, %v688
        %vm806 = vcmp.eq.s32.totalorder %v614, %v688
        %vm807 = vcmp.eq.s32.totalorder %v615, %v688
        %vm808 = vcmp.eq.s32.totalorder %v616, %v688
        %vm809 = vcmp.eq.s32.totalorder %v613, %v691
        %vm810 = vcmp.eq.s32.totalorder %v614, %v691
        %vm811 = vcmp.eq.s32.totalorder %v615, %v691
        %vm812 = vcmp.eq.s32.totalorder %v616, %v691
        %vm813 = vcmp.eq.s32.totalorder %v613, %v694
        %vm814 = vcmp.eq.s32.totalorder %v614, %v694
        %vm815 = vcmp.eq.s32.totalorder %v615, %v694
        %vm816 = vcmp.eq.s32.totalorder %v616, %v694
        %vm817 = vcmp.eq.s32.totalorder %v613, %v697
        %vm818 = vcmp.eq.s32.totalorder %v614, %v697
        %vm819 = vcmp.eq.s32.totalorder %v615, %v697
        %vm820 = vcmp.eq.s32.totalorder %v616, %v697
        %vm821 = vcmp.eq.s32.totalorder %v613, %v700
        %vm822 = vcmp.eq.s32.totalorder %v614, %v700
        %vm823 = vcmp.eq.s32.totalorder %v615, %v700
        %vm824 = vcmp.eq.s32.totalorder %v616, %v700
        %vm825 = vcmp.eq.s32.totalorder %v613, %v703
        %vm826 = vcmp.eq.s32.totalorder %v614, %v703
        %vm827 = vcmp.eq.s32.totalorder %v615, %v703
        %vm828 = vcmp.eq.s32.totalorder %v616, %v703
        %vm829 = vcmp.eq.s32.totalorder %v613, %v706
        %vm830 = vcmp.eq.s32.totalorder %v614, %v706
        %vm831 = vcmp.eq.s32.totalorder %v615, %v706
        %vm832 = vcmp.eq.s32.totalorder %v616, %v706
        %vm833 = vcmp.eq.s32.totalorder %v613, %v709
        %vm834 = vcmp.eq.s32.totalorder %v614, %v709
        %vm835 = vcmp.eq.s32.totalorder %v615, %v709
        %vm836 = vcmp.eq.s32.totalorder %v616, %v709
        %vm837 = vcmp.eq.s32.totalorder %v613, %v712
        %vm838 = vcmp.eq.s32.totalorder %v614, %v712
        %vm839 = vcmp.eq.s32.totalorder %v615, %v712
        %vm840 = vcmp.eq.s32.totalorder %v616, %v712
        %v841 = vsel %vm713, 1, 0
        %v842 = vsel %vm714, 1, 0
        %v843 = vsel %vm715, 1, 0
        %v844 = vsel %vm716, 1, 0
        %v845 = vsel %vm717, 1, 0
        %v846 = vsel %vm718, 1, 0
        %v847 = vsel %vm719, 1, 0
        %v848 = vsel %vm720, 1, 0
        %v849 = vsel %vm721, 1, 0
        %v850 = vsel %vm722, 1, 0
        %v851 = vsel %vm723, 1, 0
        %v852 = vsel %vm724, 1, 0
        %v853 = vsel %vm725, 1, 0
        %v854 = vsel %vm726, 1, 0
        %v855 = vsel %vm727, 1, 0
        %v856 = vsel %vm728, 1, 0
        %v857 = vsel %vm729, 1, 0
        %v858 = vsel %vm730, 1, 0
        %v859 = vsel %vm731, 1, 0
        %v860 = vsel %vm732, 1, 0
        %v861 = vsel %vm733, 1, 0
        %v862 = vsel %vm734, 1, 0
        %v863 = vsel %vm735, 1, 0
        %v864 = vsel %vm736, 1, 0
        %v865 = vsel %vm737, 1, 0
        %v866 = vsel %vm738, 1, 0
        %v867 = vsel %vm739, 1, 0
        %v868 = vsel %vm740, 1, 0
        %v869 = vsel %vm741, 1, 0
        %v870 = vsel %vm742, 1, 0
        %v871 = vsel %vm743, 1, 0
        %v872 = vsel %vm744, 1, 0
        %v873 = vsel %vm745, 1, 0
        %v874 = vsel %vm746, 1, 0
        %v875 = vsel %vm747, 1, 0
        %v876 = vsel %vm748, 1, 0
        %v877 = vsel %vm749, 1, 0
        %v878 = vsel %vm750, 1, 0
        %v879 = vsel %vm751, 1, 0
        %v880 = vsel %vm752, 1, 0
        %v881 = vsel %vm753, 1, 0
        %v882 = vsel %vm754, 1, 0
        %v883 = vsel %vm755, 1, 0
        %v884 = vsel %vm756, 1, 0
        %v885 = vsel %vm757, 1, 0
        %v886 = vsel %vm758, 1, 0
        %v887 = vsel %vm759, 1, 0
        %v888 = vsel %vm760, 1, 0
        %v889 = vsel %vm761, 1, 0
        %v890 = vsel %vm762, 1, 0
        %v891 = vsel %vm763, 1, 0
        %v892 = vsel %vm764, 1, 0
        %v893 = vsel %vm765, 1, 0
        %v894 = vsel %vm766, 1, 0
        %v895 = vsel %vm767, 1, 0
        %v896 = vsel %vm768, 1, 0
        %v897 = vsel %vm769, 1, 0
        %v898 = vsel %vm770, 1, 0
        %v899 = vsel %vm771, 1, 0
        %v900 = vsel %vm772, 1, 0
        %v901 = vsel %vm773, 1, 0
        %v902 = vsel %vm774, 1, 0
        %v903 = vsel %vm775, 1, 0
        %v904 = vsel %vm776, 1, 0
        %v905 = vsel %vm777, 1, 0
        %v906 = vsel %vm778, 1, 0
        %v907 = vsel %vm779, 1, 0
        %v908 = vsel %vm780, 1, 0
        %v909 = vsel %vm781, 1, 0
        %v910 = vsel %vm782, 1, 0
        %v911 = vsel %vm783, 1, 0
        %v912 = vsel %vm784, 1, 0
        %v913 = vsel %vm785, 1, 0
        %v914 = vsel %vm786, 1, 0
        %v915 = vsel %vm787, 1, 0
        %v916 = vsel %vm788, 1, 0
        %v917 = vsel %vm789, 1, 0
        %v918 = vsel %vm790, 1, 0
        %v919 = vsel %vm791, 1, 0
        %v920 = vsel %vm792, 1, 0
        %v921 = vsel %vm793, 1, 0
        %v922 = vsel %vm794, 1, 0
        %v923 = vsel %vm795, 1, 0
        %v924 = vsel %vm796, 1, 0
        %v925 = vsel %vm797, 1, 0
        %v926 = vsel %vm798, 1, 0
        %v927 = vsel %vm799, 1, 0
        %v928 = vsel %vm800, 1, 0
        %v929 = vsel %vm801, 1, 0
        %v930 = vsel %vm802, 1, 0
        %v931 = vsel %vm803, 1, 0
        %v932 = vsel %vm804, 1, 0
        %v933 = vsel %vm805, 1, 0
        %v934 = vsel %vm806, 1, 0
        %v935 = vsel %vm807, 1, 0
        %v936 = vsel %vm808, 1, 0
        %v937 = vsel %vm809, 1, 0
        %v938 = vsel %vm810, 1, 0
        %v939 = vsel %vm811, 1, 0
        %v940 = vsel %vm812, 1, 0
        %v941 = vsel %vm813, 1, 0
        %v942 = vsel %vm814, 1, 0
        %v943 = vsel %vm815, 1, 0
        %v944 = vsel %vm816, 1, 0
        %v945 = vsel %vm817, 1, 0
        %v946 = vsel %vm818, 1, 0
        %v947 = vsel %vm819, 1, 0
        %v948 = vsel %vm820, 1, 0
        %v949 = vsel %vm821, 1, 0
        %v950 = vsel %vm822, 1, 0
        %v951 = vsel %vm823, 1, 0
        %v952 = vsel %vm824, 1, 0
        %v953 = vsel %vm825, 1, 0
        %v954 = vsel %vm826, 1, 0
        %v955 = vsel %vm827, 1, 0
        %v956 = vsel %vm828, 1, 0
        %v957 = vsel %vm829, 1, 0
        %v958 = vsel %vm830, 1, 0
        %v959 = vsel %vm831, 1, 0
        %v960 = vsel %vm832, 1, 0
        %v961 = vsel %vm833, 1, 0
        %v962 = vsel %vm834, 1, 0
        %v963 = vsel %vm835, 1, 0
        %v964 = vsel %vm836, 1, 0
        %v965 = vsel %vm837, 1, 0
        %v966 = vsel %vm838, 1, 0
        %v967 = vsel %vm839, 1, 0
        %v968 = vsel %vm840, 1, 0
        %v969 = vcvt.s32.f32 %v841
        %v970 = vcvt.s32.f32 %v842
        %v971 = vcvt.s32.f32 %v843
        %v972 = vcvt.s32.f32 %v844
        %v973 = vcvt.s32.f32 %v845
        %v974 = vcvt.s32.f32 %v846
        %v975 = vcvt.s32.f32 %v847
        %v976 = vcvt.s32.f32 %v848
        %v977 = vcvt.s32.f32 %v849
        %v978 = vcvt.s32.f32 %v850
        %v979 = vcvt.s32.f32 %v851
        %v980 = vcvt.s32.f32 %v852
        %v981 = vcvt.s32.f32 %v853
        %v982 = vcvt.s32.f32 %v854
        %v983 = vcvt.s32.f32 %v855
        %v984 = vcvt.s32.f32 %v856
        %v985 = vcvt.s32.f32 %v857
        %v986 = vcvt.s32.f32 %v858
        %v987 = vcvt.s32.f32 %v859
        %v988 = vcvt.s32.f32 %v860
        %v989 = vcvt.s32.f32 %v861
        %v990 = vcvt.s32.f32 %v862
        %v991 = vcvt.s32.f32 %v863
        %v992 = vcvt.s32.f32 %v864
        %v993 = vcvt.s32.f32 %v865
        %v994 = vcvt.s32.f32 %v866
        %v995 = vcvt.s32.f32 %v867
        %v996 = vcvt.s32.f32 %v868
        %v997 = vcvt.s32.f32 %v869
        %v998 = vcvt.s32.f32 %v870
        %v999 = vcvt.s32.f32 %v871
        %v1000 = vcvt.s32.f32 %v872
        %v1001 = vcvt.s32.f32 %v873
        %v1002 = vcvt.s32.f32 %v874
        %v1003 = vcvt.s32.f32 %v875
        %v1004 = vcvt.s32.f32 %v876
        %v1005 = vcvt.s32.f32 %v877
        %v1006 = vcvt.s32.f32 %v878
        %v1007 = vcvt.s32.f32 %v879
        %v1008 = vcvt.s32.f32 %v880
        %v1009 = vcvt.s32.f32 %v881
        %v1010 = vcvt.s32.f32 %v882
        %v1011 = vcvt.s32.f32 %v883
        %v1012 = vcvt.s32.f32 %v884
        %v1013 = vcvt.s32.f32 %v885
        %v1014 = vcvt.s32.f32 %v886
        %v1015 = vcvt.s32.f32 %v887
        %v1016 = vcvt.s32.f32 %v888
        %v1017 = vcvt.s32.f32 %v889
        %v1018 = vcvt.s32.f32 %v890
        %v1019 = vcvt.s32.f32 %v891
        %v1020 = vcvt.s32.f32 %v892
        %v1021 = vcvt.s32.f32 %v893
        %v1022 = vcvt.s32.f32 %v894
        %v1023 = vcvt.s32.f32 %v895
        %v1024 = vcvt.s32.f32 %v896
        %v1025 = vcvt.s32.f32 %v897
        %v1026 = vcvt.s32.f32 %v898
        %v1027 = vcvt.s32.f32 %v899
        %v1028 = vcvt.s32.f32 %v900
        %v1029 = vcvt.s32.f32 %v901
        %v1030 = vcvt.s32.f32 %v902
        %v1031 = vcvt.s32.f32 %v903
        %v1032 = vcvt.s32.f32 %v904
        %v1033 = vcvt.s32.f32 %v905
        %v1034 = vcvt.s32.f32 %v906
        %v1035 = vcvt.s32.f32 %v907
        %v1036 = vcvt.s32.f32 %v908
        %v1037 = vcvt.s32.f32 %v909
        %v1038 = vcvt.s32.f32 %v910
        %v1039 = vcvt.s32.f32 %v911
        %v1040 = vcvt.s32.f32 %v912
        %v1041 = vcvt.s32.f32 %v913
        %v1042 = vcvt.s32.f32 %v914
        %v1043 = vcvt.s32.f32 %v915
        %v1044 = vcvt.s32.f32 %v916
        %v1045 = vcvt.s32.f32 %v917
        %v1046 = vcvt.s32.f32 %v918
        %v1047 = vcvt.s32.f32 %v919
        %v1048 = vcvt.s32.f32 %v920
        %v1049 = vcvt.s32.f32 %v921
        %v1050 = vcvt.s32.f32 %v922
        %v1051 = vcvt.s32.f32 %v923
        %v1052 = vcvt.s32.f32 %v924
        %v1053 = vcvt.s32.f32 %v925
        %v1054 = vcvt.s32.f32 %v926
        %v1055 = vcvt.s32.f32 %v927
        %v1056 = vcvt.s32.f32 %v928
        %v1057 = vcvt.s32.f32 %v929
        %v1058 = vcvt.s32.f32 %v930
        %v1059 = vcvt.s32.f32 %v931
        %v1060 = vcvt.s32.f32 %v932
        %v1061 = vcvt.s32.f32 %v933
        %v1062 = vcvt.s32.f32 %v934
        %v1063 = vcvt.s32.f32 %v935
        %v1064 = vcvt.s32.f32 %v936
        %v1065 = vcvt.s32.f32 %v937
        %v1066 = vcvt.s32.f32 %v938
        %v1067 = vcvt.s32.f32 %v939
        %v1068 = vcvt.s32.f32 %v940
        %v1069 = vcvt.s32.f32 %v941
        %v1070 = vcvt.s32.f32 %v942
        %v1071 = vcvt.s32.f32 %v943
        %v1072 = vcvt.s32.f32 %v944
        %v1073 = vcvt.s32.f32 %v945
        %v1074 = vcvt.s32.f32 %v946
        %v1075 = vcvt.s32.f32 %v947
        %v1076 = vcvt.s32.f32 %v948
        %v1077 = vcvt.s32.f32 %v949
        %v1078 = vcvt.s32.f32 %v950
        %v1079 = vcvt.s32.f32 %v951
        %v1080 = vcvt.s32.f32 %v952
        %v1081 = vcvt.s32.f32 %v953
        %v1082 = vcvt.s32.f32 %v954
        %v1083 = vcvt.s32.f32 %v955
        %v1084 = vcvt.s32.f32 %v956
        %v1085 = vcvt.s32.f32 %v957
        %v1086 = vcvt.s32.f32 %v958
        %v1087 = vcvt.s32.f32 %v959
        %v1088 = vcvt.s32.f32 %v960
        %v1089 = vcvt.s32.f32 %v961
        %v1090 = vcvt.s32.f32 %v962
        %v1091 = vcvt.s32.f32 %v963
        %v1092 = vcvt.s32.f32 %v964
        %v1093 = vcvt.s32.f32 %v965
        %v1094 = vcvt.s32.f32 %v966
        %v1095 = vcvt.s32.f32 %v967
        %v1096 = vcvt.s32.f32 %v968
        %v1097 = vpack.c.bf16 %v973, %v969
        %v1098 = vpack.c.bf16 %v974, %v970
        %v1099 = vpack.c.bf16 %v975, %v971
        %v1100 = vpack.c.bf16 %v976, %v972
        %v1101 = vpack.c.bf16 %v981, %v977
        %v1102 = vpack.c.bf16 %v982, %v978
        %v1103 = vpack.c.bf16 %v983, %v979
        %v1104 = vpack.c.bf16 %v984, %v980
        %v1105 = vpack.c.bf16 %v989, %v985
        %v1106 = vpack.c.bf16 %v990, %v986
        %v1107 = vpack.c.bf16 %v991, %v987
        %v1108 = vpack.c.bf16 %v992, %v988
        %v1109 = vpack.c.bf16 %v997, %v993
        %v1110 = vpack.c.bf16 %v998, %v994
        %v1111 = vpack.c.bf16 %v999, %v995
        %v1112 = vpack.c.bf16 %v1000, %v996
        %v1113 = vpack.c.bf16 %v1005, %v1001
        %v1114 = vpack.c.bf16 %v1006, %v1002
        %v1115 = vpack.c.bf16 %v1007, %v1003
        %v1116 = vpack.c.bf16 %v1008, %v1004
        %v1117 = vpack.c.bf16 %v1013, %v1009
        %v1118 = vpack.c.bf16 %v1014, %v1010
        %v1119 = vpack.c.bf16 %v1015, %v1011
        %v1120 = vpack.c.bf16 %v1016, %v1012
        %v1121 = vpack.c.bf16 %v1021, %v1017
        %v1122 = vpack.c.bf16 %v1022, %v1018
        %v1123 = vpack.c.bf16 %v1023, %v1019
        %v1124 = vpack.c.bf16 %v1024, %v1020
        %v1125 = vpack.c.bf16 %v1029, %v1025
        %v1126 = vpack.c.bf16 %v1030, %v1026
        %v1127 = vpack.c.bf16 %v1031, %v1027
        %v1128 = vpack.c.bf16 %v1032, %v1028
        %v1129 = vpack.c.bf16 %v1037, %v1033
        %v1130 = vpack.c.bf16 %v1038, %v1034
        %v1131 = vpack.c.bf16 %v1039, %v1035
        %v1132 = vpack.c.bf16 %v1040, %v1036
        %v1133 = vpack.c.bf16 %v1045, %v1041
        %v1134 = vpack.c.bf16 %v1046, %v1042
        %v1135 = vpack.c.bf16 %v1047, %v1043
        %v1136 = vpack.c.bf16 %v1048, %v1044
        %v1137 = vpack.c.bf16 %v1053, %v1049
        %v1138 = vpack.c.bf16 %v1054, %v1050
        %v1139 = vpack.c.bf16 %v1055, %v1051
        %v1140 = vpack.c.bf16 %v1056, %v1052
        %v1141 = vpack.c.bf16 %v1061, %v1057
        %v1142 = vpack.c.bf16 %v1062, %v1058
        %v1143 = vpack.c.bf16 %v1063, %v1059
        %v1144 = vpack.c.bf16 %v1064, %v1060
        %v1145 = vpack.c.bf16 %v1069, %v1065
        %v1146 = vpack.c.bf16 %v1070, %v1066
        %v1147 = vpack.c.bf16 %v1071, %v1067
        %v1148 = vpack.c.bf16 %v1072, %v1068
        %v1149 = vpack.c.bf16 %v1077, %v1073
        %v1150 = vpack.c.bf16 %v1078, %v1074
        %v1151 = vpack.c.bf16 %v1079, %v1075
        %v1152 = vpack.c.bf16 %v1080, %v1076
        %v1153 = vpack.c.bf16 %v1085, %v1081
        %v1154 = vpack.c.bf16 %v1086, %v1082
        %v1155 = vpack.c.bf16 %v1087, %v1083
        %v1156 = vpack.c.bf16 %v1088, %v1084
        %v1157 = vpack.c.bf16 %v1093, %v1089
        %v1158 = vpack.c.bf16 %v1094, %v1090
        %v1159 = vpack.c.bf16 %v1095, %v1091
        %v1160 = vpack.c.bf16 %v1096, %v1092
        %v1161 = vld [vmem:[#allocation8] sm:$0xf]
        %v1162 = vld [vmem:[#allocation8 + $0x4] sm:$0xf]
        %v1163 = vld [vmem:[#allocation8 + $0x8] sm:$0xf]
        %v1164 = vld [vmem:[#allocation8 + $0xc] sm:$0xf]
        %v1165 = vld [vmem:[#allocation8 + $0x10] sm:$0xf]
        %v1166 = vld [vmem:[#allocation8 + $0x14] sm:$0xf]
        %v1167 = vld [vmem:[#allocation8 + $0x18] sm:$0xf]
        %v1168 = vld [vmem:[#allocation8 + $0x1c] sm:$0xf]
        %v1169 = vld [vmem:[#allocation8 + $0x20] sm:$0xf]
        %v1170 = vld [vmem:[#allocation8 + $0x24] sm:$0xf]
        %v1171 = vld [vmem:[#allocation8 + $0x28] sm:$0xf]
        %v1172 = vld [vmem:[#allocation8 + $0x2c] sm:$0xf]
        %v1173 = vld [vmem:[#allocation8 + $0x30] sm:$0xf]
        %v1174 = vld [vmem:[#allocation8 + $0x34] sm:$0xf]
        %v1175 = vld [vmem:[#allocation8 + $0x38] sm:$0xf]
        %v1176 = vld [vmem:[#allocation8 + $0x3c] sm:$0xf]
        %v1177 = vld [vmem:[#allocation8 + $0x40] sm:$0xf]
        %v1178 = vld [vmem:[#allocation8 + $0x44] sm:$0xf]
        %v1179 = vld [vmem:[#allocation8 + $0x48] sm:$0xf]
        %v1180 = vld [vmem:[#allocation8 + $0x4c] sm:$0xf]
        %v1181 = vld [vmem:[#allocation8 + $0x50] sm:$0xf]
        %v1182 = vld [vmem:[#allocation8 + $0x54] sm:$0xf]
        %v1183 = vld [vmem:[#allocation8 + $0x58] sm:$0xf]
        %v1184 = vld [vmem:[#allocation8 + $0x5c] sm:$0xf]
        %v1185 = vld [vmem:[#allocation8 + $0x60] sm:$0xf]
        %v1186 = vld [vmem:[#allocation8 + $0x64] sm:$0xf]
        %v1187 = vld [vmem:[#allocation8 + $0x68] sm:$0xf]
        %v1188 = vld [vmem:[#allocation8 + $0x6c] sm:$0xf]
        %v1189 = vld [vmem:[#allocation8 + $0x70] sm:$0xf]
        %v1190 = vld [vmem:[#allocation8 + $0x74] sm:$0xf]
        %v1191 = vld [vmem:[#allocation8 + $0x78] sm:$0xf]
        %v1192 = vld [vmem:[#allocation8 + $0x7c] sm:$0xf]
        %v1193 = vld [vmem:[#allocation8 + $0x80] sm:$0xf]
        %v1194 = vld [vmem:[#allocation8 + $0x84] sm:$0xf]
        %v1195 = vld [vmem:[#allocation8 + $0x88] sm:$0xf]
        %v1196 = vld [vmem:[#allocation8 + $0x8c] sm:$0xf]
        %v1197 = vld [vmem:[#allocation8 + $0x90] sm:$0xf]
        %v1198 = vld [vmem:[#allocation8 + $0x94] sm:$0xf]
        %v1199 = vld [vmem:[#allocation8 + $0x98] sm:$0xf]
        %v1200 = vld [vmem:[#allocation8 + $0x9c] sm:$0xf]
        %v1201 = vld [vmem:[#allocation8 + $0xa0] sm:$0xf]
        %v1202 = vld [vmem:[#allocation8 + $0xa4] sm:$0xf]
        %v1203 = vld [vmem:[#allocation8 + $0xa8] sm:$0xf]
        %v1204 = vld [vmem:[#allocation8 + $0xac] sm:$0xf]
        %v1205 = vld [vmem:[#allocation8 + $0xb0] sm:$0xf]
        %v1206 = vld [vmem:[#allocation8 + $0xb4] sm:$0xf]
        %v1207 = vld [vmem:[#allocation8 + $0xb8] sm:$0xf]
        %v1208 = vld [vmem:[#allocation8 + $0xbc] sm:$0xf]
        %v1209 = vld [vmem:[#allocation8 + $0xc0] sm:$0xf]
        %v1210 = vld [vmem:[#allocation8 + $0xc4] sm:$0xf]
        %v1211 = vld [vmem:[#allocation8 + $0xc8] sm:$0xf]
        %v1212 = vld [vmem:[#allocation8 + $0xcc] sm:$0xf]
        %v1213 = vld [vmem:[#allocation8 + $0xd0] sm:$0xf]
        %v1214 = vld [vmem:[#allocation8 + $0xd4] sm:$0xf]
        %v1215 = vld [vmem:[#allocation8 + $0xd8] sm:$0xf]
        %v1216 = vld [vmem:[#allocation8 + $0xdc] sm:$0xf]
        %v1217 = vld [vmem:[#allocation8 + $0xe0] sm:$0xf]
        %v1218 = vld [vmem:[#allocation8 + $0xe4] sm:$0xf]
        %v1219 = vld [vmem:[#allocation8 + $0xe8] sm:$0xf]
        %v1220 = vld [vmem:[#allocation8 + $0xec] sm:$0xf]
        %v1221 = vld [vmem:[#allocation8 + $0xf0] sm:$0xf]
        %v1222 = vld [vmem:[#allocation8 + $0xf4] sm:$0xf]
        %v1223 = vld [vmem:[#allocation8 + $0xf8] sm:$0xf]
        %v1224 = vld [vmem:[#allocation8 + $0xfc] sm:$0xf]
        %v1289 = vunpack.c.l.b16 %v1161
        %v1290 = vunpack.c.l.b16 %v1162
        %v1291 = vunpack.c.l.b16 %v1163
        %v1292 = vunpack.c.l.b16 %v1164
        %v1293 = vunpack.c.l.b16 %v1165
        %v1294 = vunpack.c.l.b16 %v1166
        %v1295 = vunpack.c.l.b16 %v1167
        %v1296 = vunpack.c.l.b16 %v1168
        %v1297 = vunpack.c.l.b16 %v1169
        %v1298 = vunpack.c.l.b16 %v1170
        %v1299 = vunpack.c.l.b16 %v1171
        %v1300 = vunpack.c.l.b16 %v1172
        %v1301 = vunpack.c.l.b16 %v1173
        %v1302 = vunpack.c.l.b16 %v1174
        %v1303 = vunpack.c.l.b16 %v1175
        %v1304 = vunpack.c.l.b16 %v1176
        %v1305 = vunpack.c.l.b16 %v1177
        %v1306 = vunpack.c.l.b16 %v1178
        %v1307 = vunpack.c.l.b16 %v1179
        %v1308 = vunpack.c.l.b16 %v1180
        %v1309 = vunpack.c.l.b16 %v1181
        %v1310 = vunpack.c.l.b16 %v1182
        %v1311 = vunpack.c.l.b16 %v1183
        %v1312 = vunpack.c.l.b16 %v1184
        %v1313 = vunpack.c.l.b16 %v1185
        %v1314 = vunpack.c.l.b16 %v1186
        %v1315 = vunpack.c.l.b16 %v1187
        %v1316 = vunpack.c.l.b16 %v1188
        %v1317 = vunpack.c.l.b16 %v1189
        %v1318 = vunpack.c.l.b16 %v1190
        %v1319 = vunpack.c.l.b16 %v1191
        %v1320 = vunpack.c.l.b16 %v1192
        %v1321 = vunpack.c.l.b16 %v1193
        %v1322 = vunpack.c.l.b16 %v1194
        %v1323 = vunpack.c.l.b16 %v1195
        %v1324 = vunpack.c.l.b16 %v1196
        %v1325 = vunpack.c.l.b16 %v1197
        %v1326 = vunpack.c.l.b16 %v1198
        %v1327 = vunpack.c.l.b16 %v1199
        %v1328 = vunpack.c.l.b16 %v1200
        %v1329 = vunpack.c.l.b16 %v1201
        %v1330 = vunpack.c.l.b16 %v1202
        %v1331 = vunpack.c.l.b16 %v1203
        %v1332 = vunpack.c.l.b16 %v1204
        %v1333 = vunpack.c.l.b16 %v1205
        %v1334 = vunpack.c.l.b16 %v1206
        %v1335 = vunpack.c.l.b16 %v1207
        %v1336 = vunpack.c.l.b16 %v1208
        %v1337 = vunpack.c.l.b16 %v1209
        %v1338 = vunpack.c.l.b16 %v1210
        %v1339 = vunpack.c.l.b16 %v1211
        %v1340 = vunpack.c.l.b16 %v1212
        %v1341 = vunpack.c.l.b16 %v1213
        %v1342 = vunpack.c.l.b16 %v1214
        %v1343 = vunpack.c.l.b16 %v1215
        %v1344 = vunpack.c.l.b16 %v1216
        %v1345 = vunpack.c.l.b16 %v1217
        %v1346 = vunpack.c.l.b16 %v1218
        %v1347 = vunpack.c.l.b16 %v1219
        %v1348 = vunpack.c.l.b16 %v1220
        %v1349 = vunpack.c.l.b16 %v1221
        %v1350 = vunpack.c.l.b16 %v1222
        %v1351 = vunpack.c.l.b16 %v1223
        %v1352 = vunpack.c.l.b16 %v1224
        %v1353 = vpack.c.b16 %v1290, %v1289
        %v1354 = vpack.c.b16 %v1292, %v1291
        %v1355 = vpack.c.b16 %v1294, %v1293
        %v1356 = vpack.c.b16 %v1296, %v1295
        %v1357 = vpack.c.b16 %v1298, %v1297
        %v1358 = vpack.c.b16 %v1300, %v1299
        %v1359 = vpack.c.b16 %v1302, %v1301
        %v1360 = vpack.c.b16 %v1304, %v1303
        %v1361 = vpack.c.b16 %v1306, %v1305
        %v1362 = vpack.c.b16 %v1308, %v1307
        %v1363 = vpack.c.b16 %v1310, %v1309
        %v1364 = vpack.c.b16 %v1312, %v1311
        %v1365 = vpack.c.b16 %v1314, %v1313
        %v1366 = vpack.c.b16 %v1316, %v1315
        %v1367 = vpack.c.b16 %v1318, %v1317
        %v1368 = vpack.c.b16 %v1320, %v1319
        %v1369 = vpack.c.b16 %v1322, %v1321
        %v1370 = vpack.c.b16 %v1324, %v1323
        %v1371 = vpack.c.b16 %v1326, %v1325
        %v1372 = vpack.c.b16 %v1328, %v1327
        %v1373 = vpack.c.b16 %v1330, %v1329
        %v1374 = vpack.c.b16 %v1332, %v1331
        %v1375 = vpack.c.b16 %v1334, %v1333
        %v1376 = vpack.c.b16 %v1336, %v1335
        %v1377 = vpack.c.b16 %v1338, %v1337
        %v1378 = vpack.c.b16 %v1340, %v1339
        %v1379 = vpack.c.b16 %v1342, %v1341
        %v1380 = vpack.c.b16 %v1344, %v1343
        %v1381 = vpack.c.b16 %v1346, %v1345
        %v1382 = vpack.c.b16 %v1348, %v1347
        %v1383 = vpack.c.b16 %v1350, %v1349
        %v1384 = vpack.c.b16 %v1352, %v1351
        %1417 = vmatpush.bf16.msra.mxu0 %v1360
        %1418 = vmatpush.bf16.msra.mxu0 %v1359
        %1419 = vmatpush.bf16.msra.mxu0 %v1358
        %1420 = vmatpush.bf16.msra.mxu0 %v1357
        %1421 = vmatpush.bf16.msra.mxu0 %v1356
        %1422 = vmatpush.bf16.msra.mxu0 %v1355
        %1423 = vmatpush.bf16.msra.mxu0 %v1354
        %1424 = vmatpush.bf16.msra.mxu0 %v1353
        %1425 = vmatmul.bf16.gmra.mxu0 %v1097
        %v1426 = vpop.f32.mrf.mxu0
        %v1427 = vadd.f32 0.0, %v1426
        %v1428 = vpop.f32.mrf.mxu0
        %v1429 = vadd.f32 0.0, %v1428
        %1430 = vmatmul.bf16.gmra.mxu0 %v1101
        %v1431 = vpop.f32.mrf.mxu0
        %v1432 = vadd.f32 0.0, %v1431
        %v1433 = vpop.f32.mrf.mxu0
        %v1434 = vadd.f32 0.0, %v1433
        %1435 = vmatmul.bf16.gmra.mxu0 %v1105
        %v1436 = vpop.f32.mrf.mxu0
        %v1437 = vadd.f32 0.0, %v1436
        %v1438 = vpop.f32.mrf.mxu0
        %v1439 = vadd.f32 0.0, %v1438
        %1440 = vmatmul.bf16.gmra.mxu0 %v1109
        %v1441 = vpop.f32.mrf.mxu0
        %v1442 = vadd.f32 0.0, %v1441
        %v1443 = vpop.f32.mrf.mxu0
        %v1444 = vadd.f32 0.0, %v1443
        %1445 = vmatmul.bf16.gmra.mxu0 %v1113
        %v1446 = vpop.f32.mrf.mxu0
        %v1447 = vadd.f32 0.0, %v1446
        %v1448 = vpop.f32.mrf.mxu0
        %v1449 = vadd.f32 0.0, %v1448
        %1450 = vmatmul.bf16.gmra.mxu0 %v1117
        %v1451 = vpop.f32.mrf.mxu0
        %v1452 = vadd.f32 0.0, %v1451
        %v1453 = vpop.f32.mrf.mxu0
        %v1454 = vadd.f32 0.0, %v1453
        %1455 = vmatmul.bf16.gmra.mxu0 %v1121
        %v1456 = vpop.f32.mrf.mxu0
        %v1457 = vadd.f32 0.0, %v1456
        %v1458 = vpop.f32.mrf.mxu0
        %v1459 = vadd.f32 0.0, %v1458
        %1460 = vmatmul.bf16.gmra.mxu0 %v1125
        %v1461 = vpop.f32.mrf.mxu0
        %v1462 = vadd.f32 0.0, %v1461
        %v1463 = vpop.f32.mrf.mxu0
        %v1464 = vadd.f32 0.0, %v1463
        %1465 = vmatmul.bf16.gmra.mxu0 %v1129
        %v1466 = vpop.f32.mrf.mxu0
        %v1467 = vadd.f32 0.0, %v1466
        %v1468 = vpop.f32.mrf.mxu0
        %v1469 = vadd.f32 0.0, %v1468
        %1470 = vmatmul.bf16.gmra.mxu0 %v1133
        %v1471 = vpop.f32.mrf.mxu0
        %v1472 = vadd.f32 0.0, %v1471
        %v1473 = vpop.f32.mrf.mxu0
        %v1474 = vadd.f32 0.0, %v1473
        %1475 = vmatmul.bf16.gmra.mxu0 %v1137
        %v1476 = vpop.f32.mrf.mxu0
        %v1477 = vadd.f32 0.0, %v1476
        %v1478 = vpop.f32.mrf.mxu0
        %v1479 = vadd.f32 0.0, %v1478
        %1480 = vmatmul.bf16.gmra.mxu0 %v1141
        %v1481 = vpop.f32.mrf.mxu0
        %v1482 = vadd.f32 0.0, %v1481
        %v1483 = vpop.f32.mrf.mxu0
        %v1484 = vadd.f32 0.0, %v1483
        %1485 = vmatmul.bf16.gmra.mxu0 %v1145
        %v1486 = vpop.f32.mrf.mxu0
        %v1487 = vadd.f32 0.0, %v1486
        %v1488 = vpop.f32.mrf.mxu0
        %v1489 = vadd.f32 0.0, %v1488
        %1490 = vmatmul.bf16.gmra.mxu0 %v1149
        %v1491 = vpop.f32.mrf.mxu0
        %v1492 = vadd.f32 0.0, %v1491
        %v1493 = vpop.f32.mrf.mxu0
        %v1494 = vadd.f32 0.0, %v1493
        %1495 = vmatmul.bf16.gmra.mxu0 %v1153
        %v1496 = vpop.f32.mrf.mxu0
        %v1497 = vadd.f32 0.0, %v1496
        %v1498 = vpop.f32.mrf.mxu0
        %v1499 = vadd.f32 0.0, %v1498
        %1500 = vmatmul.bf16.gmra.mxu0 %v1157
        %v1501 = vpop.f32.mrf.mxu0
        %v1502 = vadd.f32 0.0, %v1501
        %v1503 = vpop.f32.mrf.mxu0
        %v1504 = vadd.f32 0.0, %v1503
        %1505 = vdwg.mxu0
        %1506 = vmatpush.bf16.msra.mxu0 %v1368
        %1507 = vmatpush.bf16.msra.mxu0 %v1367
        %1508 = vmatpush.bf16.msra.mxu0 %v1366
        %1509 = vmatpush.bf16.msra.mxu0 %v1365
        %1510 = vmatpush.bf16.msra.mxu0 %v1364
        %1511 = vmatpush.bf16.msra.mxu0 %v1363
        %1512 = vmatpush.bf16.msra.mxu0 %v1362
        %1513 = vmatpush.bf16.msra.mxu0 %v1361
        %1514 = vmatmul.bf16.gmra.mxu0 %v1098
        %v1515 = vpop.f32.mrf.mxu0
        %v1516 = vadd.f32 %v1427, %v1515
        %v1517 = vpop.f32.mrf.mxu0
        %v1518 = vadd.f32 %v1429, %v1517
        %1519 = vmatmul.bf16.gmra.mxu0 %v1102
        %v1520 = vpop.f32.mrf.mxu0
        %v1521 = vadd.f32 %v1432, %v1520
        %v1522 = vpop.f32.mrf.mxu0
        %v1523 = vadd.f32 %v1434, %v1522
        %1524 = vmatmul.bf16.gmra.mxu0 %v1106
        %v1525 = vpop.f32.mrf.mxu0
        %v1526 = vadd.f32 %v1437, %v1525
        %v1527 = vpop.f32.mrf.mxu0
        %v1528 = vadd.f32 %v1439, %v1527
        %1529 = vmatmul.bf16.gmra.mxu0 %v1110
        %v1530 = vpop.f32.mrf.mxu0
        %v1531 = vadd.f32 %v1442, %v1530
        %v1532 = vpop.f32.mrf.mxu0
        %v1533 = vadd.f32 %v1444, %v1532
        %1534 = vmatmul.bf16.gmra.mxu0 %v1114
        %v1535 = vpop.f32.mrf.mxu0
        %v1536 = vadd.f32 %v1447, %v1535
        %v1537 = vpop.f32.mrf.mxu0
        %v1538 = vadd.f32 %v1449, %v1537
        %1539 = vmatmul.bf16.gmra.mxu0 %v1118
        %v1540 = vpop.f32.mrf.mxu0
        %v1541 = vadd.f32 %v1452, %v1540
        %v1542 = vpop.f32.mrf.mxu0
        %v1543 = vadd.f32 %v1454, %v1542
        %1544 = vmatmul.bf16.gmra.mxu0 %v1122
        %v1545 = vpop.f32.mrf.mxu0
        %v1546 = vadd.f32 %v1457, %v1545
        %v1547 = vpop.f32.mrf.mxu0
        %v1548 = vadd.f32 %v1459, %v1547
        %1549 = vmatmul.bf16.gmra.mxu0 %v1126
        %v1550 = vpop.f32.mrf.mxu0
        %v1551 = vadd.f32 %v1462, %v1550
        %v1552 = vpop.f32.mrf.mxu0
        %v1553 = vadd.f32 %v1464, %v1552
        %1554 = vmatmul.bf16.gmra.mxu0 %v1130
        %v1555 = vpop.f32.mrf.mxu0
        %v1556 = vadd.f32 %v1467, %v1555
        %v1557 = vpop.f32.mrf.mxu0
        %v1558 = vadd.f32 %v1469, %v1557
        %1559 = vmatmul.bf16.gmra.mxu0 %v1134
        %v1560 = vpop.f32.mrf.mxu0
        %v1561 = vadd.f32 %v1472, %v1560
        %v1562 = vpop.f32.mrf.mxu0
        %v1563 = vadd.f32 %v1474, %v1562
        %1564 = vmatmul.bf16.gmra.mxu0 %v1138
        %v1565 = vpop.f32.mrf.mxu0
        %v1566 = vadd.f32 %v1477, %v1565
        %v1567 = vpop.f32.mrf.mxu0
        %v1568 = vadd.f32 %v1479, %v1567
        %1569 = vmatmul.bf16.gmra.mxu0 %v1142
        %v1570 = vpop.f32.mrf.mxu0
        %v1571 = vadd.f32 %v1482, %v1570
        %v1572 = vpop.f32.mrf.mxu0
        %v1573 = vadd.f32 %v1484, %v1572
        %1574 = vmatmul.bf16.gmra.mxu0 %v1146
        %v1575 = vpop.f32.mrf.mxu0
        %v1576 = vadd.f32 %v1487, %v1575
        %v1577 = vpop.f32.mrf.mxu0
        %v1578 = vadd.f32 %v1489, %v1577
        %1579 = vmatmul.bf16.gmra.mxu0 %v1150
        %v1580 = vpop.f32.mrf.mxu0
        %v1581 = vadd.f32 %v1492, %v1580
        %v1582 = vpop.f32.mrf.mxu0
        %v1583 = vadd.f32 %v1494, %v1582
        %1584 = vmatmul.bf16.gmra.mxu0 %v1154
        %v1585 = vpop.f32.mrf.mxu0
        %v1586 = vadd.f32 %v1497, %v1585
        %v1587 = vpop.f32.mrf.mxu0
        %v1588 = vadd.f32 %v1499, %v1587
        %1589 = vmatmul.bf16.gmra.mxu0 %v1158
        %v1590 = vpop.f32.mrf.mxu0
        %v1591 = vadd.f32 %v1502, %v1590
        %v1592 = vpop.f32.mrf.mxu0
        %v1593 = vadd.f32 %v1504, %v1592
        %1594 = vdwg.mxu0
        %1595 = vmatpush.bf16.msra.mxu0 %v1376
        %1596 = vmatpush.bf16.msra.mxu0 %v1375
        %1597 = vmatpush.bf16.msra.mxu0 %v1374
        %1598 = vmatpush.bf16.msra.mxu0 %v1373
        %1599 = vmatpush.bf16.msra.mxu0 %v1372
        %1600 = vmatpush.bf16.msra.mxu0 %v1371
        %1601 = vmatpush.bf16.msra.mxu0 %v1370
        %1602 = vmatpush.bf16.msra.mxu0 %v1369
        %1603 = vmatmul.bf16.gmra.mxu0 %v1099
        %v1604 = vpop.f32.mrf.mxu0
        %v1605 = vadd.f32 %v1516, %v1604
        %v1606 = vpop.f32.mrf.mxu0
        %v1607 = vadd.f32 %v1518, %v1606
        %1608 = vmatmul.bf16.gmra.mxu0 %v1103
        %v1609 = vpop.f32.mrf.mxu0
        %v1610 = vadd.f32 %v1521, %v1609
        %v1611 = vpop.f32.mrf.mxu0
        %v1612 = vadd.f32 %v1523, %v1611
        %1613 = vmatmul.bf16.gmra.mxu0 %v1107
        %v1614 = vpop.f32.mrf.mxu0
        %v1615 = vadd.f32 %v1526, %v1614
        %v1616 = vpop.f32.mrf.mxu0
        %v1617 = vadd.f32 %v1528, %v1616
        %1618 = vmatmul.bf16.gmra.mxu0 %v1111
        %v1619 = vpop.f32.mrf.mxu0
        %v1620 = vadd.f32 %v1531, %v1619
        %v1621 = vpop.f32.mrf.mxu0
        %v1622 = vadd.f32 %v1533, %v1621
        %1623 = vmatmul.bf16.gmra.mxu0 %v1115
        %v1624 = vpop.f32.mrf.mxu0
        %v1625 = vadd.f32 %v1536, %v1624
        %v1626 = vpop.f32.mrf.mxu0
        %v1627 = vadd.f32 %v1538, %v1626
        %1628 = vmatmul.bf16.gmra.mxu0 %v1119
        %v1629 = vpop.f32.mrf.mxu0
        %v1630 = vadd.f32 %v1541, %v1629
        %v1631 = vpop.f32.mrf.mxu0
        %v1632 = vadd.f32 %v1543, %v1631
        %1633 = vmatmul.bf16.gmra.mxu0 %v1123
        %v1634 = vpop.f32.mrf.mxu0
        %v1635 = vadd.f32 %v1546, %v1634
        %v1636 = vpop.f32.mrf.mxu0
        %v1637 = vadd.f32 %v1548, %v1636
        %1638 = vmatmul.bf16.gmra.mxu0 %v1127
        %v1639 = vpop.f32.mrf.mxu0
        %v1640 = vadd.f32 %v1551, %v1639
        %v1641 = vpop.f32.mrf.mxu0
        %v1642 = vadd.f32 %v1553, %v1641
        %1643 = vmatmul.bf16.gmra.mxu0 %v1131
        %v1644 = vpop.f32.mrf.mxu0
        %v1645 = vadd.f32 %v1556, %v1644
        %v1646 = vpop.f32.mrf.mxu0
        %v1647 = vadd.f32 %v1558, %v1646
        %1648 = vmatmul.bf16.gmra.mxu0 %v1135
        %v1649 = vpop.f32.mrf.mxu0
        %v1650 = vadd.f32 %v1561, %v1649
        %v1651 = vpop.f32.mrf.mxu0
        %v1652 = vadd.f32 %v1563, %v1651
        %1653 = vmatmul.bf16.gmra.mxu0 %v1139
        %v1654 = vpop.f32.mrf.mxu0
        %v1655 = vadd.f32 %v1566, %v1654
        %v1656 = vpop.f32.mrf.mxu0
        %v1657 = vadd.f32 %v1568, %v1656
        %1658 = vmatmul.bf16.gmra.mxu0 %v1143
        %v1659 = vpop.f32.mrf.mxu0
        %v1660 = vadd.f32 %v1571, %v1659
        %v1661 = vpop.f32.mrf.mxu0
        %v1662 = vadd.f32 %v1573, %v1661
        %1663 = vmatmul.bf16.gmra.mxu0 %v1147
        %v1664 = vpop.f32.mrf.mxu0
        %v1665 = vadd.f32 %v1576, %v1664
        %v1666 = vpop.f32.mrf.mxu0
        %v1667 = vadd.f32 %v1578, %v1666
        %1668 = vmatmul.bf16.gmra.mxu0 %v1151
        %v1669 = vpop.f32.mrf.mxu0
        %v1670 = vadd.f32 %v1581, %v1669
        %v1671 = vpop.f32.mrf.mxu0
        %v1672 = vadd.f32 %v1583, %v1671
        %1673 = vmatmul.bf16.gmra.mxu0 %v1155
        %v1674 = vpop.f32.mrf.mxu0
        %v1675 = vadd.f32 %v1586, %v1674
        %v1676 = vpop.f32.mrf.mxu0
        %v1677 = vadd.f32 %v1588, %v1676
        %1678 = vmatmul.bf16.gmra.mxu0 %v1159
        %v1679 = vpop.f32.mrf.mxu0
        %v1680 = vadd.f32 %v1591, %v1679
        %v1681 = vpop.f32.mrf.mxu0
        %v1682 = vadd.f32 %v1593, %v1681
        %1683 = vdwg.mxu0
        %1684 = vmatpush.bf16.msra.mxu0 %v1384
        %1685 = vmatpush.bf16.msra.mxu0 %v1383
        %1686 = vmatpush.bf16.msra.mxu0 %v1382
        %1687 = vmatpush.bf16.msra.mxu0 %v1381
        %1688 = vmatpush.bf16.msra.mxu0 %v1380
        %1689 = vmatpush.bf16.msra.mxu0 %v1379
        %1690 = vmatpush.bf16.msra.mxu0 %v1378
        %1691 = vmatpush.bf16.msra.mxu0 %v1377
        %1692 = vmatmul.bf16.gmra.mxu0 %v1100
        %v1693 = vpop.f32.mrf.mxu0
        %v1694 = vadd.f32 %v1605, %v1693
        %v1695 = vpop.f32.mrf.mxu0
        %v1696 = vadd.f32 %v1607, %v1695
        %1697 = vmatmul.bf16.gmra.mxu0 %v1104
        %v1698 = vpop.f32.mrf.mxu0
        %v1699 = vadd.f32 %v1610, %v1698
        %v1700 = vpop.f32.mrf.mxu0
        %v1701 = vadd.f32 %v1612, %v1700
        %1702 = vmatmul.bf16.gmra.mxu0 %v1108
        %v1703 = vpop.f32.mrf.mxu0
        %v1704 = vadd.f32 %v1615, %v1703
        %v1705 = vpop.f32.mrf.mxu0
        %v1706 = vadd.f32 %v1617, %v1705
        %1707 = vmatmul.bf16.gmra.mxu0 %v1112
        %v1708 = vpop.f32.mrf.mxu0
        %v1709 = vadd.f32 %v1620, %v1708
        %v1710 = vpop.f32.mrf.mxu0
        %v1711 = vadd.f32 %v1622, %v1710
        %1712 = vmatmul.bf16.gmra.mxu0 %v1116
        %v1713 = vpop.f32.mrf.mxu0
        %v1714 = vadd.f32 %v1625, %v1713
        %v1715 = vpop.f32.mrf.mxu0
        %v1716 = vadd.f32 %v1627, %v1715
        %1717 = vmatmul.bf16.gmra.mxu0 %v1120
        %v1718 = vpop.f32.mrf.mxu0
        %v1719 = vadd.f32 %v1630, %v1718
        %v1720 = vpop.f32.mrf.mxu0
        %v1721 = vadd.f32 %v1632, %v1720
        %1722 = vmatmul.bf16.gmra.mxu0 %v1124
        %v1723 = vpop.f32.mrf.mxu0
        %v1724 = vadd.f32 %v1635, %v1723
        %v1725 = vpop.f32.mrf.mxu0
        %v1726 = vadd.f32 %v1637, %v1725
        %1727 = vmatmul.bf16.gmra.mxu0 %v1128
        %v1728 = vpop.f32.mrf.mxu0
        %v1729 = vadd.f32 %v1640, %v1728
        %v1730 = vpop.f32.mrf.mxu0
        %v1731 = vadd.f32 %v1642, %v1730
        %1732 = vmatmul.bf16.gmra.mxu0 %v1132
        %v1733 = vpop.f32.mrf.mxu0
        %v1734 = vadd.f32 %v1645, %v1733
        %v1735 = vpop.f32.mrf.mxu0
        %v1736 = vadd.f32 %v1647, %v1735
        %1737 = vmatmul.bf16.gmra.mxu0 %v1136
        %v1738 = vpop.f32.mrf.mxu0
        %v1739 = vadd.f32 %v1650, %v1738
        %v1740 = vpop.f32.mrf.mxu0
        %v1741 = vadd.f32 %v1652, %v1740
        %1742 = vmatmul.bf16.gmra.mxu0 %v1140
        %v1743 = vpop.f32.mrf.mxu0
        %v1744 = vadd.f32 %v1655, %v1743
        %v1745 = vpop.f32.mrf.mxu0
        %v1746 = vadd.f32 %v1657, %v1745
        %1747 = vmatmul.bf16.gmra.mxu0 %v1144
        %v1748 = vpop.f32.mrf.mxu0
        %v1749 = vadd.f32 %v1660, %v1748
        %v1750 = vpop.f32.mrf.mxu0
        %v1751 = vadd.f32 %v1662, %v1750
        %1752 = vmatmul.bf16.gmra.mxu0 %v1148
        %v1753 = vpop.f32.mrf.mxu0
        %v1754 = vadd.f32 %v1665, %v1753
        %v1755 = vpop.f32.mrf.mxu0
        %v1756 = vadd.f32 %v1667, %v1755
        %1757 = vmatmul.bf16.gmra.mxu0 %v1152
        %v1758 = vpop.f32.mrf.mxu0
        %v1759 = vadd.f32 %v1670, %v1758
        %v1760 = vpop.f32.mrf.mxu0
        %v1761 = vadd.f32 %v1672, %v1760
        %1762 = vmatmul.bf16.gmra.mxu0 %v1156
        %v1763 = vpop.f32.mrf.mxu0
        %v1764 = vadd.f32 %v1675, %v1763
        %v1765 = vpop.f32.mrf.mxu0
        %v1766 = vadd.f32 %v1677, %v1765
        %1767 = vmatmul.bf16.gmra.mxu0 %v1160
        %v1768 = vpop.f32.mrf.mxu0
        %v1769 = vadd.f32 %v1680, %v1768
        %v1770 = vpop.f32.mrf.mxu0
        %v1771 = vadd.f32 %v1682, %v1770
        %1772 = vdwg.mxu0
        %v1773 = vmax.f32 %v1694, 0.0
        %v1774 = vmax.f32 %v1696, 0.0
        %v1775 = vmax.f32 %v1699, 0.0
        %v1776 = vmax.f32 %v1701, 0.0
        %v1777 = vmax.f32 %v1704, 0.0
        %v1778 = vmax.f32 %v1706, 0.0
        %v1779 = vmax.f32 %v1709, 0.0
        %v1780 = vmax.f32 %v1711, 0.0
        %v1781 = vmax.f32 %v1714, 0.0
        %v1782 = vmax.f32 %v1716, 0.0
        %v1783 = vmax.f32 %v1719, 0.0
        %v1784 = vmax.f32 %v1721, 0.0
        %v1785 = vmax.f32 %v1724, 0.0
        %v1786 = vmax.f32 %v1726, 0.0
        %v1787 = vmax.f32 %v1729, 0.0
        %v1788 = vmax.f32 %v1731, 0.0
        %v1789 = vmax.f32 %v1734, 0.0
        %v1790 = vmax.f32 %v1736, 0.0
        %v1791 = vmax.f32 %v1739, 0.0
        %v1792 = vmax.f32 %v1741, 0.0
        %v1793 = vmax.f32 %v1744, 0.0
        %v1794 = vmax.f32 %v1746, 0.0
        %v1795 = vmax.f32 %v1749, 0.0
        %v1796 = vmax.f32 %v1751, 0.0
        %v1797 = vmax.f32 %v1754, 0.0
        %v1798 = vmax.f32 %v1756, 0.0
        %v1799 = vmax.f32 %v1759, 0.0
        %v1800 = vmax.f32 %v1761, 0.0
        %v1801 = vmax.f32 %v1764, 0.0
        %v1802 = vmax.f32 %v1766, 0.0
        %v1803 = vmax.f32 %v1769, 0.0
        %v1804 = vmax.f32 %v1771, 0.0
        %v1805 = vpack.c.bf16 %v1773, %v1773
        %v1806 = vpack.c.bf16 %v1774, %v1774
        %v1807 = vpack.c.bf16 %v1775, %v1775
        %v1808 = vpack.c.bf16 %v1776, %v1776
        %v1809 = vpack.c.bf16 %v1777, %v1777
        %v1810 = vpack.c.bf16 %v1778, %v1778
        %v1811 = vpack.c.bf16 %v1779, %v1779
        %v1812 = vpack.c.bf16 %v1780, %v1780
        %v1813 = vpack.c.bf16 %v1781, %v1781
        %v1814 = vpack.c.bf16 %v1782, %v1782
        %v1815 = vpack.c.bf16 %v1783, %v1783
        %v1816 = vpack.c.bf16 %v1784, %v1784
        %v1817 = vpack.c.bf16 %v1785, %v1785
        %v1818 = vpack.c.bf16 %v1786, %v1786
        %v1819 = vpack.c.bf16 %v1787, %v1787
        %v1820 = vpack.c.bf16 %v1788, %v1788
        %v1821 = vpack.c.bf16 %v1789, %v1789
        %v1822 = vpack.c.bf16 %v1790, %v1790
        %v1823 = vpack.c.bf16 %v1791, %v1791
        %v1824 = vpack.c.bf16 %v1792, %v1792
        %v1825 = vpack.c.bf16 %v1793, %v1793
        %v1826 = vpack.c.bf16 %v1794, %v1794
        %v1827 = vpack.c.bf16 %v1795, %v1795
        %v1828 = vpack.c.bf16 %v1796, %v1796
        %v1829 = vpack.c.bf16 %v1797, %v1797
        %v1830 = vpack.c.bf16 %v1798, %v1798
        %v1831 = vpack.c.bf16 %v1799, %v1799
        %v1832 = vpack.c.bf16 %v1800, %v1800
        %v1833 = vpack.c.bf16 %v1801, %v1801
        %v1834 = vpack.c.bf16 %v1802, %v1802
        %v1835 = vpack.c.bf16 %v1803, %v1803
        %v1836 = vpack.c.bf16 %v1804, %v1804
        %1837 = vst [vmem:[#allocation2] sm:$0xf] %v1805
        %1838 = vst [vmem:[#allocation2 + $0xc] sm:$0xf] %v1806
        %1839 = vst [vmem:[#allocation2 + $0x18] sm:$0xf] %v1807
        %1840 = vst [vmem:[#allocation2 + $0x24] sm:$0xf] %v1808
        %1841 = vst [vmem:[#allocation2 + $0x30] sm:$0xf] %v1809
        %1842 = vst [vmem:[#allocation2 + $0x3c] sm:$0xf] %v1810
        %1843 = vst [vmem:[#allocation2 + $0x48] sm:$0xf] %v1811
        %1844 = vst [vmem:[#allocation2 + $0x54] sm:$0xf] %v1812
        %1845 = vst [vmem:[#allocation2 + $0x60] sm:$0xf] %v1813
        %1846 = vst [vmem:[#allocation2 + $0x6c] sm:$0xf] %v1814
        %1847 = vst [vmem:[#allocation2 + $0x78] sm:$0xf] %v1815
        %1848 = vst [vmem:[#allocation2 + $0x84] sm:$0xf] %v1816
        %1849 = vst [vmem:[#allocation2 + $0x90] sm:$0xf] %v1817
        %1850 = vst [vmem:[#allocation2 + $0x9c] sm:$0xf] %v1818
        %1851 = vst [vmem:[#allocation2 + $0xa8] sm:$0xf] %v1819
        %1852 = vst [vmem:[#allocation2 + $0xb4] sm:$0xf] %v1820
        %1853 = vst [vmem:[#allocation2 + $0xc0] sm:$0xf] %v1821
        %1854 = vst [vmem:[#allocation2 + $0xcc] sm:$0xf] %v1822
        %1855 = vst [vmem:[#allocation2 + $0xd8] sm:$0xf] %v1823
        %1856 = vst [vmem:[#allocation2 + $0xe4] sm:$0xf] %v1824
        %1857 = vst [vmem:[#allocation2 + $0xf0] sm:$0xf] %v1825
        %1858 = vst [vmem:[#allocation2 + $0xfc] sm:$0xf] %v1826
        %1859 = vst [vmem:[#allocation2 + $0x108] sm:$0xf] %v1827
        %1860 = vst [vmem:[#allocation2 + $0x114] sm:$0xf] %v1828
        %1861 = vst [vmem:[#allocation2 + $0x120] sm:$0xf] %v1829
        %1862 = vst [vmem:[#allocation2 + $0x12c] sm:$0xf] %v1830
        %1863 = vst [vmem:[#allocation2 + $0x138] sm:$0xf] %v1831
        %1864 = vst [vmem:[#allocation2 + $0x144] sm:$0xf] %v1832
        %1865 = vst [vmem:[#allocation2 + $0x150] sm:$0xf] %v1833
        %1866 = vst [vmem:[#allocation2 + $0x15c] sm:$0xf] %v1834
        %1867 = vst [vmem:[#allocation2 + $0x168] sm:$0xf] %v1835
        %1868 = vst [vmem:[#allocation2 + $0x174] sm:$0xf] %v1836
        %v1869 = vld [vmem:[%s573] sm:$0xff]
        %v1870 = vld [vmem:[%s573 + $0x8] sm:$0xff]
        %v1871 = vld [vmem:[%s573 + $0x10] sm:$0xff]
        %v1872 = vld [vmem:[%s573 + $0x18] sm:$0xff]
        %v1873 = vld [vmem:[%s573 + $0x20] sm:$0xff]
        %v1874 = vld [vmem:[%s573 + $0x28] sm:$0xff]
        %v1875 = vld [vmem:[%s573 + $0x30] sm:$0xff]
        %v1876 = vld [vmem:[%s573 + $0x38] sm:$0xff]
        %v1877 = vld [vmem:[%s573 + $0x40] sm:$0xff]
        %v1878 = vld [vmem:[%s573 + $0x48] sm:$0xff]
        %v1879 = vld [vmem:[%s573 + $0x50] sm:$0xff]
        %v1880 = vld [vmem:[%s573 + $0x58] sm:$0xff]
        %v1881 = vld [vmem:[%s573 + $0x60] sm:$0xff]
        %v1882 = vld [vmem:[%s573 + $0x68] sm:$0xff]
        %v1883 = vld [vmem:[%s573 + $0x70] sm:$0xff]
        %v1884 = vld [vmem:[%s573 + $0x78] sm:$0xff]
        %v1885 = vld [vmem:[%s573 + $0x80] sm:$0xff]
        %v1886 = vld [vmem:[%s573 + $0x88] sm:$0xff]
        %v1887 = vld [vmem:[%s573 + $0x90] sm:$0xff]
        %v1888 = vld [vmem:[%s573 + $0x98] sm:$0xff]
        %v1889 = vld [vmem:[%s573 + $0xa0] sm:$0xff]
        %v1890 = vld [vmem:[%s573 + $0xa8] sm:$0xff]
        %v1891 = vld [vmem:[%s573 + $0xb0] sm:$0xff]
        %v1892 = vld [vmem:[%s573 + $0xb8] sm:$0xff]
        %v1893 = vld [vmem:[%s573 + $0xc0] sm:$0xff]
        %v1894 = vld [vmem:[%s573 + $0xc8] sm:$0xff]
        %v1895 = vld [vmem:[%s573 + $0xd0] sm:$0xff]
        %v1896 = vld [vmem:[%s573 + $0xd8] sm:$0xff]
        %v1897 = vld [vmem:[%s573 + $0xe0] sm:$0xff]
        %v1898 = vld [vmem:[%s573 + $0xe8] sm:$0xff]
        %v1899 = vld [vmem:[%s573 + $0xf0] sm:$0xff]
        %v1900 = vld [vmem:[%s573 + $0xf8] sm:$0xff]
        %v1901 = vmax.f32 %v1869, 0.0
        %v1902 = vmax.f32 %v1870, 0.0
        %v1903 = vmax.f32 %v1871, 0.0
        %v1904 = vmax.f32 %v1872, 0.0
        %v1905 = vmax.f32 %v1873, 0.0
        %v1906 = vmax.f32 %v1874, 0.0
        %v1907 = vmax.f32 %v1875, 0.0
        %v1908 = vmax.f32 %v1876, 0.0
        %v1909 = vmax.f32 %v1877, 0.0
        %v1910 = vmax.f32 %v1878, 0.0
        %v1911 = vmax.f32 %v1879, 0.0
        %v1912 = vmax.f32 %v1880, 0.0
        %v1913 = vmax.f32 %v1881, 0.0
        %v1914 = vmax.f32 %v1882, 0.0
        %v1915 = vmax.f32 %v1883, 0.0
        %v1916 = vmax.f32 %v1884, 0.0
        %v1917 = vmax.f32 %v1885, 0.0
        %v1918 = vmax.f32 %v1886, 0.0
        %v1919 = vmax.f32 %v1887, 0.0
        %v1920 = vmax.f32 %v1888, 0.0
        %v1921 = vmax.f32 %v1889, 0.0
        %v1922 = vmax.f32 %v1890, 0.0
        %v1923 = vmax.f32 %v1891, 0.0
        %v1924 = vmax.f32 %v1892, 0.0
        %v1925 = vmax.f32 %v1893, 0.0
        %v1926 = vmax.f32 %v1894, 0.0
        %v1927 = vmax.f32 %v1895, 0.0
        %v1928 = vmax.f32 %v1896, 0.0
        %v1929 = vmax.f32 %v1897, 0.0
        %v1930 = vmax.f32 %v1898, 0.0
        %v1931 = vmax.f32 %v1899, 0.0
        %v1932 = vmax.f32 %v1900, 0.0
        %v1933 = vpack.c.bf16 %v1901, %v1901
        %v1934 = vpack.c.bf16 %v1902, %v1902
        %v1935 = vpack.c.bf16 %v1903, %v1903
        %v1936 = vpack.c.bf16 %v1904, %v1904
        %v1937 = vpack.c.bf16 %v1905, %v1905
        %v1938 = vpack.c.bf16 %v1906, %v1906
        %v1939 = vpack.c.bf16 %v1907, %v1907
        %v1940 = vpack.c.bf16 %v1908, %v1908
        %v1941 = vpack.c.bf16 %v1909, %v1909
        %v1942 = vpack.c.bf16 %v1910, %v1910
        %v1943 = vpack.c.bf16 %v1911, %v1911
        %v1944 = vpack.c.bf16 %v1912, %v1912
        %v1945 = vpack.c.bf16 %v1913, %v1913
        %v1946 = vpack.c.bf16 %v1914, %v1914
        %v1947 = vpack.c.bf16 %v1915, %v1915
        %v1948 = vpack.c.bf16 %v1916, %v1916
        %v1949 = vpack.c.bf16 %v1917, %v1917
        %v1950 = vpack.c.bf16 %v1918, %v1918
        %v1951 = vpack.c.bf16 %v1919, %v1919
        %v1952 = vpack.c.bf16 %v1920, %v1920
        %v1953 = vpack.c.bf16 %v1921, %v1921
        %v1954 = vpack.c.bf16 %v1922, %v1922
        %v1955 = vpack.c.bf16 %v1923, %v1923
        %v1956 = vpack.c.bf16 %v1924, %v1924
        %v1957 = vpack.c.bf16 %v1925, %v1925
        %v1958 = vpack.c.bf16 %v1926, %v1926
        %v1959 = vpack.c.bf16 %v1927, %v1927
        %v1960 = vpack.c.bf16 %v1928, %v1928
        %v1961 = vpack.c.bf16 %v1929, %v1929
        %v1962 = vpack.c.bf16 %v1930, %v1930
        %v1963 = vpack.c.bf16 %v1931, %v1931
        %v1964 = vpack.c.bf16 %v1932, %v1932
        %1965 = vst [vmem:[#allocation2 + $0x4] sm:$0xf] %v1933
        %1966 = vst [vmem:[#allocation2 + $0x10] sm:$0xf] %v1934
        %1967 = vst [vmem:[#allocation2 + $0x1c] sm:$0xf] %v1935
        %1968 = vst [vmem:[#allocation2 + $0x28] sm:$0xf] %v1936
        %1969 = vst [vmem:[#allocation2 + $0x34] sm:$0xf] %v1937
        %1970 = vst [vmem:[#allocation2 + $0x40] sm:$0xf] %v1938
        %1971 = vst [vmem:[#allocation2 + $0x4c] sm:$0xf] %v1939
        %1972 = vst [vmem:[#allocation2 + $0x58] sm:$0xf] %v1940
        %1973 = vst [vmem:[#allocation2 + $0x64] sm:$0xf] %v1941
        %1974 = vst [vmem:[#allocation2 + $0x70] sm:$0xf] %v1942
        %1975 = vst [vmem:[#allocation2 + $0x7c] sm:$0xf] %v1943
        %1976 = vst [vmem:[#allocation2 + $0x88] sm:$0xf] %v1944
        %1977 = vst [vmem:[#allocation2 + $0x94] sm:$0xf] %v1945
        %1978 = vst [vmem:[#allocation2 + $0xa0] sm:$0xf] %v1946
        %1979 = vst [vmem:[#allocation2 + $0xac] sm:$0xf] %v1947
        %1980 = vst [vmem:[#allocation2 + $0xb8] sm:$0xf] %v1948
        %1981 = vst [vmem:[#allocation2 + $0xc4] sm:$0xf] %v1949
        %1982 = vst [vmem:[#allocation2 + $0xd0] sm:$0xf] %v1950
        %1983 = vst [vmem:[#allocation2 + $0xdc] sm:$0xf] %v1951
        %1984 = vst [vmem:[#allocation2 + $0xe8] sm:$0xf] %v1952
        %1985 = vst [vmem:[#allocation2 + $0xf4] sm:$0xf] %v1953
        %1986 = vst [vmem:[#allocation2 + $0x100] sm:$0xf] %v1954
        %1987 = vst [vmem:[#allocation2 + $0x10c] sm:$0xf] %v1955
        %1988 = vst [vmem:[#allocation2 + $0x118] sm:$0xf] %v1956
        %1989 = vst [vmem:[#allocation2 + $0x124] sm:$0xf] %v1957
        %1990 = vst [vmem:[#allocation2 + $0x130] sm:$0xf] %v1958
        %1991 = vst [vmem:[#allocation2 + $0x13c] sm:$0xf] %v1959
        %1992 = vst [vmem:[#allocation2 + $0x148] sm:$0xf] %v1960
        %1993 = vst [vmem:[#allocation2 + $0x154] sm:$0xf] %v1961
        %1994 = vst [vmem:[#allocation2 + $0x160] sm:$0xf] %v1962
        %1995 = vst [vmem:[#allocation2 + $0x16c] sm:$0xf] %v1963
        %1996 = vst [vmem:[#allocation2 + $0x178] sm:$0xf] %v1964
        %v1997 = vld [vmem:[%s468] sm:$0xff]
        %v1998 = vld [vmem:[%s468 + $0x8] sm:$0xff]
        %v1999 = vld [vmem:[%s468 + $0x10] sm:$0xff]
        %v2000 = vld [vmem:[%s468 + $0x18] sm:$0xff]
        %v2001 = vld [vmem:[%s468 + $0x20] sm:$0xff]
        %v2002 = vld [vmem:[%s468 + $0x28] sm:$0xff]
        %v2003 = vld [vmem:[%s468 + $0x30] sm:$0xff]
        %v2004 = vld [vmem:[%s468 + $0x38] sm:$0xff]
        %v2005 = vld [vmem:[%s468 + $0x40] sm:$0xff]
        %v2006 = vld [vmem:[%s468 + $0x48] sm:$0xff]
        %v2007 = vld [vmem:[%s468 + $0x50] sm:$0xff]
        %v2008 = vld [vmem:[%s468 + $0x58] sm:$0xff]
        %v2009 = vld [vmem:[%s468 + $0x60] sm:$0xff]
        %v2010 = vld [vmem:[%s468 + $0x68] sm:$0xff]
        %v2011 = vld [vmem:[%s468 + $0x70] sm:$0xff]
        %v2012 = vld [vmem:[%s468 + $0x78] sm:$0xff]
        %v2013 = vld [vmem:[%s468 + $0x80] sm:$0xff]
        %v2014 = vld [vmem:[%s468 + $0x88] sm:$0xff]
        %v2015 = vld [vmem:[%s468 + $0x90] sm:$0xff]
        %v2016 = vld [vmem:[%s468 + $0x98] sm:$0xff]
        %v2017 = vld [vmem:[%s468 + $0xa0] sm:$0xff]
        %v2018 = vld [vmem:[%s468 + $0xa8] sm:$0xff]
        %v2019 = vld [vmem:[%s468 + $0xb0] sm:$0xff]
        %v2020 = vld [vmem:[%s468 + $0xb8] sm:$0xff]
        %v2021 = vld [vmem:[%s468 + $0xc0] sm:$0xff]
        %v2022 = vld [vmem:[%s468 + $0xc8] sm:$0xff]
        %v2023 = vld [vmem:[%s468 + $0xd0] sm:$0xff]
        %v2024 = vld [vmem:[%s468 + $0xd8] sm:$0xff]
        %v2025 = vld [vmem:[%s468 + $0xe0] sm:$0xff]
        %v2026 = vld [vmem:[%s468 + $0xe8] sm:$0xff]
        %v2027 = vld [vmem:[%s468 + $0xf0] sm:$0xff]
        %v2028 = vld [vmem:[%s468 + $0xf8] sm:$0xff]
        %v2029 = vpack.c.bf16 %v1997, %v1997
        %v2030 = vpack.c.bf16 %v1998, %v1998
        %v2031 = vpack.c.bf16 %v1999, %v1999
        %v2032 = vpack.c.bf16 %v2000, %v2000
        %v2033 = vpack.c.bf16 %v2001, %v2001
        %v2034 = vpack.c.bf16 %v2002, %v2002
        %v2035 = vpack.c.bf16 %v2003, %v2003
        %v2036 = vpack.c.bf16 %v2004, %v2004
        %v2037 = vpack.c.bf16 %v2005, %v2005
        %v2038 = vpack.c.bf16 %v2006, %v2006
        %v2039 = vpack.c.bf16 %v2007, %v2007
        %v2040 = vpack.c.bf16 %v2008, %v2008
        %v2041 = vpack.c.bf16 %v2009, %v2009
        %v2042 = vpack.c.bf16 %v2010, %v2010
        %v2043 = vpack.c.bf16 %v2011, %v2011
        %v2044 = vpack.c.bf16 %v2012, %v2012
        %v2045 = vpack.c.bf16 %v2013, %v2013
        %v2046 = vpack.c.bf16 %v2014, %v2014
        %v2047 = vpack.c.bf16 %v2015, %v2015
        %v2048 = vpack.c.bf16 %v2016, %v2016
        %v2049 = vpack.c.bf16 %v2017, %v2017
        %v2050 = vpack.c.bf16 %v2018, %v2018
        %v2051 = vpack.c.bf16 %v2019, %v2019
        %v2052 = vpack.c.bf16 %v2020, %v2020
        %v2053 = vpack.c.bf16 %v2021, %v2021
        %v2054 = vpack.c.bf16 %v2022, %v2022
        %v2055 = vpack.c.bf16 %v2023, %v2023
        %v2056 = vpack.c.bf16 %v2024, %v2024
        %v2057 = vpack.c.bf16 %v2025, %v2025
        %v2058 = vpack.c.bf16 %v2026, %v2026
        %v2059 = vpack.c.bf16 %v2027, %v2027
        %v2060 = vpack.c.bf16 %v2028, %v2028
        %2061 = vst [vmem:[#allocation2 + $0x8] sm:$0xf] %v2029
        %2062 = vst [vmem:[#allocation2 + $0x14] sm:$0xf] %v2030
        %2063 = vst [vmem:[#allocation2 + $0x20] sm:$0xf] %v2031
        %2064 = vst [vmem:[#allocation2 + $0x2c] sm:$0xf] %v2032
        %2065 = vst [vmem:[#allocation2 + $0x38] sm:$0xf] %v2033
        %2066 = vst [vmem:[#allocation2 + $0x44] sm:$0xf] %v2034
        %2067 = vst [vmem:[#allocation2 + $0x50] sm:$0xf] %v2035
        %2068 = vst [vmem:[#allocation2 + $0x5c] sm:$0xf] %v2036
        %2069 = vst [vmem:[#allocation2 + $0x68] sm:$0xf] %v2037
        %2070 = vst [vmem:[#allocation2 + $0x74] sm:$0xf] %v2038
        %2071 = vst [vmem:[#allocation2 + $0x80] sm:$0xf] %v2039
        %2072 = vst [vmem:[#allocation2 + $0x8c] sm:$0xf] %v2040
        %2073 = vst [vmem:[#allocation2 + $0x98] sm:$0xf] %v2041
        %2074 = vst [vmem:[#allocation2 + $0xa4] sm:$0xf] %v2042
        %2075 = vst [vmem:[#allocation2 + $0xb0] sm:$0xf] %v2043
        %2076 = vst [vmem:[#allocation2 + $0xbc] sm:$0xf] %v2044
        %2077 = vst [vmem:[#allocation2 + $0xc8] sm:$0xf] %v2045
        %2078 = vst [vmem:[#allocation2 + $0xd4] sm:$0xf] %v2046
        %2079 = vst [vmem:[#allocation2 + $0xe0] sm:$0xf] %v2047
        %2080 = vst [vmem:[#allocation2 + $0xec] sm:$0xf] %v2048
        %2081 = vst [vmem:[#allocation2 + $0xf8] sm:$0xf] %v2049
        %2082 = vst [vmem:[#allocation2 + $0x104] sm:$0xf] %v2050
        %2083 = vst [vmem:[#allocation2 + $0x110] sm:$0xf] %v2051
        %2084 = vst [vmem:[#allocation2 + $0x11c] sm:$0xf] %v2052
        %2085 = vst [vmem:[#allocation2 + $0x128] sm:$0xf] %v2053
        %2086 = vst [vmem:[#allocation2 + $0x134] sm:$0xf] %v2054
        %2087 = vst [vmem:[#allocation2 + $0x140] sm:$0xf] %v2055
        %2088 = vst [vmem:[#allocation2 + $0x14c] sm:$0xf] %v2056
        %2089 = vst [vmem:[#allocation2 + $0x158] sm:$0xf] %v2057
        %2090 = vst [vmem:[#allocation2 + $0x164] sm:$0xf] %v2058
        %2091 = vst [vmem:[#allocation2 + $0x170] sm:$0xf] %v2059
        %2092 = vst [vmem:[#allocation2 + $0x17c] sm:$0xf] %v2060
        %v2093 = vld [vmem:[#allocation2] sm:$0xff]
        %v2094 = vld [vmem:[#allocation2 + $0x8] sm:$0xf]
        %v2095 = vld [vmem:[#allocation2 + $0xc] sm:$0xff]
        %v2096 = vld [vmem:[#allocation2 + $0x14] sm:$0xf]
        %v2097 = vld [vmem:[#allocation2 + $0x18] sm:$0xff]
        %v2098 = vld [vmem:[#allocation2 + $0x20] sm:$0xf]
        %v2099 = vld [vmem:[#allocation2 + $0x24] sm:$0xff]
        %v2100 = vld [vmem:[#allocation2 + $0x2c] sm:$0xf]
        %v2101 = vld [vmem:[#allocation2 + $0x30] sm:$0xff]
        %v2102 = vld [vmem:[#allocation2 + $0x38] sm:$0xf]
        %v2103 = vld [vmem:[#allocation2 + $0x3c] sm:$0xff]
        %v2104 = vld [vmem:[#allocation2 + $0x44] sm:$0xf]
        %v2105 = vld [vmem:[#allocation2 + $0x48] sm:$0xff]
        %v2106 = vld [vmem:[#allocation2 + $0x50] sm:$0xf]
        %v2107 = vld [vmem:[#allocation2 + $0x54] sm:$0xff]
        %v2108 = vld [vmem:[#allocation2 + $0x5c] sm:$0xf]
        %v2109 = vld [vmem:[#allocation2 + $0x60] sm:$0xff]
        %v2110 = vld [vmem:[#allocation2 + $0x68] sm:$0xf]
        %v2111 = vld [vmem:[#allocation2 + $0x6c] sm:$0xff]
        %v2112 = vld [vmem:[#allocation2 + $0x74] sm:$0xf]
        %v2113 = vld [vmem:[#allocation2 + $0x78] sm:$0xff]
        %v2114 = vld [vmem:[#allocation2 + $0x80] sm:$0xf]
        %v2115 = vld [vmem:[#allocation2 + $0x84] sm:$0xff]
        %v2116 = vld [vmem:[#allocation2 + $0x8c] sm:$0xf]
        %v2117 = vld [vmem:[#allocation2 + $0x90] sm:$0xff]
        %v2118 = vld [vmem:[#allocation2 + $0x98] sm:$0xf]
        %v2119 = vld [vmem:[#allocation2 + $0x9c] sm:$0xff]
        %v2120 = vld [vmem:[#allocation2 + $0xa4] sm:$0xf]
        %v2121 = vld [vmem:[#allocation2 + $0xa8] sm:$0xff]
        %v2122 = vld [vmem:[#allocation2 + $0xb0] sm:$0xf]
        %v2123 = vld [vmem:[#allocation2 + $0xb4] sm:$0xff]
        %v2124 = vld [vmem:[#allocation2 + $0xbc] sm:$0xf]
        %v2125 = vld [vmem:[#allocation2 + $0xc0] sm:$0xff]
        %v2126 = vld [vmem:[#allocation2 + $0xc8] sm:$0xf]
        %v2127 = vld [vmem:[#allocation2 + $0xcc] sm:$0xff]
        %v2128 = vld [vmem:[#allocation2 + $0xd4] sm:$0xf]
        %v2129 = vld [vmem:[#allocation2 + $0xd8] sm:$0xff]
        %v2130 = vld [vmem:[#allocation2 + $0xe0] sm:$0xf]
        %v2131 = vld [vmem:[#allocation2 + $0xe4] sm:$0xff]
        %v2132 = vld [vmem:[#allocation2 + $0xec] sm:$0xf]
        %v2133 = vld [vmem:[#allocation2 + $0xf0] sm:$0xff]
        %v2134 = vld [vmem:[#allocation2 + $0xf8] sm:$0xf]
        %v2135 = vld [vmem:[#allocation2 + $0xfc] sm:$0xff]
        %v2136 = vld [vmem:[#allocation2 + $0x104] sm:$0xf]
        %v2137 = vld [vmem:[#allocation2 + $0x108] sm:$0xff]
        %v2138 = vld [vmem:[#allocation2 + $0x110] sm:$0xf]
        %v2139 = vld [vmem:[#allocation2 + $0x114] sm:$0xff]
        %v2140 = vld [vmem:[#allocation2 + $0x11c] sm:$0xf]
        %v2141 = vld [vmem:[#allocation2 + $0x120] sm:$0xff]
        %v2142 = vld [vmem:[#allocation2 + $0x128] sm:$0xf]
        %v2143 = vld [vmem:[#allocation2 + $0x12c] sm:$0xff]
        %v2144 = vld [vmem:[#allocation2 + $0x134] sm:$0xf]
        %v2145 = vld [vmem:[#allocation2 + $0x138] sm:$0xff]
        %v2146 = vld [vmem:[#allocation2 + $0x140] sm:$0xf]
        %v2147 = vld [vmem:[#allocation2 + $0x144] sm:$0xff]
        %v2148 = vld [vmem:[#allocation2 + $0x14c] sm:$0xf]
        %v2149 = vld [vmem:[#allocation2 + $0x150] sm:$0xff]
        %v2150 = vld [vmem:[#allocation2 + $0x158] sm:$0xf]
        %v2151 = vld [vmem:[#allocation2 + $0x15c] sm:$0xff]
        %v2152 = vld [vmem:[#allocation2 + $0x164] sm:$0xf]
        %v2153 = vld [vmem:[#allocation2 + $0x168] sm:$0xff]
        %v2154 = vld [vmem:[#allocation2 + $0x170] sm:$0xf]
        %v2155 = vld [vmem:[#allocation2 + $0x174] sm:$0xff]
        %v2156 = vld [vmem:[#allocation2 + $0x17c] sm:$0xf]
        %v2157 = vld [vmem:[#allocation9] sm:$0xff]
        %v2158 = vld [vmem:[#allocation9 + $0x8] sm:$0xff]
        %v2159 = vld [vmem:[#allocation9 + $0x10] sm:$0xff]
        %v2160 = vld [vmem:[#allocation9 + $0x18] sm:$0xff]
        %v2161 = vld [vmem:[#allocation9 + $0x20] sm:$0xff]
        %v2162 = vld [vmem:[#allocation9 + $0x28] sm:$0xff]
        %v2163 = vld [vmem:[#allocation9 + $0x30] sm:$0xff]
        %v2164 = vld [vmem:[#allocation9 + $0x38] sm:$0xff]
        %v2165 = vld [vmem:[#allocation9 + $0x40] sm:$0xff]
        %v2166 = vld [vmem:[#allocation9 + $0x48] sm:$0xff]
        %v2167 = vld [vmem:[#allocation9 + $0x50] sm:$0xff]
        %v2168 = vld [vmem:[#allocation9 + $0x58] sm:$0xff]
        %v2169 = vld [vmem:[#allocation9 + $0x60] sm:$0xff]
        %v2170 = vld [vmem:[#allocation9 + $0x68] sm:$0xff]
        %v2171 = vld [vmem:[#allocation9 + $0x70] sm:$0xff]
        %v2172 = vld [vmem:[#allocation9 + $0x78] sm:$0xff]
        %v2173 = vld [vmem:[#allocation9 + $0x80] sm:$0xff]
        %v2174 = vld [vmem:[#allocation9 + $0x88] sm:$0xff]
        %v2175 = vld [vmem:[#allocation9 + $0x90] sm:$0xff]
        %v2176 = vld [vmem:[#allocation9 + $0x98] sm:$0xff]
        %v2177 = vld [vmem:[#allocation9 + $0xa0] sm:$0xff]
        %v2178 = vld [vmem:[#allocation9 + $0xa8] sm:$0xff]
        %v2179 = vld [vmem:[#allocation9 + $0xb0] sm:$0xff]
        %v2180 = vld [vmem:[#allocation9 + $0xb8] sm:$0xff]
        %v2181 = vld [vmem:[#allocation9 + $0xc0] sm:$0xff]
        %v2182 = vld [vmem:[#allocation9 + $0xc8] sm:$0xff]
        %v2183 = vld [vmem:[#allocation9 + $0xd0] sm:$0xff]
        %v2184 = vld [vmem:[#allocation9 + $0xd8] sm:$0xff]
        %v2185 = vld [vmem:[#allocation9 + $0xe0] sm:$0xff]
        %v2186 = vld [vmem:[#allocation9 + $0xe8] sm:$0xff]
        %v2187 = vld [vmem:[#allocation9 + $0xf0] sm:$0xff]
        %v2188 = vld [vmem:[#allocation9 + $0xf8] sm:$0xff]
        %v2189 = vld [vmem:[#allocation9 + $0x100] sm:$0xff]
        %v2190 = vld [vmem:[#allocation9 + $0x108] sm:$0xff]
        %v2191 = vld [vmem:[#allocation9 + $0x110] sm:$0xff]
        %v2192 = vld [vmem:[#allocation9 + $0x118] sm:$0xff]
        %v2193 = vld [vmem:[#allocation9 + $0x120] sm:$0xff]
        %v2194 = vld [vmem:[#allocation9 + $0x128] sm:$0xff]
        %v2195 = vld [vmem:[#allocation9 + $0x130] sm:$0xff]
        %v2196 = vld [vmem:[#allocation9 + $0x138] sm:$0xff]
        %v2197 = vld [vmem:[#allocation9 + $0x140] sm:$0xff]
        %v2198 = vld [vmem:[#allocation9 + $0x148] sm:$0xff]
        %v2199 = vld [vmem:[#allocation9 + $0x150] sm:$0xff]
        %v2200 = vld [vmem:[#allocation9 + $0x158] sm:$0xff]
        %v2201 = vld [vmem:[#allocation9 + $0x160] sm:$0xff]
        %v2202 = vld [vmem:[#allocation9 + $0x168] sm:$0xff]
        %v2203 = vld [vmem:[#allocation9 + $0x170] sm:$0xff]
        %v2204 = vld [vmem:[#allocation9 + $0x178] sm:$0xff]
        %v2205 = vld [vmem:[#allocation9 + $0x180] sm:$0xff]
        %v2206 = vld [vmem:[#allocation9 + $0x188] sm:$0xff]
        %v2207 = vld [vmem:[#allocation9 + $0x190] sm:$0xff]
        %v2208 = vld [vmem:[#allocation9 + $0x198] sm:$0xff]
        %v2209 = vld [vmem:[#allocation9 + $0x1a0] sm:$0xff]
        %v2210 = vld [vmem:[#allocation9 + $0x1a8] sm:$0xff]
        %v2211 = vld [vmem:[#allocation9 + $0x1b0] sm:$0xff]
        %v2212 = vld [vmem:[#allocation9 + $0x1b8] sm:$0xff]
        %v2213 = vld [vmem:[#allocation9 + $0x1c0] sm:$0xff]
        %v2214 = vld [vmem:[#allocation9 + $0x1c8] sm:$0xff]
        %v2215 = vld [vmem:[#allocation9 + $0x1d0] sm:$0xff]
        %v2216 = vld [vmem:[#allocation9 + $0x1d8] sm:$0xff]
        %v2217 = vld [vmem:[#allocation9 + $0x1e0] sm:$0xff]
        %v2218 = vld [vmem:[#allocation9 + $0x1e8] sm:$0xff]
        %v2219 = vld [vmem:[#allocation9 + $0x1f0] sm:$0xff]
        %v2220 = vld [vmem:[#allocation9 + $0x1f8] sm:$0xff]
        %v2221 = vld [vmem:[#allocation9 + $0x200] sm:$0xff]
        %v2222 = vld [vmem:[#allocation9 + $0x208] sm:$0xff]
        %v2223 = vld [vmem:[#allocation9 + $0x210] sm:$0xff]
        %v2224 = vld [vmem:[#allocation9 + $0x218] sm:$0xff]
        %v2225 = vld [vmem:[#allocation9 + $0x220] sm:$0xff]
        %v2226 = vld [vmem:[#allocation9 + $0x228] sm:$0xff]
        %v2227 = vld [vmem:[#allocation9 + $0x230] sm:$0xff]
        %v2228 = vld [vmem:[#allocation9 + $0x238] sm:$0xff]
        %v2229 = vld [vmem:[#allocation9 + $0x240] sm:$0xff]
        %v2230 = vld [vmem:[#allocation9 + $0x248] sm:$0xff]
        %v2231 = vld [vmem:[#allocation9 + $0x250] sm:$0xff]
        %v2232 = vld [vmem:[#allocation9 + $0x258] sm:$0xff]
        %v2233 = vld [vmem:[#allocation9 + $0x260] sm:$0xff]
        %v2234 = vld [vmem:[#allocation9 + $0x268] sm:$0xff]
        %v2235 = vld [vmem:[#allocation9 + $0x270] sm:$0xff]
        %v2236 = vld [vmem:[#allocation9 + $0x278] sm:$0xff]
        %v2237 = vld [vmem:[#allocation9 + $0x280] sm:$0xff]
        %v2238 = vld [vmem:[#allocation9 + $0x288] sm:$0xff]
        %v2239 = vld [vmem:[#allocation9 + $0x290] sm:$0xff]
        %v2240 = vld [vmem:[#allocation9 + $0x298] sm:$0xff]
        %v2241 = vld [vmem:[#allocation9 + $0x2a0] sm:$0xff]
        %v2242 = vld [vmem:[#allocation9 + $0x2a8] sm:$0xff]
        %v2243 = vld [vmem:[#allocation9 + $0x2b0] sm:$0xff]
        %v2244 = vld [vmem:[#allocation9 + $0x2b8] sm:$0xff]
        %v2245 = vld [vmem:[#allocation9 + $0x2c0] sm:$0xff]
        %v2246 = vld [vmem:[#allocation9 + $0x2c8] sm:$0xff]
        %v2247 = vld [vmem:[#allocation9 + $0x2d0] sm:$0xff]
        %v2248 = vld [vmem:[#allocation9 + $0x2d8] sm:$0xff]
        %v2249 = vld [vmem:[#allocation9 + $0x2e0] sm:$0xff]
        %v2250 = vld [vmem:[#allocation9 + $0x2e8] sm:$0xff]
        %v2251 = vld [vmem:[#allocation9 + $0x2f0] sm:$0xff]
        %v2252 = vld [vmem:[#allocation9 + $0x2f8] sm:$0xff]
        %v2253 = vld [vmem:[%s6] sm:$0xf]
        %v2255 = vperm.slane %v2253, 0
        %v2256 = vperm.slane %v2253, 1
        %v2257 = vperm.slane %v2253, 2
        %v2258 = vperm.slane %v2253, 3
        %v2327 = vunpack.c.l.b16 %v2093
        %v2328 = vunpack.c.h.b16 %v2093
        %v2329 = vunpack.c.l.b16 %v2094
        %v2330 = vunpack.c.l.b16 %v2095
        %v2331 = vunpack.c.h.b16 %v2095
        %v2332 = vunpack.c.l.b16 %v2096
        %v2333 = vunpack.c.l.b16 %v2097
        %v2334 = vunpack.c.h.b16 %v2097
        %v2335 = vunpack.c.l.b16 %v2098
        %v2336 = vunpack.c.l.b16 %v2099
        %v2337 = vunpack.c.h.b16 %v2099
        %v2338 = vunpack.c.l.b16 %v2100
        %v2339 = vunpack.c.l.b16 %v2101
        %v2340 = vunpack.c.h.b16 %v2101
        %v2341 = vunpack.c.l.b16 %v2102
        %v2342 = vunpack.c.l.b16 %v2103
        %v2343 = vunpack.c.h.b16 %v2103
        %v2344 = vunpack.c.l.b16 %v2104
        %v2345 = vunpack.c.l.b16 %v2105
        %v2346 = vunpack.c.h.b16 %v2105
        %v2347 = vunpack.c.l.b16 %v2106
        %v2348 = vunpack.c.l.b16 %v2107
        %v2349 = vunpack.c.h.b16 %v2107
        %v2350 = vunpack.c.l.b16 %v2108
        %v2351 = vunpack.c.l.b16 %v2109
        %v2352 = vunpack.c.h.b16 %v2109
        %v2353 = vunpack.c.l.b16 %v2110
        %v2354 = vunpack.c.l.b16 %v2111
        %v2355 = vunpack.c.h.b16 %v2111
        %v2356 = vunpack.c.l.b16 %v2112
        %v2357 = vunpack.c.l.b16 %v2113
        %v2358 = vunpack.c.h.b16 %v2113
        %v2359 = vunpack.c.l.b16 %v2114
        %v2360 = vunpack.c.l.b16 %v2115
        %v2361 = vunpack.c.h.b16 %v2115
        %v2362 = vunpack.c.l.b16 %v2116
        %v2363 = vunpack.c.l.b16 %v2117
        %v2364 = vunpack.c.h.b16 %v2117
        %v2365 = vunpack.c.l.b16 %v2118
        %v2366 = vunpack.c.l.b16 %v2119
        %v2367 = vunpack.c.h.b16 %v2119
        %v2368 = vunpack.c.l.b16 %v2120
        %v2369 = vunpack.c.l.b16 %v2121
        %v2370 = vunpack.c.h.b16 %v2121
        %v2371 = vunpack.c.l.b16 %v2122
        %v2372 = vunpack.c.l.b16 %v2123
        %v2373 = vunpack.c.h.b16 %v2123
        %v2374 = vunpack.c.l.b16 %v2124
        %v2375 = vunpack.c.l.b16 %v2125
        %v2376 = vunpack.c.h.b16 %v2125
        %v2377 = vunpack.c.l.b16 %v2126
        %v2378 = vunpack.c.l.b16 %v2127
        %v2379 = vunpack.c.h.b16 %v2127
        %v2380 = vunpack.c.l.b16 %v2128
        %v2381 = vunpack.c.l.b16 %v2129
        %v2382 = vunpack.c.h.b16 %v2129
        %v2383 = vunpack.c.l.b16 %v2130
        %v2384 = vunpack.c.l.b16 %v2131
        %v2385 = vunpack.c.h.b16 %v2131
        %v2386 = vunpack.c.l.b16 %v2132
        %v2387 = vunpack.c.l.b16 %v2133
        %v2388 = vunpack.c.h.b16 %v2133
        %v2389 = vunpack.c.l.b16 %v2134
        %v2390 = vunpack.c.l.b16 %v2135
        %v2391 = vunpack.c.h.b16 %v2135
        %v2392 = vunpack.c.l.b16 %v2136
        %v2393 = vunpack.c.l.b16 %v2137
        %v2394 = vunpack.c.h.b16 %v2137
        %v2395 = vunpack.c.l.b16 %v2138
        %v2396 = vunpack.c.l.b16 %v2139
        %v2397 = vunpack.c.h.b16 %v2139
        %v2398 = vunpack.c.l.b16 %v2140
        %v2399 = vunpack.c.l.b16 %v2141
        %v2400 = vunpack.c.h.b16 %v2141
        %v2401 = vunpack.c.l.b16 %v2142
        %v2402 = vunpack.c.l.b16 %v2143
        %v2403 = vunpack.c.h.b16 %v2143
        %v2404 = vunpack.c.l.b16 %v2144
        %v2405 = vunpack.c.l.b16 %v2145
        %v2406 = vunpack.c.h.b16 %v2145
        %v2407 = vunpack.c.l.b16 %v2146
        %v2408 = vunpack.c.l.b16 %v2147
        %v2409 = vunpack.c.h.b16 %v2147
        %v2410 = vunpack.c.l.b16 %v2148
        %v2411 = vunpack.c.l.b16 %v2149
        %v2412 = vunpack.c.h.b16 %v2149
        %v2413 = vunpack.c.l.b16 %v2150
        %v2414 = vunpack.c.l.b16 %v2151
        %v2415 = vunpack.c.h.b16 %v2151
        %v2416 = vunpack.c.l.b16 %v2152
        %v2417 = vunpack.c.l.b16 %v2153
        %v2418 = vunpack.c.h.b16 %v2153
        %v2419 = vunpack.c.l.b16 %v2154
        %v2420 = vunpack.c.l.b16 %v2155
        %v2421 = vunpack.c.h.b16 %v2155
        %v2422 = vunpack.c.l.b16 %v2156
        %v2423 = vpack.c.b16 %v2330, %v2327
        %v2424 = vpack.c.b16 %v2331, %v2328
        %v2425 = vpack.c.b16 %v2332, %v2329
        %v2426 = vpack.c.b16 %v2336, %v2333
        %v2427 = vpack.c.b16 %v2337, %v2334
        %v2428 = vpack.c.b16 %v2338, %v2335
        %v2429 = vpack.c.b16 %v2342, %v2339
        %v2430 = vpack.c.b16 %v2343, %v2340
        %v2431 = vpack.c.b16 %v2344, %v2341
        %v2432 = vpack.c.b16 %v2348, %v2345
        %v2433 = vpack.c.b16 %v2349, %v2346
        %v2434 = vpack.c.b16 %v2350, %v2347
        %v2435 = vpack.c.b16 %v2354, %v2351
        %v2436 = vpack.c.b16 %v2355, %v2352
        %v2437 = vpack.c.b16 %v2356, %v2353
        %v2438 = vpack.c.b16 %v2360, %v2357
        %v2439 = vpack.c.b16 %v2361, %v2358
        %v2440 = vpack.c.b16 %v2362, %v2359
        %v2441 = vpack.c.b16 %v2366, %v2363
        %v2442 = vpack.c.b16 %v2367, %v2364
        %v2443 = vpack.c.b16 %v2368, %v2365
        %v2444 = vpack.c.b16 %v2372, %v2369
        %v2445 = vpack.c.b16 %v2373, %v2370
        %v2446 = vpack.c.b16 %v2374, %v2371
        %v2447 = vpack.c.b16 %v2378, %v2375
        %v2448 = vpack.c.b16 %v2379, %v2376
        %v2449 = vpack.c.b16 %v2380, %v2377
        %v2450 = vpack.c.b16 %v2384, %v2381
        %v2451 = vpack.c.b16 %v2385, %v2382
        %v2452 = vpack.c.b16 %v2386, %v2383
        %v2453 = vpack.c.b16 %v2390, %v2387
        %v2454 = vpack.c.b16 %v2391, %v2388
        %v2455 = vpack.c.b16 %v2392, %v2389
        %v2456 = vpack.c.b16 %v2396, %v2393
        %v2457 = vpack.c.b16 %v2397, %v2394
        %v2458 = vpack.c.b16 %v2398, %v2395
        %v2459 = vpack.c.b16 %v2402, %v2399
        %v2460 = vpack.c.b16 %v2403, %v2400
        %v2461 = vpack.c.b16 %v2404, %v2401
        %v2462 = vpack.c.b16 %v2408, %v2405
        %v2463 = vpack.c.b16 %v2409, %v2406
        %v2464 = vpack.c.b16 %v2410, %v2407
        %v2465 = vpack.c.b16 %v2414, %v2411
        %v2466 = vpack.c.b16 %v2415, %v2412
        %v2467 = vpack.c.b16 %v2416, %v2413
        %v2468 = vpack.c.b16 %v2420, %v2417
        %v2469 = vpack.c.b16 %v2421, %v2418
        %v2470 = vpack.c.b16 %v2422, %v2419
        %v2615 = vunpack.c.l.b16 %v2157
        %v2616 = vunpack.c.h.b16 %v2157
        %v2617 = vunpack.c.l.b16 %v2158
        %v2618 = vunpack.c.h.b16 %v2158
        %v2619 = vunpack.c.l.b16 %v2159
        %v2620 = vunpack.c.h.b16 %v2159
        %v2621 = vunpack.c.l.b16 %v2160
        %v2622 = vunpack.c.h.b16 %v2160
        %v2623 = vunpack.c.l.b16 %v2161
        %v2624 = vunpack.c.h.b16 %v2161
        %v2625 = vunpack.c.l.b16 %v2162
        %v2626 = vunpack.c.h.b16 %v2162
        %v2627 = vunpack.c.l.b16 %v2163
        %v2628 = vunpack.c.h.b16 %v2163
        %v2629 = vunpack.c.l.b16 %v2164
        %v2630 = vunpack.c.h.b16 %v2164
        %v2631 = vunpack.c.l.b16 %v2165
        %v2632 = vunpack.c.h.b16 %v2165
        %v2633 = vunpack.c.l.b16 %v2166
        %v2634 = vunpack.c.h.b16 %v2166
        %v2635 = vunpack.c.l.b16 %v2167
        %v2636 = vunpack.c.h.b16 %v2167
        %v2637 = vunpack.c.l.b16 %v2168
        %v2638 = vunpack.c.h.b16 %v2168
        %v2639 = vunpack.c.l.b16 %v2169
        %v2640 = vunpack.c.h.b16 %v2169
        %v2641 = vunpack.c.l.b16 %v2170
        %v2642 = vunpack.c.h.b16 %v2170
        %v2643 = vunpack.c.l.b16 %v2171
        %v2644 = vunpack.c.h.b16 %v2171
        %v2645 = vunpack.c.l.b16 %v2172
        %v2646 = vunpack.c.h.b16 %v2172
        %v2647 = vunpack.c.l.b16 %v2173
        %v2648 = vunpack.c.h.b16 %v2173
        %v2649 = vunpack.c.l.b16 %v2174
        %v2650 = vunpack.c.h.b16 %v2174
        %v2651 = vunpack.c.l.b16 %v2175
        %v2652 = vunpack.c.h.b16 %v2175
        %v2653 = vunpack.c.l.b16 %v2176
        %v2654 = vunpack.c.h.b16 %v2176
        %v2655 = vunpack.c.l.b16 %v2177
        %v2656 = vunpack.c.h.b16 %v2177
        %v2657 = vunpack.c.l.b16 %v2178
        %v2658 = vunpack.c.h.b16 %v2178
        %v2659 = vunpack.c.l.b16 %v2179
        %v2660 = vunpack.c.h.b16 %v2179
        %v2661 = vunpack.c.l.b16 %v2180
        %v2662 = vunpack.c.h.b16 %v2180
        %v2663 = vunpack.c.l.b16 %v2181
        %v2664 = vunpack.c.h.b16 %v2181
        %v2665 = vunpack.c.l.b16 %v2182
        %v2666 = vunpack.c.h.b16 %v2182
        %v2667 = vunpack.c.l.b16 %v2183
        %v2668 = vunpack.c.h.b16 %v2183
        %v2669 = vunpack.c.l.b16 %v2184
        %v2670 = vunpack.c.h.b16 %v2184
        %v2671 = vunpack.c.l.b16 %v2185
        %v2672 = vunpack.c.h.b16 %v2185
        %v2673 = vunpack.c.l.b16 %v2186
        %v2674 = vunpack.c.h.b16 %v2186
        %v2675 = vunpack.c.l.b16 %v2187
        %v2676 = vunpack.c.h.b16 %v2187
        %v2677 = vunpack.c.l.b16 %v2188
        %v2678 = vunpack.c.h.b16 %v2188
        %v2679 = vunpack.c.l.b16 %v2189
        %v2680 = vunpack.c.h.b16 %v2189
        %v2681 = vunpack.c.l.b16 %v2190
        %v2682 = vunpack.c.h.b16 %v2190
        %v2683 = vunpack.c.l.b16 %v2191
        %v2684 = vunpack.c.h.b16 %v2191
        %v2685 = vunpack.c.l.b16 %v2192
        %v2686 = vunpack.c.h.b16 %v2192
        %v2687 = vunpack.c.l.b16 %v2193
        %v2688 = vunpack.c.h.b16 %v2193
        %v2689 = vunpack.c.l.b16 %v2194
        %v2690 = vunpack.c.h.b16 %v2194
        %v2691 = vunpack.c.l.b16 %v2195
        %v2692 = vunpack.c.h.b16 %v2195
        %v2693 = vunpack.c.l.b16 %v2196
        %v2694 = vunpack.c.h.b16 %v2196
        %v2695 = vunpack.c.l.b16 %v2197
        %v2696 = vunpack.c.h.b16 %v2197
        %v2697 = vunpack.c.l.b16 %v2198
        %v2698 = vunpack.c.h.b16 %v2198
        %v2699 = vunpack.c.l.b16 %v2199
        %v2700 = vunpack.c.h.b16 %v2199
        %v2701 = vunpack.c.l.b16 %v2200
        %v2702 = vunpack.c.h.b16 %v2200
        %v2703 = vunpack.c.l.b16 %v2201
        %v2704 = vunpack.c.h.b16 %v2201
        %v2705 = vunpack.c.l.b16 %v2202
        %v2706 = vunpack.c.h.b16 %v2202
        %v2707 = vunpack.c.l.b16 %v2203
        %v2708 = vunpack.c.h.b16 %v2203
        %v2709 = vunpack.c.l.b16 %v2204
        %v2710 = vunpack.c.h.b16 %v2204
        %v2711 = vunpack.c.l.b16 %v2205
        %v2712 = vunpack.c.h.b16 %v2205
        %v2713 = vunpack.c.l.b16 %v2206
        %v2714 = vunpack.c.h.b16 %v2206
        %v2715 = vunpack.c.l.b16 %v2207
        %v2716 = vunpack.c.h.b16 %v2207
        %v2717 = vunpack.c.l.b16 %v2208
        %v2718 = vunpack.c.h.b16 %v2208
        %v2719 = vunpack.c.l.b16 %v2209
        %v2720 = vunpack.c.h.b16 %v2209
        %v2721 = vunpack.c.l.b16 %v2210
        %v2722 = vunpack.c.h.b16 %v2210
        %v2723 = vunpack.c.l.b16 %v2211
        %v2724 = vunpack.c.h.b16 %v2211
        %v2725 = vunpack.c.l.b16 %v2212
        %v2726 = vunpack.c.h.b16 %v2212
        %v2727 = vunpack.c.l.b16 %v2213
        %v2728 = vunpack.c.h.b16 %v2213
        %v2729 = vunpack.c.l.b16 %v2214
        %v2730 = vunpack.c.h.b16 %v2214
        %v2731 = vunpack.c.l.b16 %v2215
        %v2732 = vunpack.c.h.b16 %v2215
        %v2733 = vunpack.c.l.b16 %v2216
        %v2734 = vunpack.c.h.b16 %v2216
        %v2735 = vunpack.c.l.b16 %v2217
        %v2736 = vunpack.c.h.b16 %v2217
        %v2737 = vunpack.c.l.b16 %v2218
        %v2738 = vunpack.c.h.b16 %v2218
        %v2739 = vunpack.c.l.b16 %v2219
        %v2740 = vunpack.c.h.b16 %v2219
        %v2741 = vunpack.c.l.b16 %v2220
        %v2742 = vunpack.c.h.b16 %v2220
        %v2743 = vunpack.c.l.b16 %v2221
        %v2744 = vunpack.c.h.b16 %v2221
        %v2745 = vunpack.c.l.b16 %v2222
        %v2746 = vunpack.c.h.b16 %v2222
        %v2747 = vunpack.c.l.b16 %v2223
        %v2748 = vunpack.c.h.b16 %v2223
        %v2749 = vunpack.c.l.b16 %v2224
        %v2750 = vunpack.c.h.b16 %v2224
        %v2751 = vunpack.c.l.b16 %v2225
        %v2752 = vunpack.c.h.b16 %v2225
        %v2753 = vunpack.c.l.b16 %v2226
        %v2754 = vunpack.c.h.b16 %v2226
        %v2755 = vunpack.c.l.b16 %v2227
        %v2756 = vunpack.c.h.b16 %v2227
        %v2757 = vunpack.c.l.b16 %v2228
        %v2758 = vunpack.c.h.b16 %v2228
        %v2759 = vunpack.c.l.b16 %v2229
        %v2760 = vunpack.c.h.b16 %v2229
        %v2761 = vunpack.c.l.b16 %v2230
        %v2762 = vunpack.c.h.b16 %v2230
        %v2763 = vunpack.c.l.b16 %v2231
        %v2764 = vunpack.c.h.b16 %v2231
        %v2765 = vunpack.c.l.b16 %v2232
        %v2766 = vunpack.c.h.b16 %v2232
        %v2767 = vunpack.c.l.b16 %v2233
        %v2768 = vunpack.c.h.b16 %v2233
        %v2769 = vunpack.c.l.b16 %v2234
        %v2770 = vunpack.c.h.b16 %v2234
        %v2771 = vunpack.c.l.b16 %v2235
        %v2772 = vunpack.c.h.b16 %v2235
        %v2773 = vunpack.c.l.b16 %v2236
        %v2774 = vunpack.c.h.b16 %v2236
        %v2775 = vunpack.c.l.b16 %v2237
        %v2776 = vunpack.c.h.b16 %v2237
        %v2777 = vunpack.c.l.b16 %v2238
        %v2778 = vunpack.c.h.b16 %v2238
        %v2779 = vunpack.c.l.b16 %v2239
        %v2780 = vunpack.c.h.b16 %v2239
        %v2781 = vunpack.c.l.b16 %v2240
        %v2782 = vunpack.c.h.b16 %v2240
        %v2783 = vunpack.c.l.b16 %v2241
        %v2784 = vunpack.c.h.b16 %v2241
        %v2785 = vunpack.c.l.b16 %v2242
        %v2786 = vunpack.c.h.b16 %v2242
        %v2787 = vunpack.c.l.b16 %v2243
        %v2788 = vunpack.c.h.b16 %v2243
        %v2789 = vunpack.c.l.b16 %v2244
        %v2790 = vunpack.c.h.b16 %v2244
        %v2791 = vunpack.c.l.b16 %v2245
        %v2792 = vunpack.c.h.b16 %v2245
        %v2793 = vunpack.c.l.b16 %v2246
        %v2794 = vunpack.c.h.b16 %v2246
        %v2795 = vunpack.c.l.b16 %v2247
        %v2796 = vunpack.c.h.b16 %v2247
        %v2797 = vunpack.c.l.b16 %v2248
        %v2798 = vunpack.c.h.b16 %v2248
        %v2799 = vunpack.c.l.b16 %v2249
        %v2800 = vunpack.c.h.b16 %v2249
        %v2801 = vunpack.c.l.b16 %v2250
        %v2802 = vunpack.c.h.b16 %v2250
        %v2803 = vunpack.c.l.b16 %v2251
        %v2804 = vunpack.c.h.b16 %v2251
        %v2805 = vunpack.c.l.b16 %v2252
        %v2806 = vunpack.c.h.b16 %v2252
        %v2807 = vpack.c.b16 %v2619, %v2615
        %v2808 = vpack.c.b16 %v2620, %v2616
        %v2809 = vpack.c.b16 %v2621, %v2617
        %v2810 = vpack.c.b16 %v2622, %v2618
        %v2811 = vpack.c.b16 %v2627, %v2623
        %v2812 = vpack.c.b16 %v2628, %v2624
        %v2813 = vpack.c.b16 %v2629, %v2625
        %v2814 = vpack.c.b16 %v2630, %v2626
        %v2815 = vpack.c.b16 %v2635, %v2631
        %v2816 = vpack.c.b16 %v2636, %v2632
        %v2817 = vpack.c.b16 %v2637, %v2633
        %v2818 = vpack.c.b16 %v2638, %v2634
        %v2819 = vpack.c.b16 %v2643, %v2639
        %v2820 = vpack.c.b16 %v2644, %v2640
        %v2821 = vpack.c.b16 %v2645, %v2641
        %v2822 = vpack.c.b16 %v2646, %v2642
        %v2823 = vpack.c.b16 %v2651, %v2647
        %v2824 = vpack.c.b16 %v2652, %v2648
        %v2825 = vpack.c.b16 %v2653, %v2649
        %v2826 = vpack.c.b16 %v2654, %v2650
        %v2827 = vpack.c.b16 %v2659, %v2655
        %v2828 = vpack.c.b16 %v2660, %v2656
        %v2829 = vpack.c.b16 %v2661, %v2657
        %v2830 = vpack.c.b16 %v2662, %v2658
        %v2831 = vpack.c.b16 %v2667, %v2663
        %v2832 = vpack.c.b16 %v2668, %v2664
        %v2833 = vpack.c.b16 %v2669, %v2665
        %v2834 = vpack.c.b16 %v2670, %v2666
        %v2835 = vpack.c.b16 %v2675, %v2671
        %v2836 = vpack.c.b16 %v2676, %v2672
        %v2837 = vpack.c.b16 %v2677, %v2673
        %v2838 = vpack.c.b16 %v2678, %v2674
        %v2839 = vpack.c.b16 %v2683, %v2679
        %v2840 = vpack.c.b16 %v2684, %v2680
        %v2841 = vpack.c.b16 %v2685, %v2681
        %v2842 = vpack.c.b16 %v2686, %v2682
        %v2843 = vpack.c.b16 %v2691, %v2687
        %v2844 = vpack.c.b16 %v2692, %v2688
        %v2845 = vpack.c.b16 %v2693, %v2689
        %v2846 = vpack.c.b16 %v2694, %v2690
        %v2847 = vpack.c.b16 %v2699, %v2695
        %v2848 = vpack.c.b16 %v2700, %v2696
        %v2849 = vpack.c.b16 %v2701, %v2697
        %v2850 = vpack.c.b16 %v2702, %v2698
        %v2851 = vpack.c.b16 %v2707, %v2703
        %v2852 = vpack.c.b16 %v2708, %v2704
        %v2853 = vpack.c.b16 %v2709, %v2705
        %v2854 = vpack.c.b16 %v2710, %v2706
        %v2855 = vpack.c.b16 %v2715, %v2711
        %v2856 = vpack.c.b16 %v2716, %v2712
        %v2857 = vpack.c.b16 %v2717, %v2713
        %v2858 = vpack.c.b16 %v2718, %v2714
        %v2859 = vpack.c.b16 %v2723, %v2719
        %v2860 = vpack.c.b16 %v2724, %v2720
        %v2861 = vpack.c.b16 %v2725, %v2721
        %v2862 = vpack.c.b16 %v2726, %v2722
        %v2863 = vpack.c.b16 %v2731, %v2727
        %v2864 = vpack.c.b16 %v2732, %v2728
        %v2865 = vpack.c.b16 %v2733, %v2729
        %v2866 = vpack.c.b16 %v2734, %v2730
        %v2867 = vpack.c.b16 %v2739, %v2735
        %v2868 = vpack.c.b16 %v2740, %v2736
        %v2869 = vpack.c.b16 %v2741, %v2737
        %v2870 = vpack.c.b16 %v2742, %v2738
        %v2871 = vpack.c.b16 %v2747, %v2743
        %v2872 = vpack.c.b16 %v2748, %v2744
        %v2873 = vpack.c.b16 %v2749, %v2745
        %v2874 = vpack.c.b16 %v2750, %v2746
        %v2875 = vpack.c.b16 %v2755, %v2751
        %v2876 = vpack.c.b16 %v2756, %v2752
        %v2877 = vpack.c.b16 %v2757, %v2753
        %v2878 = vpack.c.b16 %v2758, %v2754
        %v2879 = vpack.c.b16 %v2763, %v2759
        %v2880 = vpack.c.b16 %v2764, %v2760
        %v2881 = vpack.c.b16 %v2765, %v2761
        %v2882 = vpack.c.b16 %v2766, %v2762
        %v2883 = vpack.c.b16 %v2771, %v2767
        %v2884 = vpack.c.b16 %v2772, %v2768
        %v2885 = vpack.c.b16 %v2773, %v2769
        %v2886 = vpack.c.b16 %v2774, %v2770
        %v2887 = vpack.c.b16 %v2779, %v2775
        %v2888 = vpack.c.b16 %v2780, %v2776
        %v2889 = vpack.c.b16 %v2781, %v2777
        %v2890 = vpack.c.b16 %v2782, %v2778
        %v2891 = vpack.c.b16 %v2787, %v2783
        %v2892 = vpack.c.b16 %v2788, %v2784
        %v2893 = vpack.c.b16 %v2789, %v2785
        %v2894 = vpack.c.b16 %v2790, %v2786
        %v2895 = vpack.c.b16 %v2795, %v2791
        %v2896 = vpack.c.b16 %v2796, %v2792
        %v2897 = vpack.c.b16 %v2797, %v2793
        %v2898 = vpack.c.b16 %v2798, %v2794
        %v2899 = vpack.c.b16 %v2803, %v2799
        %v2900 = vpack.c.b16 %v2804, %v2800
        %v2901 = vpack.c.b16 %v2805, %v2801
        %v2902 = vpack.c.b16 %v2806, %v2802
        %2999 = vmatpush.bf16.msra.mxu0 %v2835
        %3000 = vmatpush.bf16.msra.mxu0 %v2831
        %3001 = vmatpush.bf16.msra.mxu0 %v2827
        %3002 = vmatpush.bf16.msra.mxu0 %v2823
        %3003 = vmatpush.bf16.msra.mxu0 %v2819
        %3004 = vmatpush.bf16.msra.mxu0 %v2815
        %3005 = vmatpush.bf16.msra.mxu0 %v2811
        %3006 = vmatpush.bf16.msra.mxu0 %v2807
        %3007 = vmatmul.bf16.gmra.mxu0 %v2423
        %v3008 = vpop.f32.mrf.mxu0
        %v3009 = vadd.f32 %v2255, %v3008
        %v3010 = vpop.f32.mrf.mxu0
        %v3011 = vadd.f32 %v2255, %v3010
        %3012 = vmatmul.bf16.gmra.mxu0 %v2426
        %v3013 = vpop.f32.mrf.mxu0
        %v3014 = vadd.f32 %v2255, %v3013
        %v3015 = vpop.f32.mrf.mxu0
        %v3016 = vadd.f32 %v2255, %v3015
        %3017 = vmatmul.bf16.gmra.mxu0 %v2429
        %v3018 = vpop.f32.mrf.mxu0
        %v3019 = vadd.f32 %v2255, %v3018
        %v3020 = vpop.f32.mrf.mxu0
        %v3021 = vadd.f32 %v2255, %v3020
        %3022 = vmatmul.bf16.gmra.mxu0 %v2432
        %v3023 = vpop.f32.mrf.mxu0
        %v3024 = vadd.f32 %v2255, %v3023
        %v3025 = vpop.f32.mrf.mxu0
        %v3026 = vadd.f32 %v2255, %v3025
        %3027 = vmatmul.bf16.gmra.mxu0 %v2435
        %v3028 = vpop.f32.mrf.mxu0
        %v3029 = vadd.f32 %v2255, %v3028
        %v3030 = vpop.f32.mrf.mxu0
        %v3031 = vadd.f32 %v2255, %v3030
        %3032 = vmatmul.bf16.gmra.mxu0 %v2438
        %v3033 = vpop.f32.mrf.mxu0
        %v3034 = vadd.f32 %v2255, %v3033
        %v3035 = vpop.f32.mrf.mxu0
        %v3036 = vadd.f32 %v2255, %v3035
        %3037 = vmatmul.bf16.gmra.mxu0 %v2441
        %v3038 = vpop.f32.mrf.mxu0
        %v3039 = vadd.f32 %v2255, %v3038
        %v3040 = vpop.f32.mrf.mxu0
        %v3041 = vadd.f32 %v2255, %v3040
        %3042 = vmatmul.bf16.gmra.mxu0 %v2444
        %v3043 = vpop.f32.mrf.mxu0
        %v3044 = vadd.f32 %v2255, %v3043
        %v3045 = vpop.f32.mrf.mxu0
        %v3046 = vadd.f32 %v2255, %v3045
        %3047 = vmatmul.bf16.gmra.mxu0 %v2447
        %v3048 = vpop.f32.mrf.mxu0
        %v3049 = vadd.f32 %v2255, %v3048
        %v3050 = vpop.f32.mrf.mxu0
        %v3051 = vadd.f32 %v2255, %v3050
        %3052 = vmatmul.bf16.gmra.mxu0 %v2450
        %v3053 = vpop.f32.mrf.mxu0
        %v3054 = vadd.f32 %v2255, %v3053
        %v3055 = vpop.f32.mrf.mxu0
        %v3056 = vadd.f32 %v2255, %v3055
        %3057 = vmatmul.bf16.gmra.mxu0 %v2453
        %v3058 = vpop.f32.mrf.mxu0
        %v3059 = vadd.f32 %v2255, %v3058
        %v3060 = vpop.f32.mrf.mxu0
        %v3061 = vadd.f32 %v2255, %v3060
        %3062 = vmatmul.bf16.gmra.mxu0 %v2456
        %v3063 = vpop.f32.mrf.mxu0
        %v3064 = vadd.f32 %v2255, %v3063
        %v3065 = vpop.f32.mrf.mxu0
        %v3066 = vadd.f32 %v2255, %v3065
        %3067 = vmatmul.bf16.gmra.mxu0 %v2459
        %v3068 = vpop.f32.mrf.mxu0
        %v3069 = vadd.f32 %v2255, %v3068
        %v3070 = vpop.f32.mrf.mxu0
        %v3071 = vadd.f32 %v2255, %v3070
        %3072 = vmatmul.bf16.gmra.mxu0 %v2462
        %v3073 = vpop.f32.mrf.mxu0
        %v3074 = vadd.f32 %v2255, %v3073
        %v3075 = vpop.f32.mrf.mxu0
        %v3076 = vadd.f32 %v2255, %v3075
        %3077 = vmatmul.bf16.gmra.mxu0 %v2465
        %v3078 = vpop.f32.mrf.mxu0
        %v3079 = vadd.f32 %v2255, %v3078
        %v3080 = vpop.f32.mrf.mxu0
        %v3081 = vadd.f32 %v2255, %v3080
        %3082 = vmatmul.bf16.gmra.mxu0 %v2468
        %v3083 = vpop.f32.mrf.mxu0
        %v3084 = vadd.f32 %v2255, %v3083
        %v3085 = vpop.f32.mrf.mxu0
        %v3086 = vadd.f32 %v2255, %v3085
        %3087 = vdwg.mxu0
        %3088 = vmatpush.bf16.msra.mxu0 %v2867
        %3089 = vmatpush.bf16.msra.mxu0 %v2863
        %3090 = vmatpush.bf16.msra.mxu0 %v2859
        %3091 = vmatpush.bf16.msra.mxu0 %v2855
        %3092 = vmatpush.bf16.msra.mxu0 %v2851
        %3093 = vmatpush.bf16.msra.mxu0 %v2847
        %3094 = vmatpush.bf16.msra.mxu0 %v2843
        %3095 = vmatpush.bf16.msra.mxu0 %v2839
        %3096 = vmatmul.bf16.gmra.mxu0 %v2424
        %v3097 = vpop.f32.mrf.mxu0
        %v3098 = vadd.f32 %v3009, %v3097
        %v3099 = vpop.f32.mrf.mxu0
        %v3100 = vadd.f32 %v3011, %v3099
        %3101 = vmatmul.bf16.gmra.mxu0 %v2427
        %v3102 = vpop.f32.mrf.mxu0
        %v3103 = vadd.f32 %v3014, %v3102
        %v3104 = vpop.f32.mrf.mxu0
        %v3105 = vadd.f32 %v3016, %v3104
        %3106 = vmatmul.bf16.gmra.mxu0 %v2430
        %v3107 = vpop.f32.mrf.mxu0
        %v3108 = vadd.f32 %v3019, %v3107
        %v3109 = vpop.f32.mrf.mxu0
        %v3110 = vadd.f32 %v3021, %v3109
        %3111 = vmatmul.bf16.gmra.mxu0 %v2433
        %v3112 = vpop.f32.mrf.mxu0
        %v3113 = vadd.f32 %v3024, %v3112
        %v3114 = vpop.f32.mrf.mxu0
        %v3115 = vadd.f32 %v3026, %v3114
        %3116 = vmatmul.bf16.gmra.mxu0 %v2436
        %v3117 = vpop.f32.mrf.mxu0
        %v3118 = vadd.f32 %v3029, %v3117
        %v3119 = vpop.f32.mrf.mxu0
        %v3120 = vadd.f32 %v3031, %v3119
        %3121 = vmatmul.bf16.gmra.mxu0 %v2439
        %v3122 = vpop.f32.mrf.mxu0
        %v3123 = vadd.f32 %v3034, %v3122
        %v3124 = vpop.f32.mrf.mxu0
        %v3125 = vadd.f32 %v3036, %v3124
        %3126 = vmatmul.bf16.gmra.mxu0 %v2442
        %v3127 = vpop.f32.mrf.mxu0
        %v3128 = vadd.f32 %v3039, %v3127
        %v3129 = vpop.f32.mrf.mxu0
        %v3130 = vadd.f32 %v3041, %v3129
        %3131 = vmatmul.bf16.gmra.mxu0 %v2445
        %v3132 = vpop.f32.mrf.mxu0
        %v3133 = vadd.f32 %v3044, %v3132
        %v3134 = vpop.f32.mrf.mxu0
        %v3135 = vadd.f32 %v3046, %v3134
        %3136 = vmatmul.bf16.gmra.mxu0 %v2448
        %v3137 = vpop.f32.mrf.mxu0
        %v3138 = vadd.f32 %v3049, %v3137
        %v3139 = vpop.f32.mrf.mxu0
        %v3140 = vadd.f32 %v3051, %v3139
        %3141 = vmatmul.bf16.gmra.mxu0 %v2451
        %v3142 = vpop.f32.mrf.mxu0
        %v3143 = vadd.f32 %v3054, %v3142
        %v3144 = vpop.f32.mrf.mxu0
        %v3145 = vadd.f32 %v3056, %v3144
        %3146 = vmatmul.bf16.gmra.mxu0 %v2454
        %v3147 = vpop.f32.mrf.mxu0
        %v3148 = vadd.f32 %v3059, %v3147
        %v3149 = vpop.f32.mrf.mxu0
        %v3150 = vadd.f32 %v3061, %v3149
        %3151 = vmatmul.bf16.gmra.mxu0 %v2457
        %v3152 = vpop.f32.mrf.mxu0
        %v3153 = vadd.f32 %v3064, %v3152
        %v3154 = vpop.f32.mrf.mxu0
        %v3155 = vadd.f32 %v3066, %v3154
        %3156 = vmatmul.bf16.gmra.mxu0 %v2460
        %v3157 = vpop.f32.mrf.mxu0
        %v3158 = vadd.f32 %v3069, %v3157
        %v3159 = vpop.f32.mrf.mxu0
        %v3160 = vadd.f32 %v3071, %v3159
        %3161 = vmatmul.bf16.gmra.mxu0 %v2463
        %v3162 = vpop.f32.mrf.mxu0
        %v3163 = vadd.f32 %v3074, %v3162
        %v3164 = vpop.f32.mrf.mxu0
        %v3165 = vadd.f32 %v3076, %v3164
        %3166 = vmatmul.bf16.gmra.mxu0 %v2466
        %v3167 = vpop.f32.mrf.mxu0
        %v3168 = vadd.f32 %v3079, %v3167
        %v3169 = vpop.f32.mrf.mxu0
        %v3170 = vadd.f32 %v3081, %v3169
        %3171 = vmatmul.bf16.gmra.mxu0 %v2469
        %v3172 = vpop.f32.mrf.mxu0
        %v3173 = vadd.f32 %v3084, %v3172
        %v3174 = vpop.f32.mrf.mxu0
        %v3175 = vadd.f32 %v3086, %v3174
        %3176 = vdwg.mxu0
        %3177 = vmatpush.bf16.msra.mxu0 %v2899
        %3178 = vmatpush.bf16.msra.mxu0 %v2895
        %3179 = vmatpush.bf16.msra.mxu0 %v2891
        %3180 = vmatpush.bf16.msra.mxu0 %v2887
        %3181 = vmatpush.bf16.msra.mxu0 %v2883
        %3182 = vmatpush.bf16.msra.mxu0 %v2879
        %3183 = vmatpush.bf16.msra.mxu0 %v2875
        %3184 = vmatpush.bf16.msra.mxu0 %v2871
        %3185 = vmatmul.bf16.gmra.mxu0 %v2425
        %v3186 = vpop.f32.mrf.mxu0
        %v3187 = vadd.f32 %v3098, %v3186
        %v3188 = vpop.f32.mrf.mxu0
        %v3189 = vadd.f32 %v3100, %v3188
        %3190 = vmatmul.bf16.gmra.mxu0 %v2428
        %v3191 = vpop.f32.mrf.mxu0
        %v3192 = vadd.f32 %v3103, %v3191
        %v3193 = vpop.f32.mrf.mxu0
        %v3194 = vadd.f32 %v3105, %v3193
        %3195 = vmatmul.bf16.gmra.mxu0 %v2431
        %v3196 = vpop.f32.mrf.mxu0
        %v3197 = vadd.f32 %v3108, %v3196
        %v3198 = vpop.f32.mrf.mxu0
        %v3199 = vadd.f32 %v3110, %v3198
        %3200 = vmatmul.bf16.gmra.mxu0 %v2434
        %v3201 = vpop.f32.mrf.mxu0
        %v3202 = vadd.f32 %v3113, %v3201
        %v3203 = vpop.f32.mrf.mxu0
        %v3204 = vadd.f32 %v3115, %v3203
        %3205 = vmatmul.bf16.gmra.mxu0 %v2437
        %v3206 = vpop.f32.mrf.mxu0
        %v3207 = vadd.f32 %v3118, %v3206
        %v3208 = vpop.f32.mrf.mxu0
        %v3209 = vadd.f32 %v3120, %v3208
        %3210 = vmatmul.bf16.gmra.mxu0 %v2440
        %v3211 = vpop.f32.mrf.mxu0
        %v3212 = vadd.f32 %v3123, %v3211
        %v3213 = vpop.f32.mrf.mxu0
        %v3214 = vadd.f32 %v3125, %v3213
        %3215 = vmatmul.bf16.gmra.mxu0 %v2443
        %v3216 = vpop.f32.mrf.mxu0
        %v3217 = vadd.f32 %v3128, %v3216
        %v3218 = vpop.f32.mrf.mxu0
        %v3219 = vadd.f32 %v3130, %v3218
        %3220 = vmatmul.bf16.gmra.mxu0 %v2446
        %v3221 = vpop.f32.mrf.mxu0
        %v3222 = vadd.f32 %v3133, %v3221
        %v3223 = vpop.f32.mrf.mxu0
        %v3224 = vadd.f32 %v3135, %v3223
        %3225 = vmatmul.bf16.gmra.mxu0 %v2449
        %v3226 = vpop.f32.mrf.mxu0
        %v3227 = vadd.f32 %v3138, %v3226
        %v3228 = vpop.f32.mrf.mxu0
        %v3229 = vadd.f32 %v3140, %v3228
        %3230 = vmatmul.bf16.gmra.mxu0 %v2452
        %v3231 = vpop.f32.mrf.mxu0
        %v3232 = vadd.f32 %v3143, %v3231
        %v3233 = vpop.f32.mrf.mxu0
        %v3234 = vadd.f32 %v3145, %v3233
        %3235 = vmatmul.bf16.gmra.mxu0 %v2455
        %v3236 = vpop.f32.mrf.mxu0
        %v3237 = vadd.f32 %v3148, %v3236
        %v3238 = vpop.f32.mrf.mxu0
        %v3239 = vadd.f32 %v3150, %v3238
        %3240 = vmatmul.bf16.gmra.mxu0 %v2458
        %v3241 = vpop.f32.mrf.mxu0
        %v3242 = vadd.f32 %v3153, %v3241
        %v3243 = vpop.f32.mrf.mxu0
        %v3244 = vadd.f32 %v3155, %v3243
        %3245 = vmatmul.bf16.gmra.mxu0 %v2461
        %v3246 = vpop.f32.mrf.mxu0
        %v3247 = vadd.f32 %v3158, %v3246
        %v3248 = vpop.f32.mrf.mxu0
        %v3249 = vadd.f32 %v3160, %v3248
        %3250 = vmatmul.bf16.gmra.mxu0 %v2464
        %v3251 = vpop.f32.mrf.mxu0
        %v3252 = vadd.f32 %v3163, %v3251
        %v3253 = vpop.f32.mrf.mxu0
        %v3254 = vadd.f32 %v3165, %v3253
        %3255 = vmatmul.bf16.gmra.mxu0 %v2467
        %v3256 = vpop.f32.mrf.mxu0
        %v3257 = vadd.f32 %v3168, %v3256
        %v3258 = vpop.f32.mrf.mxu0
        %v3259 = vadd.f32 %v3170, %v3258
        %3260 = vmatmul.bf16.gmra.mxu0 %v2470
        %v3261 = vpop.f32.mrf.mxu0
        %v3262 = vadd.f32 %v3173, %v3261
        %v3263 = vpop.f32.mrf.mxu0
        %v3264 = vadd.f32 %v3175, %v3263
        %3265 = vdwg.mxu0
        %3266 = vmatpush.bf16.msra.mxu0 %v2836
        %3267 = vmatpush.bf16.msra.mxu0 %v2832
        %3268 = vmatpush.bf16.msra.mxu0 %v2828
        %3269 = vmatpush.bf16.msra.mxu0 %v2824
        %3270 = vmatpush.bf16.msra.mxu0 %v2820
        %3271 = vmatpush.bf16.msra.mxu0 %v2816
        %3272 = vmatpush.bf16.msra.mxu0 %v2812
        %3273 = vmatpush.bf16.msra.mxu0 %v2808
        %3274 = vmatmul.bf16.gmra.mxu0 %v2423
        %v3275 = vpop.f32.mrf.mxu0
        %v3276 = vadd.f32 %v2256, %v3275
        %v3277 = vpop.f32.mrf.mxu0
        %v3278 = vadd.f32 %v2256, %v3277
        %3279 = vmatmul.bf16.gmra.mxu0 %v2426
        %v3280 = vpop.f32.mrf.mxu0
        %v3281 = vadd.f32 %v2256, %v3280
        %v3282 = vpop.f32.mrf.mxu0
        %v3283 = vadd.f32 %v2256, %v3282
        %3284 = vmatmul.bf16.gmra.mxu0 %v2429
        %v3285 = vpop.f32.mrf.mxu0
        %v3286 = vadd.f32 %v2256, %v3285
        %v3287 = vpop.f32.mrf.mxu0
        %v3288 = vadd.f32 %v2256, %v3287
        %3289 = vmatmul.bf16.gmra.mxu0 %v2432
        %v3290 = vpop.f32.mrf.mxu0
        %v3291 = vadd.f32 %v2256, %v3290
        %v3292 = vpop.f32.mrf.mxu0
        %v3293 = vadd.f32 %v2256, %v3292
        %3294 = vmatmul.bf16.gmra.mxu0 %v2435
        %v3295 = vpop.f32.mrf.mxu0
        %v3296 = vadd.f32 %v2256, %v3295
        %v3297 = vpop.f32.mrf.mxu0
        %v3298 = vadd.f32 %v2256, %v3297
        %3299 = vmatmul.bf16.gmra.mxu0 %v2438
        %v3300 = vpop.f32.mrf.mxu0
        %v3301 = vadd.f32 %v2256, %v3300
        %v3302 = vpop.f32.mrf.mxu0
        %v3303 = vadd.f32 %v2256, %v3302
        %3304 = vmatmul.bf16.gmra.mxu0 %v2441
        %v3305 = vpop.f32.mrf.mxu0
        %v3306 = vadd.f32 %v2256, %v3305
        %v3307 = vpop.f32.mrf.mxu0
        %v3308 = vadd.f32 %v2256, %v3307
        %3309 = vmatmul.bf16.gmra.mxu0 %v2444
        %v3310 = vpop.f32.mrf.mxu0
        %v3311 = vadd.f32 %v2256, %v3310
        %v3312 = vpop.f32.mrf.mxu0
        %v3313 = vadd.f32 %v2256, %v3312
        %3314 = vmatmul.bf16.gmra.mxu0 %v2447
        %v3315 = vpop.f32.mrf.mxu0
        %v3316 = vadd.f32 %v2256, %v3315
        %v3317 = vpop.f32.mrf.mxu0
        %v3318 = vadd.f32 %v2256, %v3317
        %3319 = vmatmul.bf16.gmra.mxu0 %v2450
        %v3320 = vpop.f32.mrf.mxu0
        %v3321 = vadd.f32 %v2256, %v3320
        %v3322 = vpop.f32.mrf.mxu0
        %v3323 = vadd.f32 %v2256, %v3322
        %3324 = vmatmul.bf16.gmra.mxu0 %v2453
        %v3325 = vpop.f32.mrf.mxu0
        %v3326 = vadd.f32 %v2256, %v3325
        %v3327 = vpop.f32.mrf.mxu0
        %v3328 = vadd.f32 %v2256, %v3327
        %3329 = vmatmul.bf16.gmra.mxu0 %v2456
        %v3330 = vpop.f32.mrf.mxu0
        %v3331 = vadd.f32 %v2256, %v3330
        %v3332 = vpop.f32.mrf.mxu0
        %v3333 = vadd.f32 %v2256, %v3332
        %3334 = vmatmul.bf16.gmra.mxu0 %v2459
        %v3335 = vpop.f32.mrf.mxu0
        %v3336 = vadd.f32 %v2256, %v3335
        %v3337 = vpop.f32.mrf.mxu0
        %v3338 = vadd.f32 %v2256, %v3337
        %3339 = vmatmul.bf16.gmra.mxu0 %v2462
        %v3340 = vpop.f32.mrf.mxu0
        %v3341 = vadd.f32 %v2256, %v3340
        %v3342 = vpop.f32.mrf.mxu0
        %v3343 = vadd.f32 %v2256, %v3342
        %3344 = vmatmul.bf16.gmra.mxu0 %v2465
        %v3345 = vpop.f32.mrf.mxu0
        %v3346 = vadd.f32 %v2256, %v3345
        %v3347 = vpop.f32.mrf.mxu0
        %v3348 = vadd.f32 %v2256, %v3347
        %3349 = vmatmul.bf16.gmra.mxu0 %v2468
        %v3350 = vpop.f32.mrf.mxu0
        %v3351 = vadd.f32 %v2256, %v3350
        %v3352 = vpop.f32.mrf.mxu0
        %v3353 = vadd.f32 %v2256, %v3352
        %3354 = vdwg.mxu0
        %3355 = vmatpush.bf16.msra.mxu0 %v2868
        %3356 = vmatpush.bf16.msra.mxu0 %v2864
        %3357 = vmatpush.bf16.msra.mxu0 %v2860
        %3358 = vmatpush.bf16.msra.mxu0 %v2856
        %3359 = vmatpush.bf16.msra.mxu0 %v2852
        %3360 = vmatpush.bf16.msra.mxu0 %v2848
        %3361 = vmatpush.bf16.msra.mxu0 %v2844
        %3362 = vmatpush.bf16.msra.mxu0 %v2840
        %3363 = vmatmul.bf16.gmra.mxu0 %v2424
        %v3364 = vpop.f32.mrf.mxu0
        %v3365 = vadd.f32 %v3276, %v3364
        %v3366 = vpop.f32.mrf.mxu0
        %v3367 = vadd.f32 %v3278, %v3366
        %3368 = vmatmul.bf16.gmra.mxu0 %v2427
        %v3369 = vpop.f32.mrf.mxu0
        %v3370 = vadd.f32 %v3281, %v3369
        %v3371 = vpop.f32.mrf.mxu0
        %v3372 = vadd.f32 %v3283, %v3371
        %3373 = vmatmul.bf16.gmra.mxu0 %v2430
        %v3374 = vpop.f32.mrf.mxu0
        %v3375 = vadd.f32 %v3286, %v3374
        %v3376 = vpop.f32.mrf.mxu0
        %v3377 = vadd.f32 %v3288, %v3376
        %3378 = vmatmul.bf16.gmra.mxu0 %v2433
        %v3379 = vpop.f32.mrf.mxu0
        %v3380 = vadd.f32 %v3291, %v3379
        %v3381 = vpop.f32.mrf.mxu0
        %v3382 = vadd.f32 %v3293, %v3381
        %3383 = vmatmul.bf16.gmra.mxu0 %v2436
        %v3384 = vpop.f32.mrf.mxu0
        %v3385 = vadd.f32 %v3296, %v3384
        %v3386 = vpop.f32.mrf.mxu0
        %v3387 = vadd.f32 %v3298, %v3386
        %3388 = vmatmul.bf16.gmra.mxu0 %v2439
        %v3389 = vpop.f32.mrf.mxu0
        %v3390 = vadd.f32 %v3301, %v3389
        %v3391 = vpop.f32.mrf.mxu0
        %v3392 = vadd.f32 %v3303, %v3391
        %3393 = vmatmul.bf16.gmra.mxu0 %v2442
        %v3394 = vpop.f32.mrf.mxu0
        %v3395 = vadd.f32 %v3306, %v3394
        %v3396 = vpop.f32.mrf.mxu0
        %v3397 = vadd.f32 %v3308, %v3396
        %3398 = vmatmul.bf16.gmra.mxu0 %v2445
        %v3399 = vpop.f32.mrf.mxu0
        %v3400 = vadd.f32 %v3311, %v3399
        %v3401 = vpop.f32.mrf.mxu0
        %v3402 = vadd.f32 %v3313, %v3401
        %3403 = vmatmul.bf16.gmra.mxu0 %v2448
        %v3404 = vpop.f32.mrf.mxu0
        %v3405 = vadd.f32 %v3316, %v3404
        %v3406 = vpop.f32.mrf.mxu0
        %v3407 = vadd.f32 %v3318, %v3406
        %3408 = vmatmul.bf16.gmra.mxu0 %v2451
        %v3409 = vpop.f32.mrf.mxu0
        %v3410 = vadd.f32 %v3321, %v3409
        %v3411 = vpop.f32.mrf.mxu0
        %v3412 = vadd.f32 %v3323, %v3411
        %3413 = vmatmul.bf16.gmra.mxu0 %v2454
        %v3414 = vpop.f32.mrf.mxu0
        %v3415 = vadd.f32 %v3326, %v3414
        %v3416 = vpop.f32.mrf.mxu0
        %v3417 = vadd.f32 %v3328, %v3416
        %3418 = vmatmul.bf16.gmra.mxu0 %v2457
        %v3419 = vpop.f32.mrf.mxu0
        %v3420 = vadd.f32 %v3331, %v3419
        %v3421 = vpop.f32.mrf.mxu0
        %v3422 = vadd.f32 %v3333, %v3421
        %3423 = vmatmul.bf16.gmra.mxu0 %v2460
        %v3424 = vpop.f32.mrf.mxu0
        %v3425 = vadd.f32 %v3336, %v3424
        %v3426 = vpop.f32.mrf.mxu0
        %v3427 = vadd.f32 %v3338, %v3426
        %3428 = vmatmul.bf16.gmra.mxu0 %v2463
        %v3429 = vpop.f32.mrf.mxu0
        %v3430 = vadd.f32 %v3341, %v3429
        %v3431 = vpop.f32.mrf.mxu0
        %v3432 = vadd.f32 %v3343, %v3431
        %3433 = vmatmul.bf16.gmra.mxu0 %v2466
        %v3434 = vpop.f32.mrf.mxu0
        %v3435 = vadd.f32 %v3346, %v3434
        %v3436 = vpop.f32.mrf.mxu0
        %v3437 = vadd.f32 %v3348, %v3436
        %3438 = vmatmul.bf16.gmra.mxu0 %v2469
        %v3439 = vpop.f32.mrf.mxu0
        %v3440 = vadd.f32 %v3351, %v3439
        %v3441 = vpop.f32.mrf.mxu0
        %v3442 = vadd.f32 %v3353, %v3441
        %3443 = vdwg.mxu0
        %3444 = vmatpush.bf16.msra.mxu0 %v2900
        %3445 = vmatpush.bf16.msra.mxu0 %v2896
        %3446 = vmatpush.bf16.msra.mxu0 %v2892
        %3447 = vmatpush.bf16.msra.mxu0 %v2888
        %3448 = vmatpush.bf16.msra.mxu0 %v2884
        %3449 = vmatpush.bf16.msra.mxu0 %v2880
        %3450 = vmatpush.bf16.msra.mxu0 %v2876
        %3451 = vmatpush.bf16.msra.mxu0 %v2872
        %3452 = vmatmul.bf16.gmra.mxu0 %v2425
        %v3453 = vpop.f32.mrf.mxu0
        %v3454 = vadd.f32 %v3365, %v3453
        %v3455 = vpop.f32.mrf.mxu0
        %v3456 = vadd.f32 %v3367, %v3455
        %3457 = vmatmul.bf16.gmra.mxu0 %v2428
        %v3458 = vpop.f32.mrf.mxu0
        %v3459 = vadd.f32 %v3370, %v3458
        %v3460 = vpop.f32.mrf.mxu0
        %v3461 = vadd.f32 %v3372, %v3460
        %3462 = vmatmul.bf16.gmra.mxu0 %v2431
        %v3463 = vpop.f32.mrf.mxu0
        %v3464 = vadd.f32 %v3375, %v3463
        %v3465 = vpop.f32.mrf.mxu0
        %v3466 = vadd.f32 %v3377, %v3465
        %3467 = vmatmul.bf16.gmra.mxu0 %v2434
        %v3468 = vpop.f32.mrf.mxu0
        %v3469 = vadd.f32 %v3380, %v3468
        %v3470 = vpop.f32.mrf.mxu0
        %v3471 = vadd.f32 %v3382, %v3470
        %3472 = vmatmul.bf16.gmra.mxu0 %v2437
        %v3473 = vpop.f32.mrf.mxu0
        %v3474 = vadd.f32 %v3385, %v3473
        %v3475 = vpop.f32.mrf.mxu0
        %v3476 = vadd.f32 %v3387, %v3475
        %3477 = vmatmul.bf16.gmra.mxu0 %v2440
        %v3478 = vpop.f32.mrf.mxu0
        %v3479 = vadd.f32 %v3390, %v3478
        %v3480 = vpop.f32.mrf.mxu0
        %v3481 = vadd.f32 %v3392, %v3480
        %3482 = vmatmul.bf16.gmra.mxu0 %v2443
        %v3483 = vpop.f32.mrf.mxu0
        %v3484 = vadd.f32 %v3395, %v3483
        %v3485 = vpop.f32.mrf.mxu0
        %v3486 = vadd.f32 %v3397, %v3485
        %3487 = vmatmul.bf16.gmra.mxu0 %v2446
        %v3488 = vpop.f32.mrf.mxu0
        %v3489 = vadd.f32 %v3400, %v3488
        %v3490 = vpop.f32.mrf.mxu0
        %v3491 = vadd.f32 %v3402, %v3490
        %3492 = vmatmul.bf16.gmra.mxu0 %v2449
        %v3493 = vpop.f32.mrf.mxu0
        %v3494 = vadd.f32 %v3405, %v3493
        %v3495 = vpop.f32.mrf.mxu0
        %v3496 = vadd.f32 %v3407, %v3495
        %3497 = vmatmul.bf16.gmra.mxu0 %v2452
        %v3498 = vpop.f32.mrf.mxu0
        %v3499 = vadd.f32 %v3410, %v3498
        %v3500 = vpop.f32.mrf.mxu0
        %v3501 = vadd.f32 %v3412, %v3500
        %3502 = vmatmul.bf16.gmra.mxu0 %v2455
        %v3503 = vpop.f32.mrf.mxu0
        %v3504 = vadd.f32 %v3415, %v3503
        %v3505 = vpop.f32.mrf.mxu0
        %v3506 = vadd.f32 %v3417, %v3505
        %3507 = vmatmul.bf16.gmra.mxu0 %v2458
        %v3508 = vpop.f32.mrf.mxu0
        %v3509 = vadd.f32 %v3420, %v3508
        %v3510 = vpop.f32.mrf.mxu0
        %v3511 = vadd.f32 %v3422, %v3510
        %3512 = vmatmul.bf16.gmra.mxu0 %v2461
        %v3513 = vpop.f32.mrf.mxu0
        %v3514 = vadd.f32 %v3425, %v3513
        %v3515 = vpop.f32.mrf.mxu0
        %v3516 = vadd.f32 %v3427, %v3515
        %3517 = vmatmul.bf16.gmra.mxu0 %v2464
        %v3518 = vpop.f32.mrf.mxu0
        %v3519 = vadd.f32 %v3430, %v3518
        %v3520 = vpop.f32.mrf.mxu0
        %v3521 = vadd.f32 %v3432, %v3520
        %3522 = vmatmul.bf16.gmra.mxu0 %v2467
        %v3523 = vpop.f32.mrf.mxu0
        %v3524 = vadd.f32 %v3435, %v3523
        %v3525 = vpop.f32.mrf.mxu0
        %v3526 = vadd.f32 %v3437, %v3525
        %3527 = vmatmul.bf16.gmra.mxu0 %v2470
        %v3528 = vpop.f32.mrf.mxu0
        %v3529 = vadd.f32 %v3440, %v3528
        %v3530 = vpop.f32.mrf.mxu0
        %v3531 = vadd.f32 %v3442, %v3530
        %3532 = vdwg.mxu0
        %3533 = vmatpush.bf16.msra.mxu0 %v2837
        %3534 = vmatpush.bf16.msra.mxu0 %v2833
        %3535 = vmatpush.bf16.msra.mxu0 %v2829
        %3536 = vmatpush.bf16.msra.mxu0 %v2825
        %3537 = vmatpush.bf16.msra.mxu0 %v2821
        %3538 = vmatpush.bf16.msra.mxu0 %v2817
        %3539 = vmatpush.bf16.msra.mxu0 %v2813
        %3540 = vmatpush.bf16.msra.mxu0 %v2809
        %3541 = vmatmul.bf16.gmra.mxu0 %v2423
        %v3542 = vpop.f32.mrf.mxu0
        %v3543 = vadd.f32 %v2257, %v3542
        %v3544 = vpop.f32.mrf.mxu0
        %v3545 = vadd.f32 %v2257, %v3544
        %3546 = vmatmul.bf16.gmra.mxu0 %v2426
        %v3547 = vpop.f32.mrf.mxu0
        %v3548 = vadd.f32 %v2257, %v3547
        %v3549 = vpop.f32.mrf.mxu0
        %v3550 = vadd.f32 %v2257, %v3549
        %3551 = vmatmul.bf16.gmra.mxu0 %v2429
        %v3552 = vpop.f32.mrf.mxu0
        %v3553 = vadd.f32 %v2257, %v3552
        %v3554 = vpop.f32.mrf.mxu0
        %v3555 = vadd.f32 %v2257, %v3554
        %3556 = vmatmul.bf16.gmra.mxu0 %v2432
        %v3557 = vpop.f32.mrf.mxu0
        %v3558 = vadd.f32 %v2257, %v3557
        %v3559 = vpop.f32.mrf.mxu0
        %v3560 = vadd.f32 %v2257, %v3559
        %3561 = vmatmul.bf16.gmra.mxu0 %v2435
        %v3562 = vpop.f32.mrf.mxu0
        %v3563 = vadd.f32 %v2257, %v3562
        %v3564 = vpop.f32.mrf.mxu0
        %v3565 = vadd.f32 %v2257, %v3564
        %3566 = vmatmul.bf16.gmra.mxu0 %v2438
        %v3567 = vpop.f32.mrf.mxu0
        %v3568 = vadd.f32 %v2257, %v3567
        %v3569 = vpop.f32.mrf.mxu0
        %v3570 = vadd.f32 %v2257, %v3569
        %3571 = vmatmul.bf16.gmra.mxu0 %v2441
        %v3572 = vpop.f32.mrf.mxu0
        %v3573 = vadd.f32 %v2257, %v3572
        %v3574 = vpop.f32.mrf.mxu0
        %v3575 = vadd.f32 %v2257, %v3574
        %3576 = vmatmul.bf16.gmra.mxu0 %v2444
        %v3577 = vpop.f32.mrf.mxu0
        %v3578 = vadd.f32 %v2257, %v3577
        %v3579 = vpop.f32.mrf.mxu0
        %v3580 = vadd.f32 %v2257, %v3579
        %3581 = vmatmul.bf16.gmra.mxu0 %v2447
        %v3582 = vpop.f32.mrf.mxu0
        %v3583 = vadd.f32 %v2257, %v3582
        %v3584 = vpop.f32.mrf.mxu0
        %v3585 = vadd.f32 %v2257, %v3584
        %3586 = vmatmul.bf16.gmra.mxu0 %v2450
        %v3587 = vpop.f32.mrf.mxu0
        %v3588 = vadd.f32 %v2257, %v3587
        %v3589 = vpop.f32.mrf.mxu0
        %v3590 = vadd.f32 %v2257, %v3589
        %3591 = vmatmul.bf16.gmra.mxu0 %v2453
        %v3592 = vpop.f32.mrf.mxu0
        %v3593 = vadd.f32 %v2257, %v3592
        %v3594 = vpop.f32.mrf.mxu0
        %v3595 = vadd.f32 %v2257, %v3594
        %3596 = vmatmul.bf16.gmra.mxu0 %v2456
        %v3597 = vpop.f32.mrf.mxu0
        %v3598 = vadd.f32 %v2257, %v3597
        %v3599 = vpop.f32.mrf.mxu0
        %v3600 = vadd.f32 %v2257, %v3599
        %3601 = vmatmul.bf16.gmra.mxu0 %v2459
        %v3602 = vpop.f32.mrf.mxu0
        %v3603 = vadd.f32 %v2257, %v3602
        %v3604 = vpop.f32.mrf.mxu0
        %v3605 = vadd.f32 %v2257, %v3604
        %3606 = vmatmul.bf16.gmra.mxu0 %v2462
        %v3607 = vpop.f32.mrf.mxu0
        %v3608 = vadd.f32 %v2257, %v3607
        %v3609 = vpop.f32.mrf.mxu0
        %v3610 = vadd.f32 %v2257, %v3609
        %3611 = vmatmul.bf16.gmra.mxu0 %v2465
        %v3612 = vpop.f32.mrf.mxu0
        %v3613 = vadd.f32 %v2257, %v3612
        %v3614 = vpop.f32.mrf.mxu0
        %v3615 = vadd.f32 %v2257, %v3614
        %3616 = vmatmul.bf16.gmra.mxu0 %v2468
        %v3617 = vpop.f32.mrf.mxu0
        %v3618 = vadd.f32 %v2257, %v3617
        %v3619 = vpop.f32.mrf.mxu0
        %v3620 = vadd.f32 %v2257, %v3619
        %3621 = vdwg.mxu0
        %3622 = vmatpush.bf16.msra.mxu0 %v2869
        %3623 = vmatpush.bf16.msra.mxu0 %v2865
        %3624 = vmatpush.bf16.msra.mxu0 %v2861
        %3625 = vmatpush.bf16.msra.mxu0 %v2857
        %3626 = vmatpush.bf16.msra.mxu0 %v2853
        %3627 = vmatpush.bf16.msra.mxu0 %v2849
        %3628 = vmatpush.bf16.msra.mxu0 %v2845
        %3629 = vmatpush.bf16.msra.mxu0 %v2841
        %3630 = vmatmul.bf16.gmra.mxu0 %v2424
        %v3631 = vpop.f32.mrf.mxu0
        %v3632 = vadd.f32 %v3543, %v3631
        %v3633 = vpop.f32.mrf.mxu0
        %v3634 = vadd.f32 %v3545, %v3633
        %3635 = vmatmul.bf16.gmra.mxu0 %v2427
        %v3636 = vpop.f32.mrf.mxu0
        %v3637 = vadd.f32 %v3548, %v3636
        %v3638 = vpop.f32.mrf.mxu0
        %v3639 = vadd.f32 %v3550, %v3638
        %3640 = vmatmul.bf16.gmra.mxu0 %v2430
        %v3641 = vpop.f32.mrf.mxu0
        %v3642 = vadd.f32 %v3553, %v3641
        %v3643 = vpop.f32.mrf.mxu0
        %v3644 = vadd.f32 %v3555, %v3643
        %3645 = vmatmul.bf16.gmra.mxu0 %v2433
        %v3646 = vpop.f32.mrf.mxu0
        %v3647 = vadd.f32 %v3558, %v3646
        %v3648 = vpop.f32.mrf.mxu0
        %v3649 = vadd.f32 %v3560, %v3648
        %3650 = vmatmul.bf16.gmra.mxu0 %v2436
        %v3651 = vpop.f32.mrf.mxu0
        %v3652 = vadd.f32 %v3563, %v3651
        %v3653 = vpop.f32.mrf.mxu0
        %v3654 = vadd.f32 %v3565, %v3653
        %3655 = vmatmul.bf16.gmra.mxu0 %v2439
        %v3656 = vpop.f32.mrf.mxu0
        %v3657 = vadd.f32 %v3568, %v3656
        %v3658 = vpop.f32.mrf.mxu0
        %v3659 = vadd.f32 %v3570, %v3658
        %3660 = vmatmul.bf16.gmra.mxu0 %v2442
        %v3661 = vpop.f32.mrf.mxu0
        %v3662 = vadd.f32 %v3573, %v3661
        %v3663 = vpop.f32.mrf.mxu0
        %v3664 = vadd.f32 %v3575, %v3663
        %3665 = vmatmul.bf16.gmra.mxu0 %v2445
        %v3666 = vpop.f32.mrf.mxu0
        %v3667 = vadd.f32 %v3578, %v3666
        %v3668 = vpop.f32.mrf.mxu0
        %v3669 = vadd.f32 %v3580, %v3668
        %3670 = vmatmul.bf16.gmra.mxu0 %v2448
        %v3671 = vpop.f32.mrf.mxu0
        %v3672 = vadd.f32 %v3583, %v3671
        %v3673 = vpop.f32.mrf.mxu0
        %v3674 = vadd.f32 %v3585, %v3673
        %3675 = vmatmul.bf16.gmra.mxu0 %v2451
        %v3676 = vpop.f32.mrf.mxu0
        %v3677 = vadd.f32 %v3588, %v3676
        %v3678 = vpop.f32.mrf.mxu0
        %v3679 = vadd.f32 %v3590, %v3678
        %3680 = vmatmul.bf16.gmra.mxu0 %v2454
        %v3681 = vpop.f32.mrf.mxu0
        %v3682 = vadd.f32 %v3593, %v3681
        %v3683 = vpop.f32.mrf.mxu0
        %v3684 = vadd.f32 %v3595, %v3683
        %3685 = vmatmul.bf16.gmra.mxu0 %v2457
        %v3686 = vpop.f32.mrf.mxu0
        %v3687 = vadd.f32 %v3598, %v3686
        %v3688 = vpop.f32.mrf.mxu0
        %v3689 = vadd.f32 %v3600, %v3688
        %3690 = vmatmul.bf16.gmra.mxu0 %v2460
        %v3691 = vpop.f32.mrf.mxu0
        %v3692 = vadd.f32 %v3603, %v3691
        %v3693 = vpop.f32.mrf.mxu0
        %v3694 = vadd.f32 %v3605, %v3693
        %3695 = vmatmul.bf16.gmra.mxu0 %v2463
        %v3696 = vpop.f32.mrf.mxu0
        %v3697 = vadd.f32 %v3608, %v3696
        %v3698 = vpop.f32.mrf.mxu0
        %v3699 = vadd.f32 %v3610, %v3698
        %3700 = vmatmul.bf16.gmra.mxu0 %v2466
        %v3701 = vpop.f32.mrf.mxu0
        %v3702 = vadd.f32 %v3613, %v3701
        %v3703 = vpop.f32.mrf.mxu0
        %v3704 = vadd.f32 %v3615, %v3703
        %3705 = vmatmul.bf16.gmra.mxu0 %v2469
        %v3706 = vpop.f32.mrf.mxu0
        %v3707 = vadd.f32 %v3618, %v3706
        %v3708 = vpop.f32.mrf.mxu0
        %v3709 = vadd.f32 %v3620, %v3708
        %3710 = vdwg.mxu0
        %3711 = vmatpush.bf16.msra.mxu0 %v2901
        %3712 = vmatpush.bf16.msra.mxu0 %v2897
        %3713 = vmatpush.bf16.msra.mxu0 %v2893
        %3714 = vmatpush.bf16.msra.mxu0 %v2889
        %3715 = vmatpush.bf16.msra.mxu0 %v2885
        %3716 = vmatpush.bf16.msra.mxu0 %v2881
        %3717 = vmatpush.bf16.msra.mxu0 %v2877
        %3718 = vmatpush.bf16.msra.mxu0 %v2873
        %3719 = vmatmul.bf16.gmra.mxu0 %v2425
        %v3720 = vpop.f32.mrf.mxu0
        %v3721 = vadd.f32 %v3632, %v3720
        %v3722 = vpop.f32.mrf.mxu0
        %v3723 = vadd.f32 %v3634, %v3722
        %3724 = vmatmul.bf16.gmra.mxu0 %v2428
        %v3725 = vpop.f32.mrf.mxu0
        %v3726 = vadd.f32 %v3637, %v3725
        %v3727 = vpop.f32.mrf.mxu0
        %v3728 = vadd.f32 %v3639, %v3727
        %3729 = vmatmul.bf16.gmra.mxu0 %v2431
        %v3730 = vpop.f32.mrf.mxu0
        %v3731 = vadd.f32 %v3642, %v3730
        %v3732 = vpop.f32.mrf.mxu0
        %v3733 = vadd.f32 %v3644, %v3732
        %3734 = vmatmul.bf16.gmra.mxu0 %v2434
        %v3735 = vpop.f32.mrf.mxu0
        %v3736 = vadd.f32 %v3647, %v3735
        %v3737 = vpop.f32.mrf.mxu0
        %v3738 = vadd.f32 %v3649, %v3737
        %3739 = vmatmul.bf16.gmra.mxu0 %v2437
        %v3740 = vpop.f32.mrf.mxu0
        %v3741 = vadd.f32 %v3652, %v3740
        %v3742 = vpop.f32.mrf.mxu0
        %v3743 = vadd.f32 %v3654, %v3742
        %3744 = vmatmul.bf16.gmra.mxu0 %v2440
        %v3745 = vpop.f32.mrf.mxu0
        %v3746 = vadd.f32 %v3657, %v3745
        %v3747 = vpop.f32.mrf.mxu0
        %v3748 = vadd.f32 %v3659, %v3747
        %3749 = vmatmul.bf16.gmra.mxu0 %v2443
        %v3750 = vpop.f32.mrf.mxu0
        %v3751 = vadd.f32 %v3662, %v3750
        %v3752 = vpop.f32.mrf.mxu0
        %v3753 = vadd.f32 %v3664, %v3752
        %3754 = vmatmul.bf16.gmra.mxu0 %v2446
        %v3755 = vpop.f32.mrf.mxu0
        %v3756 = vadd.f32 %v3667, %v3755
        %v3757 = vpop.f32.mrf.mxu0
        %v3758 = vadd.f32 %v3669, %v3757
        %3759 = vmatmul.bf16.gmra.mxu0 %v2449
        %v3760 = vpop.f32.mrf.mxu0
        %v3761 = vadd.f32 %v3672, %v3760
        %v3762 = vpop.f32.mrf.mxu0
        %v3763 = vadd.f32 %v3674, %v3762
        %3764 = vmatmul.bf16.gmra.mxu0 %v2452
        %v3765 = vpop.f32.mrf.mxu0
        %v3766 = vadd.f32 %v3677, %v3765
        %v3767 = vpop.f32.mrf.mxu0
        %v3768 = vadd.f32 %v3679, %v3767
        %3769 = vmatmul.bf16.gmra.mxu0 %v2455
        %v3770 = vpop.f32.mrf.mxu0
        %v3771 = vadd.f32 %v3682, %v3770
        %v3772 = vpop.f32.mrf.mxu0
        %v3773 = vadd.f32 %v3684, %v3772
        %3774 = vmatmul.bf16.gmra.mxu0 %v2458
        %v3775 = vpop.f32.mrf.mxu0
        %v3776 = vadd.f32 %v3687, %v3775
        %v3777 = vpop.f32.mrf.mxu0
        %v3778 = vadd.f32 %v3689, %v3777
        %3779 = vmatmul.bf16.gmra.mxu0 %v2461
        %v3780 = vpop.f32.mrf.mxu0
        %v3781 = vadd.f32 %v3692, %v3780
        %v3782 = vpop.f32.mrf.mxu0
        %v3783 = vadd.f32 %v3694, %v3782
        %3784 = vmatmul.bf16.gmra.mxu0 %v2464
        %v3785 = vpop.f32.mrf.mxu0
        %v3786 = vadd.f32 %v3697, %v3785
        %v3787 = vpop.f32.mrf.mxu0
        %v3788 = vadd.f32 %v3699, %v3787
        %3789 = vmatmul.bf16.gmra.mxu0 %v2467
        %v3790 = vpop.f32.mrf.mxu0
        %v3791 = vadd.f32 %v3702, %v3790
        %v3792 = vpop.f32.mrf.mxu0
        %v3793 = vadd.f32 %v3704, %v3792
        %3794 = vmatmul.bf16.gmra.mxu0 %v2470
        %v3795 = vpop.f32.mrf.mxu0
        %v3796 = vadd.f32 %v3707, %v3795
        %v3797 = vpop.f32.mrf.mxu0
        %v3798 = vadd.f32 %v3709, %v3797
        %3799 = vdwg.mxu0
        %3800 = vmatpush.bf16.msra.mxu0 %v2838
        %3801 = vmatpush.bf16.msra.mxu0 %v2834
        %3802 = vmatpush.bf16.msra.mxu0 %v2830
        %3803 = vmatpush.bf16.msra.mxu0 %v2826
        %3804 = vmatpush.bf16.msra.mxu0 %v2822
        %3805 = vmatpush.bf16.msra.mxu0 %v2818
        %3806 = vmatpush.bf16.msra.mxu0 %v2814
        %3807 = vmatpush.bf16.msra.mxu0 %v2810
        %3808 = vmatmul.bf16.gmra.mxu0 %v2423
        %v3809 = vpop.f32.mrf.mxu0
        %v3810 = vadd.f32 %v2258, %v3809
        %v3811 = vpop.f32.mrf.mxu0
        %v3812 = vadd.f32 %v2258, %v3811
        %3813 = vmatmul.bf16.gmra.mxu0 %v2426
        %v3814 = vpop.f32.mrf.mxu0
        %v3815 = vadd.f32 %v2258, %v3814
        %v3816 = vpop.f32.mrf.mxu0
        %v3817 = vadd.f32 %v2258, %v3816
        %3818 = vmatmul.bf16.gmra.mxu0 %v2429
        %v3819 = vpop.f32.mrf.mxu0
        %v3820 = vadd.f32 %v2258, %v3819
        %v3821 = vpop.f32.mrf.mxu0
        %v3822 = vadd.f32 %v2258, %v3821
        %3823 = vmatmul.bf16.gmra.mxu0 %v2432
        %v3824 = vpop.f32.mrf.mxu0
        %v3825 = vadd.f32 %v2258, %v3824
        %v3826 = vpop.f32.mrf.mxu0
        %v3827 = vadd.f32 %v2258, %v3826
        %3828 = vmatmul.bf16.gmra.mxu0 %v2435
        %v3829 = vpop.f32.mrf.mxu0
        %v3830 = vadd.f32 %v2258, %v3829
        %v3831 = vpop.f32.mrf.mxu0
        %v3832 = vadd.f32 %v2258, %v3831
        %3833 = vmatmul.bf16.gmra.mxu0 %v2438
        %v3834 = vpop.f32.mrf.mxu0
        %v3835 = vadd.f32 %v2258, %v3834
        %v3836 = vpop.f32.mrf.mxu0
        %v3837 = vadd.f32 %v2258, %v3836
        %3838 = vmatmul.bf16.gmra.mxu0 %v2441
        %v3839 = vpop.f32.mrf.mxu0
        %v3840 = vadd.f32 %v2258, %v3839
        %v3841 = vpop.f32.mrf.mxu0
        %v3842 = vadd.f32 %v2258, %v3841
        %3843 = vmatmul.bf16.gmra.mxu0 %v2444
        %v3844 = vpop.f32.mrf.mxu0
        %v3845 = vadd.f32 %v2258, %v3844
        %v3846 = vpop.f32.mrf.mxu0
        %v3847 = vadd.f32 %v2258, %v3846
        %3848 = vmatmul.bf16.gmra.mxu0 %v2447
        %v3849 = vpop.f32.mrf.mxu0
        %v3850 = vadd.f32 %v2258, %v3849
        %v3851 = vpop.f32.mrf.mxu0
        %v3852 = vadd.f32 %v2258, %v3851
        %3853 = vmatmul.bf16.gmra.mxu0 %v2450
        %v3854 = vpop.f32.mrf.mxu0
        %v3855 = vadd.f32 %v2258, %v3854
        %v3856 = vpop.f32.mrf.mxu0
        %v3857 = vadd.f32 %v2258, %v3856
        %3858 = vmatmul.bf16.gmra.mxu0 %v2453
        %v3859 = vpop.f32.mrf.mxu0
        %v3860 = vadd.f32 %v2258, %v3859
        %v3861 = vpop.f32.mrf.mxu0
        %v3862 = vadd.f32 %v2258, %v3861
        %3863 = vmatmul.bf16.gmra.mxu0 %v2456
        %v3864 = vpop.f32.mrf.mxu0
        %v3865 = vadd.f32 %v2258, %v3864
        %v3866 = vpop.f32.mrf.mxu0
        %v3867 = vadd.f32 %v2258, %v3866
        %3868 = vmatmul.bf16.gmra.mxu0 %v2459
        %v3869 = vpop.f32.mrf.mxu0
        %v3870 = vadd.f32 %v2258, %v3869
        %v3871 = vpop.f32.mrf.mxu0
        %v3872 = vadd.f32 %v2258, %v3871
        %3873 = vmatmul.bf16.gmra.mxu0 %v2462
        %v3874 = vpop.f32.mrf.mxu0
        %v3875 = vadd.f32 %v2258, %v3874
        %v3876 = vpop.f32.mrf.mxu0
        %v3877 = vadd.f32 %v2258, %v3876
        %3878 = vmatmul.bf16.gmra.mxu0 %v2465
        %v3879 = vpop.f32.mrf.mxu0
        %v3880 = vadd.f32 %v2258, %v3879
        %v3881 = vpop.f32.mrf.mxu0
        %v3882 = vadd.f32 %v2258, %v3881
        %3883 = vmatmul.bf16.gmra.mxu0 %v2468
        %v3884 = vpop.f32.mrf.mxu0
        %v3885 = vadd.f32 %v2258, %v3884
        %v3886 = vpop.f32.mrf.mxu0
        %v3887 = vadd.f32 %v2258, %v3886
        %3888 = vdwg.mxu0
        %3889 = vmatpush.bf16.msra.mxu0 %v2870
        %3890 = vmatpush.bf16.msra.mxu0 %v2866
        %3891 = vmatpush.bf16.msra.mxu0 %v2862
        %3892 = vmatpush.bf16.msra.mxu0 %v2858
        %3893 = vmatpush.bf16.msra.mxu0 %v2854
        %3894 = vmatpush.bf16.msra.mxu0 %v2850
        %3895 = vmatpush.bf16.msra.mxu0 %v2846
        %3896 = vmatpush.bf16.msra.mxu0 %v2842
        %3897 = vmatmul.bf16.gmra.mxu0 %v2424
        %v3898 = vpop.f32.mrf.mxu0
        %v3899 = vadd.f32 %v3810, %v3898
        %v3900 = vpop.f32.mrf.mxu0
        %v3901 = vadd.f32 %v3812, %v3900
        %3902 = vmatmul.bf16.gmra.mxu0 %v2427
        %v3903 = vpop.f32.mrf.mxu0
        %v3904 = vadd.f32 %v3815, %v3903
        %v3905 = vpop.f32.mrf.mxu0
        %v3906 = vadd.f32 %v3817, %v3905
        %3907 = vmatmul.bf16.gmra.mxu0 %v2430
        %v3908 = vpop.f32.mrf.mxu0
        %v3909 = vadd.f32 %v3820, %v3908
        %v3910 = vpop.f32.mrf.mxu0
        %v3911 = vadd.f32 %v3822, %v3910
        %3912 = vmatmul.bf16.gmra.mxu0 %v2433
        %v3913 = vpop.f32.mrf.mxu0
        %v3914 = vadd.f32 %v3825, %v3913
        %v3915 = vpop.f32.mrf.mxu0
        %v3916 = vadd.f32 %v3827, %v3915
        %3917 = vmatmul.bf16.gmra.mxu0 %v2436
        %v3918 = vpop.f32.mrf.mxu0
        %v3919 = vadd.f32 %v3830, %v3918
        %v3920 = vpop.f32.mrf.mxu0
        %v3921 = vadd.f32 %v3832, %v3920
        %3922 = vmatmul.bf16.gmra.mxu0 %v2439
        %v3923 = vpop.f32.mrf.mxu0
        %v3924 = vadd.f32 %v3835, %v3923
        %v3925 = vpop.f32.mrf.mxu0
        %v3926 = vadd.f32 %v3837, %v3925
        %3927 = vmatmul.bf16.gmra.mxu0 %v2442
        %v3928 = vpop.f32.mrf.mxu0
        %v3929 = vadd.f32 %v3840, %v3928
        %v3930 = vpop.f32.mrf.mxu0
        %v3931 = vadd.f32 %v3842, %v3930
        %3932 = vmatmul.bf16.gmra.mxu0 %v2445
        %v3933 = vpop.f32.mrf.mxu0
        %v3934 = vadd.f32 %v3845, %v3933
        %v3935 = vpop.f32.mrf.mxu0
        %v3936 = vadd.f32 %v3847, %v3935
        %3937 = vmatmul.bf16.gmra.mxu0 %v2448
        %v3938 = vpop.f32.mrf.mxu0
        %v3939 = vadd.f32 %v3850, %v3938
        %v3940 = vpop.f32.mrf.mxu0
        %v3941 = vadd.f32 %v3852, %v3940
        %3942 = vmatmul.bf16.gmra.mxu0 %v2451
        %v3943 = vpop.f32.mrf.mxu0
        %v3944 = vadd.f32 %v3855, %v3943
        %v3945 = vpop.f32.mrf.mxu0
        %v3946 = vadd.f32 %v3857, %v3945
        %3947 = vmatmul.bf16.gmra.mxu0 %v2454
        %v3948 = vpop.f32.mrf.mxu0
        %v3949 = vadd.f32 %v3860, %v3948
        %v3950 = vpop.f32.mrf.mxu0
        %v3951 = vadd.f32 %v3862, %v3950
        %3952 = vmatmul.bf16.gmra.mxu0 %v2457
        %v3953 = vpop.f32.mrf.mxu0
        %v3954 = vadd.f32 %v3865, %v3953
        %v3955 = vpop.f32.mrf.mxu0
        %v3956 = vadd.f32 %v3867, %v3955
        %3957 = vmatmul.bf16.gmra.mxu0 %v2460
        %v3958 = vpop.f32.mrf.mxu0
        %v3959 = vadd.f32 %v3870, %v3958
        %v3960 = vpop.f32.mrf.mxu0
        %v3961 = vadd.f32 %v3872, %v3960
        %3962 = vmatmul.bf16.gmra.mxu0 %v2463
        %v3963 = vpop.f32.mrf.mxu0
        %v3964 = vadd.f32 %v3875, %v3963
        %v3965 = vpop.f32.mrf.mxu0
        %v3966 = vadd.f32 %v3877, %v3965
        %3967 = vmatmul.bf16.gmra.mxu0 %v2466
        %v3968 = vpop.f32.mrf.mxu0
        %v3969 = vadd.f32 %v3880, %v3968
        %v3970 = vpop.f32.mrf.mxu0
        %v3971 = vadd.f32 %v3882, %v3970
        %3972 = vmatmul.bf16.gmra.mxu0 %v2469
        %v3973 = vpop.f32.mrf.mxu0
        %v3974 = vadd.f32 %v3885, %v3973
        %v3975 = vpop.f32.mrf.mxu0
        %v3976 = vadd.f32 %v3887, %v3975
        %3977 = vdwg.mxu0
        %3978 = vmatpush.bf16.msra.mxu0 %v2902
        %3979 = vmatpush.bf16.msra.mxu0 %v2898
        %3980 = vmatpush.bf16.msra.mxu0 %v2894
        %3981 = vmatpush.bf16.msra.mxu0 %v2890
        %3982 = vmatpush.bf16.msra.mxu0 %v2886
        %3983 = vmatpush.bf16.msra.mxu0 %v2882
        %3984 = vmatpush.bf16.msra.mxu0 %v2878
        %3985 = vmatpush.bf16.msra.mxu0 %v2874
        %3986 = vmatmul.bf16.gmra.mxu0 %v2425
        %v3987 = vpop.f32.mrf.mxu0
        %v3988 = vadd.f32 %v3899, %v3987
        %v3989 = vpop.f32.mrf.mxu0
        %v3990 = vadd.f32 %v3901, %v3989
        %3991 = vmatmul.bf16.gmra.mxu0 %v2428
        %v3992 = vpop.f32.mrf.mxu0
        %v3993 = vadd.f32 %v3904, %v3992
        %v3994 = vpop.f32.mrf.mxu0
        %v3995 = vadd.f32 %v3906, %v3994
        %3996 = vmatmul.bf16.gmra.mxu0 %v2431
        %v3997 = vpop.f32.mrf.mxu0
        %v3998 = vadd.f32 %v3909, %v3997
        %v3999 = vpop.f32.mrf.mxu0
        %v4000 = vadd.f32 %v3911, %v3999
        %4001 = vmatmul.bf16.gmra.mxu0 %v2434
        %v4002 = vpop.f32.mrf.mxu0
        %v4003 = vadd.f32 %v3914, %v4002
        %v4004 = vpop.f32.mrf.mxu0
        %v4005 = vadd.f32 %v3916, %v4004
        %4006 = vmatmul.bf16.gmra.mxu0 %v2437
        %v4007 = vpop.f32.mrf.mxu0
        %v4008 = vadd.f32 %v3919, %v4007
        %v4009 = vpop.f32.mrf.mxu0
        %v4010 = vadd.f32 %v3921, %v4009
        %4011 = vmatmul.bf16.gmra.mxu0 %v2440
        %v4012 = vpop.f32.mrf.mxu0
        %v4013 = vadd.f32 %v3924, %v4012
        %v4014 = vpop.f32.mrf.mxu0
        %v4015 = vadd.f32 %v3926, %v4014
        %4016 = vmatmul.bf16.gmra.mxu0 %v2443
        %v4017 = vpop.f32.mrf.mxu0
        %v4018 = vadd.f32 %v3929, %v4017
        %v4019 = vpop.f32.mrf.mxu0
        %v4020 = vadd.f32 %v3931, %v4019
        %4021 = vmatmul.bf16.gmra.mxu0 %v2446
        %v4022 = vpop.f32.mrf.mxu0
        %v4023 = vadd.f32 %v3934, %v4022
        %v4024 = vpop.f32.mrf.mxu0
        %v4025 = vadd.f32 %v3936, %v4024
        %4026 = vmatmul.bf16.gmra.mxu0 %v2449
        %v4027 = vpop.f32.mrf.mxu0
        %v4028 = vadd.f32 %v3939, %v4027
        %v4029 = vpop.f32.mrf.mxu0
        %v4030 = vadd.f32 %v3941, %v4029
        %4031 = vmatmul.bf16.gmra.mxu0 %v2452
        %v4032 = vpop.f32.mrf.mxu0
        %v4033 = vadd.f32 %v3944, %v4032
        %v4034 = vpop.f32.mrf.mxu0
        %v4035 = vadd.f32 %v3946, %v4034
        %4036 = vmatmul.bf16.gmra.mxu0 %v2455
        %v4037 = vpop.f32.mrf.mxu0
        %v4038 = vadd.f32 %v3949, %v4037
        %v4039 = vpop.f32.mrf.mxu0
        %v4040 = vadd.f32 %v3951, %v4039
        %4041 = vmatmul.bf16.gmra.mxu0 %v2458
        %v4042 = vpop.f32.mrf.mxu0
        %v4043 = vadd.f32 %v3954, %v4042
        %v4044 = vpop.f32.mrf.mxu0
        %v4045 = vadd.f32 %v3956, %v4044
        %4046 = vmatmul.bf16.gmra.mxu0 %v2461
        %v4047 = vpop.f32.mrf.mxu0
        %v4048 = vadd.f32 %v3959, %v4047
        %v4049 = vpop.f32.mrf.mxu0
        %v4050 = vadd.f32 %v3961, %v4049
        %4051 = vmatmul.bf16.gmra.mxu0 %v2464
        %v4052 = vpop.f32.mrf.mxu0
        %v4053 = vadd.f32 %v3964, %v4052
        %v4054 = vpop.f32.mrf.mxu0
        %v4055 = vadd.f32 %v3966, %v4054
        %4056 = vmatmul.bf16.gmra.mxu0 %v2467
        %v4057 = vpop.f32.mrf.mxu0
        %v4058 = vadd.f32 %v3969, %v4057
        %v4059 = vpop.f32.mrf.mxu0
        %v4060 = vadd.f32 %v3971, %v4059
        %4061 = vmatmul.bf16.gmra.mxu0 %v2470
        %v4062 = vpop.f32.mrf.mxu0
        %v4063 = vadd.f32 %v3974, %v4062
        %v4064 = vpop.f32.mrf.mxu0
        %v4065 = vadd.f32 %v3976, %v4064
        %4066 = vdwg.mxu0
        %v4067 = vmul.f32 %v3187, 0.5
        %v4068 = vmul.f32 %v3189, 0.5
        %v4069 = vmul.f32 %v3192, 0.5
        %v4070 = vmul.f32 %v3194, 0.5
        %v4071 = vmul.f32 %v3197, 0.5
        %v4072 = vmul.f32 %v3199, 0.5
        %v4073 = vmul.f32 %v3202, 0.5
        %v4074 = vmul.f32 %v3204, 0.5
        %v4075 = vmul.f32 %v3207, 0.5
        %v4076 = vmul.f32 %v3209, 0.5
        %v4077 = vmul.f32 %v3212, 0.5
        %v4078 = vmul.f32 %v3214, 0.5
        %v4079 = vmul.f32 %v3217, 0.5
        %v4080 = vmul.f32 %v3219, 0.5
        %v4081 = vmul.f32 %v3222, 0.5
        %v4082 = vmul.f32 %v3224, 0.5
        %v4083 = vmul.f32 %v3227, 0.5
        %v4084 = vmul.f32 %v3229, 0.5
        %v4085 = vmul.f32 %v3232, 0.5
        %v4086 = vmul.f32 %v3234, 0.5
        %v4087 = vmul.f32 %v3237, 0.5
        %v4088 = vmul.f32 %v3239, 0.5
        %v4089 = vmul.f32 %v3242, 0.5
        %v4090 = vmul.f32 %v3244, 0.5
        %v4091 = vmul.f32 %v3247, 0.5
        %v4092 = vmul.f32 %v3249, 0.5
        %v4093 = vmul.f32 %v3252, 0.5
        %v4094 = vmul.f32 %v3254, 0.5
        %v4095 = vmul.f32 %v3257, 0.5
        %v4096 = vmul.f32 %v3259, 0.5
        %v4097 = vmul.f32 %v3262, 0.5
        %v4098 = vmul.f32 %v3264, 0.5
        %v4099 = vtanh.pop %v4067
        %v4100 = vtanh.pop %v4068
        %v4101 = vtanh.pop %v4069
        %v4102 = vtanh.pop %v4070
        %v4103 = vtanh.pop %v4071
        %v4104 = vtanh.pop %v4072
        %v4105 = vtanh.pop %v4073
        %v4106 = vtanh.pop %v4074
        %v4107 = vtanh.pop %v4075
        %v4108 = vtanh.pop %v4076
        %v4109 = vtanh.pop %v4077
        %v4110 = vtanh.pop %v4078
        %v4111 = vtanh.pop %v4079
        %v4112 = vtanh.pop %v4080
        %v4113 = vtanh.pop %v4081
        %v4114 = vtanh.pop %v4082
        %v4115 = vtanh.pop %v4083
        %v4116 = vtanh.pop %v4084
        %v4117 = vtanh.pop %v4085
        %v4118 = vtanh.pop %v4086
        %v4119 = vtanh.pop %v4087
        %v4120 = vtanh.pop %v4088
        %v4121 = vtanh.pop %v4089
        %v4122 = vtanh.pop %v4090
        %v4123 = vtanh.pop %v4091
        %v4124 = vtanh.pop %v4092
        %v4125 = vtanh.pop %v4093
        %v4126 = vtanh.pop %v4094
        %v4127 = vtanh.pop %v4095
        %v4128 = vtanh.pop %v4096
        %v4129 = vtanh.pop %v4097
        %v4130 = vtanh.pop %v4098
        %v4131 = vadd.f32 %v4099, 1.0
        %v4132 = vadd.f32 %v4100, 1.0
        %v4133 = vadd.f32 %v4101, 1.0
        %v4134 = vadd.f32 %v4102, 1.0
        %v4135 = vadd.f32 %v4103, 1.0
        %v4136 = vadd.f32 %v4104, 1.0
        %v4137 = vadd.f32 %v4105, 1.0
        %v4138 = vadd.f32 %v4106, 1.0
        %v4139 = vadd.f32 %v4107, 1.0
        %v4140 = vadd.f32 %v4108, 1.0
        %v4141 = vadd.f32 %v4109, 1.0
        %v4142 = vadd.f32 %v4110, 1.0
        %v4143 = vadd.f32 %v4111, 1.0
        %v4144 = vadd.f32 %v4112, 1.0
        %v4145 = vadd.f32 %v4113, 1.0
        %v4146 = vadd.f32 %v4114, 1.0
        %v4147 = vadd.f32 %v4115, 1.0
        %v4148 = vadd.f32 %v4116, 1.0
        %v4149 = vadd.f32 %v4117, 1.0
        %v4150 = vadd.f32 %v4118, 1.0
        %v4151 = vadd.f32 %v4119, 1.0
        %v4152 = vadd.f32 %v4120, 1.0
        %v4153 = vadd.f32 %v4121, 1.0
        %v4154 = vadd.f32 %v4122, 1.0
        %v4155 = vadd.f32 %v4123, 1.0
        %v4156 = vadd.f32 %v4124, 1.0
        %v4157 = vadd.f32 %v4125, 1.0
        %v4158 = vadd.f32 %v4126, 1.0
        %v4159 = vadd.f32 %v4127, 1.0
        %v4160 = vadd.f32 %v4128, 1.0
        %v4161 = vadd.f32 %v4129, 1.0
        %v4162 = vadd.f32 %v4130, 1.0
        %v4163 = vmul.f32 %v4131, 0.5
        %v4164 = vmul.f32 %v4132, 0.5
        %v4165 = vmul.f32 %v4133, 0.5
        %v4166 = vmul.f32 %v4134, 0.5
        %v4167 = vmul.f32 %v4135, 0.5
        %v4168 = vmul.f32 %v4136, 0.5
        %v4169 = vmul.f32 %v4137, 0.5
        %v4170 = vmul.f32 %v4138, 0.5
        %v4171 = vmul.f32 %v4139, 0.5
        %v4172 = vmul.f32 %v4140, 0.5
        %v4173 = vmul.f32 %v4141, 0.5
        %v4174 = vmul.f32 %v4142, 0.5
        %v4175 = vmul.f32 %v4143, 0.5
        %v4176 = vmul.f32 %v4144, 0.5
        %v4177 = vmul.f32 %v4145, 0.5
        %v4178 = vmul.f32 %v4146, 0.5
        %v4179 = vmul.f32 %v4147, 0.5
        %v4180 = vmul.f32 %v4148, 0.5
        %v4181 = vmul.f32 %v4149, 0.5
        %v4182 = vmul.f32 %v4150, 0.5
        %v4183 = vmul.f32 %v4151, 0.5
        %v4184 = vmul.f32 %v4152, 0.5
        %v4185 = vmul.f32 %v4153, 0.5
        %v4186 = vmul.f32 %v4154, 0.5
        %v4187 = vmul.f32 %v4155, 0.5
        %v4188 = vmul.f32 %v4156, 0.5
        %v4189 = vmul.f32 %v4157, 0.5
        %v4190 = vmul.f32 %v4158, 0.5
        %v4191 = vmul.f32 %v4159, 0.5
        %v4192 = vmul.f32 %v4160, 0.5
        %v4193 = vmul.f32 %v4161, 0.5
        %v4194 = vmul.f32 %v4162, 0.5
        %v4195 = vmul.f32 %v3454, 0.5
        %v4196 = vmul.f32 %v3456, 0.5
        %v4197 = vmul.f32 %v3459, 0.5
        %v4198 = vmul.f32 %v3461, 0.5
        %v4199 = vmul.f32 %v3464, 0.5
        %v4200 = vmul.f32 %v3466, 0.5
        %v4201 = vmul.f32 %v3469, 0.5
        %v4202 = vmul.f32 %v3471, 0.5
        %v4203 = vmul.f32 %v3474, 0.5
        %v4204 = vmul.f32 %v3476, 0.5
        %v4205 = vmul.f32 %v3479, 0.5
        %v4206 = vmul.f32 %v3481, 0.5
        %v4207 = vmul.f32 %v3484, 0.5
        %v4208 = vmul.f32 %v3486, 0.5
        %v4209 = vmul.f32 %v3489, 0.5
        %v4210 = vmul.f32 %v3491, 0.5
        %v4211 = vmul.f32 %v3494, 0.5
        %v4212 = vmul.f32 %v3496, 0.5
        %v4213 = vmul.f32 %v3499, 0.5
        %v4214 = vmul.f32 %v3501, 0.5
        %v4215 = vmul.f32 %v3504, 0.5
        %v4216 = vmul.f32 %v3506, 0.5
        %v4217 = vmul.f32 %v3509, 0.5
        %v4218 = vmul.f32 %v3511, 0.5
        %v4219 = vmul.f32 %v3514, 0.5
        %v4220 = vmul.f32 %v3516, 0.5
        %v4221 = vmul.f32 %v3519, 0.5
        %v4222 = vmul.f32 %v3521, 0.5
        %v4223 = vmul.f32 %v3524, 0.5
        %v4224 = vmul.f32 %v3526, 0.5
        %v4225 = vmul.f32 %v3529, 0.5
        %v4226 = vmul.f32 %v3531, 0.5
        %v4227 = vtanh.pop %v4195
        %v4228 = vtanh.pop %v4196
        %v4229 = vtanh.pop %v4197
        %v4230 = vtanh.pop %v4198
        %v4231 = vtanh.pop %v4199
        %v4232 = vtanh.pop %v4200
        %v4233 = vtanh.pop %v4201
        %v4234 = vtanh.pop %v4202
        %v4235 = vtanh.pop %v4203
        %v4236 = vtanh.pop %v4204
        %v4237 = vtanh.pop %v4205
        %v4238 = vtanh.pop %v4206
        %v4239 = vtanh.pop %v4207
        %v4240 = vtanh.pop %v4208
        %v4241 = vtanh.pop %v4209
        %v4242 = vtanh.pop %v4210
        %v4243 = vtanh.pop %v4211
        %v4244 = vtanh.pop %v4212
        %v4245 = vtanh.pop %v4213
        %v4246 = vtanh.pop %v4214
        %v4247 = vtanh.pop %v4215
        %v4248 = vtanh.pop %v4216
        %v4249 = vtanh.pop %v4217
        %v4250 = vtanh.pop %v4218
        %v4251 = vtanh.pop %v4219
        %v4252 = vtanh.pop %v4220
        %v4253 = vtanh.pop %v4221
        %v4254 = vtanh.pop %v4222
        %v4255 = vtanh.pop %v4223
        %v4256 = vtanh.pop %v4224
        %v4257 = vtanh.pop %v4225
        %v4258 = vtanh.pop %v4226
        %v4259 = vadd.f32 %v4227, 1.0
        %v4260 = vadd.f32 %v4228, 1.0
        %v4261 = vadd.f32 %v4229, 1.0
        %v4262 = vadd.f32 %v4230, 1.0
        %v4263 = vadd.f32 %v4231, 1.0
        %v4264 = vadd.f32 %v4232, 1.0
        %v4265 = vadd.f32 %v4233, 1.0
        %v4266 = vadd.f32 %v4234, 1.0
        %v4267 = vadd.f32 %v4235, 1.0
        %v4268 = vadd.f32 %v4236, 1.0
        %v4269 = vadd.f32 %v4237, 1.0
        %v4270 = vadd.f32 %v4238, 1.0
        %v4271 = vadd.f32 %v4239, 1.0
        %v4272 = vadd.f32 %v4240, 1.0
        %v4273 = vadd.f32 %v4241, 1.0
        %v4274 = vadd.f32 %v4242, 1.0
        %v4275 = vadd.f32 %v4243, 1.0
        %v4276 = vadd.f32 %v4244, 1.0
        %v4277 = vadd.f32 %v4245, 1.0
        %v4278 = vadd.f32 %v4246, 1.0
        %v4279 = vadd.f32 %v4247, 1.0
        %v4280 = vadd.f32 %v4248, 1.0
        %v4281 = vadd.f32 %v4249, 1.0
        %v4282 = vadd.f32 %v4250, 1.0
        %v4283 = vadd.f32 %v4251, 1.0
        %v4284 = vadd.f32 %v4252, 1.0
        %v4285 = vadd.f32 %v4253, 1.0
        %v4286 = vadd.f32 %v4254, 1.0
        %v4287 = vadd.f32 %v4255, 1.0
        %v4288 = vadd.f32 %v4256, 1.0
        %v4289 = vadd.f32 %v4257, 1.0
        %v4290 = vadd.f32 %v4258, 1.0
        %v4291 = vmul.f32 %v4259, 0.5
        %v4292 = vmul.f32 %v4260, 0.5
        %v4293 = vmul.f32 %v4261, 0.5
        %v4294 = vmul.f32 %v4262, 0.5
        %v4295 = vmul.f32 %v4263, 0.5
        %v4296 = vmul.f32 %v4264, 0.5
        %v4297 = vmul.f32 %v4265, 0.5
        %v4298 = vmul.f32 %v4266, 0.5
        %v4299 = vmul.f32 %v4267, 0.5
        %v4300 = vmul.f32 %v4268, 0.5
        %v4301 = vmul.f32 %v4269, 0.5
        %v4302 = vmul.f32 %v4270, 0.5
        %v4303 = vmul.f32 %v4271, 0.5
        %v4304 = vmul.f32 %v4272, 0.5
        %v4305 = vmul.f32 %v4273, 0.5
        %v4306 = vmul.f32 %v4274, 0.5
        %v4307 = vmul.f32 %v4275, 0.5
        %v4308 = vmul.f32 %v4276, 0.5
        %v4309 = vmul.f32 %v4277, 0.5
        %v4310 = vmul.f32 %v4278, 0.5
        %v4311 = vmul.f32 %v4279, 0.5
        %v4312 = vmul.f32 %v4280, 0.5
        %v4313 = vmul.f32 %v4281, 0.5
        %v4314 = vmul.f32 %v4282, 0.5
        %v4315 = vmul.f32 %v4283, 0.5
        %v4316 = vmul.f32 %v4284, 0.5
        %v4317 = vmul.f32 %v4285, 0.5
        %v4318 = vmul.f32 %v4286, 0.5
        %v4319 = vmul.f32 %v4287, 0.5
        %v4320 = vmul.f32 %v4288, 0.5
        %v4321 = vmul.f32 %v4289, 0.5
        %v4322 = vmul.f32 %v4290, 0.5
        %v4323 = vtanh.pop %v3721
        %v4324 = vtanh.pop %v3723
        %v4325 = vtanh.pop %v3726
        %v4326 = vtanh.pop %v3728
        %v4327 = vtanh.pop %v3731
        %v4328 = vtanh.pop %v3733
        %v4329 = vtanh.pop %v3736
        %v4330 = vtanh.pop %v3738
        %v4331 = vtanh.pop %v3741
        %v4332 = vtanh.pop %v3743
        %v4333 = vtanh.pop %v3746
        %v4334 = vtanh.pop %v3748
        %v4335 = vtanh.pop %v3751
        %v4336 = vtanh.pop %v3753
        %v4337 = vtanh.pop %v3756
        %v4338 = vtanh.pop %v3758
        %v4339 = vtanh.pop %v3761
        %v4340 = vtanh.pop %v3763
        %v4341 = vtanh.pop %v3766
        %v4342 = vtanh.pop %v3768
        %v4343 = vtanh.pop %v3771
        %v4344 = vtanh.pop %v3773
        %v4345 = vtanh.pop %v3776
        %v4346 = vtanh.pop %v3778
        %v4347 = vtanh.pop %v3781
        %v4348 = vtanh.pop %v3783
        %v4349 = vtanh.pop %v3786
        %v4350 = vtanh.pop %v3788
        %v4351 = vtanh.pop %v3791
        %v4352 = vtanh.pop %v3793
        %v4353 = vtanh.pop %v3796
        %v4354 = vtanh.pop %v3798
        %v4355 = vmul.f32 %v3988, 0.5
        %v4356 = vmul.f32 %v3990, 0.5
        %v4357 = vmul.f32 %v3993, 0.5
        %v4358 = vmul.f32 %v3995, 0.5
        %v4359 = vmul.f32 %v3998, 0.5
        %v4360 = vmul.f32 %v4000, 0.5
        %v4361 = vmul.f32 %v4003, 0.5
        %v4362 = vmul.f32 %v4005, 0.5
        %v4363 = vmul.f32 %v4008, 0.5
        %v4364 = vmul.f32 %v4010, 0.5
        %v4365 = vmul.f32 %v4013, 0.5
        %v4366 = vmul.f32 %v4015, 0.5
        %v4367 = vmul.f32 %v4018, 0.5
        %v4368 = vmul.f32 %v4020, 0.5
        %v4369 = vmul.f32 %v4023, 0.5
        %v4370 = vmul.f32 %v4025, 0.5
        %v4371 = vmul.f32 %v4028, 0.5
        %v4372 = vmul.f32 %v4030, 0.5
        %v4373 = vmul.f32 %v4033, 0.5
        %v4374 = vmul.f32 %v4035, 0.5
        %v4375 = vmul.f32 %v4038, 0.5
        %v4376 = vmul.f32 %v4040, 0.5
        %v4377 = vmul.f32 %v4043, 0.5
        %v4378 = vmul.f32 %v4045, 0.5
        %v4379 = vmul.f32 %v4048, 0.5
        %v4380 = vmul.f32 %v4050, 0.5
        %v4381 = vmul.f32 %v4053, 0.5
        %v4382 = vmul.f32 %v4055, 0.5
        %v4383 = vmul.f32 %v4058, 0.5
        %v4384 = vmul.f32 %v4060, 0.5
        %v4385 = vmul.f32 %v4063, 0.5
        %v4386 = vmul.f32 %v4065, 0.5
        %v4387 = vtanh.pop %v4355
        %v4388 = vtanh.pop %v4356
        %v4389 = vtanh.pop %v4357
        %v4390 = vtanh.pop %v4358
        %v4391 = vtanh.pop %v4359
        %v4392 = vtanh.pop %v4360
        %v4393 = vtanh.pop %v4361
        %v4394 = vtanh.pop %v4362
        %v4395 = vtanh.pop %v4363
        %v4396 = vtanh.pop %v4364
        %v4397 = vtanh.pop %v4365
        %v4398 = vtanh.pop %v4366
        %v4399 = vtanh.pop %v4367
        %v4400 = vtanh.pop %v4368
        %v4401 = vtanh.pop %v4369
        %v4402 = vtanh.pop %v4370
        %v4403 = vtanh.pop %v4371
        %v4404 = vtanh.pop %v4372
        %v4405 = vtanh.pop %v4373
        %v4406 = vtanh.pop %v4374
        %v4407 = vtanh.pop %v4375
        %v4408 = vtanh.pop %v4376
        %v4409 = vtanh.pop %v4377
        %v4410 = vtanh.pop %v4378
        %v4411 = vtanh.pop %v4379
        %v4412 = vtanh.pop %v4380
        %v4413 = vtanh.pop %v4381
        %v4414 = vtanh.pop %v4382
        %v4415 = vtanh.pop %v4383
        %v4416 = vtanh.pop %v4384
        %v4417 = vtanh.pop %v4385
        %v4418 = vtanh.pop %v4386
        %v4419 = vadd.f32 %v4387, 1.0
        %v4420 = vadd.f32 %v4388, 1.0
        %v4421 = vadd.f32 %v4389, 1.0
        %v4422 = vadd.f32 %v4390, 1.0
        %v4423 = vadd.f32 %v4391, 1.0
        %v4424 = vadd.f32 %v4392, 1.0
        %v4425 = vadd.f32 %v4393, 1.0
        %v4426 = vadd.f32 %v4394, 1.0
        %v4427 = vadd.f32 %v4395, 1.0
        %v4428 = vadd.f32 %v4396, 1.0
        %v4429 = vadd.f32 %v4397, 1.0
        %v4430 = vadd.f32 %v4398, 1.0
        %v4431 = vadd.f32 %v4399, 1.0
        %v4432 = vadd.f32 %v4400, 1.0
        %v4433 = vadd.f32 %v4401, 1.0
        %v4434 = vadd.f32 %v4402, 1.0
        %v4435 = vadd.f32 %v4403, 1.0
        %v4436 = vadd.f32 %v4404, 1.0
        %v4437 = vadd.f32 %v4405, 1.0
        %v4438 = vadd.f32 %v4406, 1.0
        %v4439 = vadd.f32 %v4407, 1.0
        %v4440 = vadd.f32 %v4408, 1.0
        %v4441 = vadd.f32 %v4409, 1.0
        %v4442 = vadd.f32 %v4410, 1.0
        %v4443 = vadd.f32 %v4411, 1.0
        %v4444 = vadd.f32 %v4412, 1.0
        %v4445 = vadd.f32 %v4413, 1.0
        %v4446 = vadd.f32 %v4414, 1.0
        %v4447 = vadd.f32 %v4415, 1.0
        %v4448 = vadd.f32 %v4416, 1.0
        %v4449 = vadd.f32 %v4417, 1.0
        %v4450 = vadd.f32 %v4418, 1.0
        %v4451 = vmul.f32 %v4419, 0.5
        %v4452 = vmul.f32 %v4420, 0.5
        %v4453 = vmul.f32 %v4421, 0.5
        %v4454 = vmul.f32 %v4422, 0.5
        %v4455 = vmul.f32 %v4423, 0.5
        %v4456 = vmul.f32 %v4424, 0.5
        %v4457 = vmul.f32 %v4425, 0.5
        %v4458 = vmul.f32 %v4426, 0.5
        %v4459 = vmul.f32 %v4427, 0.5
        %v4460 = vmul.f32 %v4428, 0.5
        %v4461 = vmul.f32 %v4429, 0.5
        %v4462 = vmul.f32 %v4430, 0.5
        %v4463 = vmul.f32 %v4431, 0.5
        %v4464 = vmul.f32 %v4432, 0.5
        %v4465 = vmul.f32 %v4433, 0.5
        %v4466 = vmul.f32 %v4434, 0.5
        %v4467 = vmul.f32 %v4435, 0.5
        %v4468 = vmul.f32 %v4436, 0.5
        %v4469 = vmul.f32 %v4437, 0.5
        %v4470 = vmul.f32 %v4438, 0.5
        %v4471 = vmul.f32 %v4439, 0.5
        %v4472 = vmul.f32 %v4440, 0.5
        %v4473 = vmul.f32 %v4441, 0.5
        %v4474 = vmul.f32 %v4442, 0.5
        %v4475 = vmul.f32 %v4443, 0.5
        %v4476 = vmul.f32 %v4444, 0.5
        %v4477 = vmul.f32 %v4445, 0.5
        %v4478 = vmul.f32 %v4446, 0.5
        %v4479 = vmul.f32 %v4447, 0.5
        %v4480 = vmul.f32 %v4448, 0.5
        %v4481 = vmul.f32 %v4449, 0.5
        %v4482 = vmul.f32 %v4450, 0.5
        %v4483 = vld [vmem:[%s478] sm:$0xff]
        %v4484 = vld [vmem:[%s478 + $0x8] sm:$0xff]
        %v4485 = vld [vmem:[%s478 + $0x10] sm:$0xff]
        %v4486 = vld [vmem:[%s478 + $0x18] sm:$0xff]
        %v4487 = vld [vmem:[%s478 + $0x20] sm:$0xff]
        %v4488 = vld [vmem:[%s478 + $0x28] sm:$0xff]
        %v4489 = vld [vmem:[%s478 + $0x30] sm:$0xff]
        %v4490 = vld [vmem:[%s478 + $0x38] sm:$0xff]
        %v4491 = vld [vmem:[%s478 + $0x40] sm:$0xff]
        %v4492 = vld [vmem:[%s478 + $0x48] sm:$0xff]
        %v4493 = vld [vmem:[%s478 + $0x50] sm:$0xff]
        %v4494 = vld [vmem:[%s478 + $0x58] sm:$0xff]
        %v4495 = vld [vmem:[%s478 + $0x60] sm:$0xff]
        %v4496 = vld [vmem:[%s478 + $0x68] sm:$0xff]
        %v4497 = vld [vmem:[%s478 + $0x70] sm:$0xff]
        %v4498 = vld [vmem:[%s478 + $0x78] sm:$0xff]
        %v4499 = vld [vmem:[%s478 + $0x80] sm:$0xff]
        %v4500 = vld [vmem:[%s478 + $0x88] sm:$0xff]
        %v4501 = vld [vmem:[%s478 + $0x90] sm:$0xff]
        %v4502 = vld [vmem:[%s478 + $0x98] sm:$0xff]
        %v4503 = vld [vmem:[%s478 + $0xa0] sm:$0xff]
        %v4504 = vld [vmem:[%s478 + $0xa8] sm:$0xff]
        %v4505 = vld [vmem:[%s478 + $0xb0] sm:$0xff]
        %v4506 = vld [vmem:[%s478 + $0xb8] sm:$0xff]
        %v4507 = vld [vmem:[%s478 + $0xc0] sm:$0xff]
        %v4508 = vld [vmem:[%s478 + $0xc8] sm:$0xff]
        %v4509 = vld [vmem:[%s478 + $0xd0] sm:$0xff]
        %v4510 = vld [vmem:[%s478 + $0xd8] sm:$0xff]
        %v4511 = vld [vmem:[%s478 + $0xe0] sm:$0xff]
        %v4512 = vld [vmem:[%s478 + $0xe8] sm:$0xff]
        %v4513 = vld [vmem:[%s478 + $0xf0] sm:$0xff]
        %v4514 = vld [vmem:[%s478 + $0xf8] sm:$0xff]
        %v4515 = vmul.f32 %v4291, %v4483
        %v4516 = vmul.f32 %v4292, %v4484
        %v4517 = vmul.f32 %v4293, %v4485
        %v4518 = vmul.f32 %v4294, %v4486
        %v4519 = vmul.f32 %v4295, %v4487
        %v4520 = vmul.f32 %v4296, %v4488
        %v4521 = vmul.f32 %v4297, %v4489
        %v4522 = vmul.f32 %v4298, %v4490
        %v4523 = vmul.f32 %v4299, %v4491
        %v4524 = vmul.f32 %v4300, %v4492
        %v4525 = vmul.f32 %v4301, %v4493
        %v4526 = vmul.f32 %v4302, %v4494
        %v4527 = vmul.f32 %v4303, %v4495
        %v4528 = vmul.f32 %v4304, %v4496
        %v4529 = vmul.f32 %v4305, %v4497
        %v4530 = vmul.f32 %v4306, %v4498
        %v4531 = vmul.f32 %v4307, %v4499
        %v4532 = vmul.f32 %v4308, %v4500
        %v4533 = vmul.f32 %v4309, %v4501
        %v4534 = vmul.f32 %v4310, %v4502
        %v4535 = vmul.f32 %v4311, %v4503
        %v4536 = vmul.f32 %v4312, %v4504
        %v4537 = vmul.f32 %v4313, %v4505
        %v4538 = vmul.f32 %v4314, %v4506
        %v4539 = vmul.f32 %v4315, %v4507
        %v4540 = vmul.f32 %v4316, %v4508
        %v4541 = vmul.f32 %v4317, %v4509
        %v4542 = vmul.f32 %v4318, %v4510
        %v4543 = vmul.f32 %v4319, %v4511
        %v4544 = vmul.f32 %v4320, %v4512
        %v4545 = vmul.f32 %v4321, %v4513
        %v4546 = vmul.f32 %v4322, %v4514
        %v4547 = vmul.f32 %v4163, %v4323
        %v4548 = vmul.f32 %v4164, %v4324
        %v4549 = vmul.f32 %v4165, %v4325
        %v4550 = vmul.f32 %v4166, %v4326
        %v4551 = vmul.f32 %v4167, %v4327
        %v4552 = vmul.f32 %v4168, %v4328
        %v4553 = vmul.f32 %v4169, %v4329
        %v4554 = vmul.f32 %v4170, %v4330
        %v4555 = vmul.f32 %v4171, %v4331
        %v4556 = vmul.f32 %v4172, %v4332
        %v4557 = vmul.f32 %v4173, %v4333
        %v4558 = vmul.f32 %v4174, %v4334
        %v4559 = vmul.f32 %v4175, %v4335
        %v4560 = vmul.f32 %v4176, %v4336
        %v4561 = vmul.f32 %v4177, %v4337
        %v4562 = vmul.f32 %v4178, %v4338
        %v4563 = vmul.f32 %v4179, %v4339
        %v4564 = vmul.f32 %v4180, %v4340
        %v4565 = vmul.f32 %v4181, %v4341
        %v4566 = vmul.f32 %v4182, %v4342
        %v4567 = vmul.f32 %v4183, %v4343
        %v4568 = vmul.f32 %v4184, %v4344
        %v4569 = vmul.f32 %v4185, %v4345
        %v4570 = vmul.f32 %v4186, %v4346
        %v4571 = vmul.f32 %v4187, %v4347
        %v4572 = vmul.f32 %v4188, %v4348
        %v4573 = vmul.f32 %v4189, %v4349
        %v4574 = vmul.f32 %v4190, %v4350
        %v4575 = vmul.f32 %v4191, %v4351
        %v4576 = vmul.f32 %v4192, %v4352
        %v4577 = vmul.f32 %v4193, %v4353
        %v4578 = vmul.f32 %v4194, %v4354
        %v4579 = vadd.f32 %v4515, %v4547
        %v4580 = vadd.f32 %v4516, %v4548
        %v4581 = vadd.f32 %v4517, %v4549
        %v4582 = vadd.f32 %v4518, %v4550
        %v4583 = vadd.f32 %v4519, %v4551
        %v4584 = vadd.f32 %v4520, %v4552
        %v4585 = vadd.f32 %v4521, %v4553
        %v4586 = vadd.f32 %v4522, %v4554
        %v4587 = vadd.f32 %v4523, %v4555
        %v4588 = vadd.f32 %v4524, %v4556
        %v4589 = vadd.f32 %v4525, %v4557
        %v4590 = vadd.f32 %v4526, %v4558
        %v4591 = vadd.f32 %v4527, %v4559
        %v4592 = vadd.f32 %v4528, %v4560
        %v4593 = vadd.f32 %v4529, %v4561
        %v4594 = vadd.f32 %v4530, %v4562
        %v4595 = vadd.f32 %v4531, %v4563
        %v4596 = vadd.f32 %v4532, %v4564
        %v4597 = vadd.f32 %v4533, %v4565
        %v4598 = vadd.f32 %v4534, %v4566
        %v4599 = vadd.f32 %v4535, %v4567
        %v4600 = vadd.f32 %v4536, %v4568
        %v4601 = vadd.f32 %v4537, %v4569
        %v4602 = vadd.f32 %v4538, %v4570
        %v4603 = vadd.f32 %v4539, %v4571
        %v4604 = vadd.f32 %v4540, %v4572
        %v4605 = vadd.f32 %v4541, %v4573
        %v4606 = vadd.f32 %v4542, %v4574
        %v4607 = vadd.f32 %v4543, %v4575
        %v4608 = vadd.f32 %v4544, %v4576
        %v4609 = vadd.f32 %v4545, %v4577
        %v4610 = vadd.f32 %v4546, %v4578
        %v4611 = vtanh.pop %v4579
        %v4612 = vtanh.pop %v4580
        %v4613 = vtanh.pop %v4581
        %v4614 = vtanh.pop %v4582
        %v4615 = vtanh.pop %v4583
        %v4616 = vtanh.pop %v4584
        %v4617 = vtanh.pop %v4585
        %v4618 = vtanh.pop %v4586
        %v4619 = vtanh.pop %v4587
        %v4620 = vtanh.pop %v4588
        %v4621 = vtanh.pop %v4589
        %v4622 = vtanh.pop %v4590
        %v4623 = vtanh.pop %v4591
        %v4624 = vtanh.pop %v4592
        %v4625 = vtanh.pop %v4593
        %v4626 = vtanh.pop %v4594
        %v4627 = vtanh.pop %v4595
        %v4628 = vtanh.pop %v4596
        %v4629 = vtanh.pop %v4597
        %v4630 = vtanh.pop %v4598
        %v4631 = vtanh.pop %v4599
        %v4632 = vtanh.pop %v4600
        %v4633 = vtanh.pop %v4601
        %v4634 = vtanh.pop %v4602
        %v4635 = vtanh.pop %v4603
        %v4636 = vtanh.pop %v4604
        %v4637 = vtanh.pop %v4605
        %v4638 = vtanh.pop %v4606
        %v4639 = vtanh.pop %v4607
        %v4640 = vtanh.pop %v4608
        %v4641 = vtanh.pop %v4609
        %v4642 = vtanh.pop %v4610
        %v4643 = vmul.f32 %v4451, %v4611
        %v4644 = vmul.f32 %v4452, %v4612
        %v4645 = vmul.f32 %v4453, %v4613
        %v4646 = vmul.f32 %v4454, %v4614
        %v4647 = vmul.f32 %v4455, %v4615
        %v4648 = vmul.f32 %v4456, %v4616
        %v4649 = vmul.f32 %v4457, %v4617
        %v4650 = vmul.f32 %v4458, %v4618
        %v4651 = vmul.f32 %v4459, %v4619
        %v4652 = vmul.f32 %v4460, %v4620
        %v4653 = vmul.f32 %v4461, %v4621
        %v4654 = vmul.f32 %v4462, %v4622
        %v4655 = vmul.f32 %v4463, %v4623
        %v4656 = vmul.f32 %v4464, %v4624
        %v4657 = vmul.f32 %v4465, %v4625
        %v4658 = vmul.f32 %v4466, %v4626
        %v4659 = vmul.f32 %v4467, %v4627
        %v4660 = vmul.f32 %v4468, %v4628
        %v4661 = vmul.f32 %v4469, %v4629
        %v4662 = vmul.f32 %v4470, %v4630
        %v4663 = vmul.f32 %v4471, %v4631
        %v4664 = vmul.f32 %v4472, %v4632
        %v4665 = vmul.f32 %v4473, %v4633
        %v4666 = vmul.f32 %v4474, %v4634
        %v4667 = vmul.f32 %v4475, %v4635
        %v4668 = vmul.f32 %v4476, %v4636
        %v4669 = vmul.f32 %v4477, %v4637
        %v4670 = vmul.f32 %v4478, %v4638
        %v4671 = vmul.f32 %v4479, %v4639
        %v4672 = vmul.f32 %v4480, %v4640
        %v4673 = vmul.f32 %v4481, %v4641
        %v4674 = vmul.f32 %v4482, %v4642
        %4675 = vst [vmem:[%s555] sm:$0xff] %v4643
        %4676 = vst [vmem:[%s555 + $0x8] sm:$0xff] %v4644
        %4677 = vst [vmem:[%s555 + $0x10] sm:$0xff] %v4645
        %4678 = vst [vmem:[%s555 + $0x18] sm:$0xff] %v4646
        %4679 = vst [vmem:[%s555 + $0x20] sm:$0xff] %v4647
        %4680 = vst [vmem:[%s555 + $0x28] sm:$0xff] %v4648
        %4681 = vst [vmem:[%s555 + $0x30] sm:$0xff] %v4649
        %4682 = vst [vmem:[%s555 + $0x38] sm:$0xff] %v4650
        %4683 = vst [vmem:[%s555 + $0x40] sm:$0xff] %v4651
        %4684 = vst [vmem:[%s555 + $0x48] sm:$0xff] %v4652
        %4685 = vst [vmem:[%s555 + $0x50] sm:$0xff] %v4653
        %4686 = vst [vmem:[%s555 + $0x58] sm:$0xff] %v4654
        %4687 = vst [vmem:[%s555 + $0x60] sm:$0xff] %v4655
        %4688 = vst [vmem:[%s555 + $0x68] sm:$0xff] %v4656
        %4689 = vst [vmem:[%s555 + $0x70] sm:$0xff] %v4657
        %4690 = vst [vmem:[%s555 + $0x78] sm:$0xff] %v4658
        %4691 = vst [vmem:[%s555 + $0x80] sm:$0xff] %v4659
        %4692 = vst [vmem:[%s555 + $0x88] sm:$0xff] %v4660
        %4693 = vst [vmem:[%s555 + $0x90] sm:$0xff] %v4661
        %4694 = vst [vmem:[%s555 + $0x98] sm:$0xff] %v4662
        %4695 = vst [vmem:[%s555 + $0xa0] sm:$0xff] %v4663
        %4696 = vst [vmem:[%s555 + $0xa8] sm:$0xff] %v4664
        %4697 = vst [vmem:[%s555 + $0xb0] sm:$0xff] %v4665
        %4698 = vst [vmem:[%s555 + $0xb8] sm:$0xff] %v4666
        %4699 = vst [vmem:[%s555 + $0xc0] sm:$0xff] %v4667
        %4700 = vst [vmem:[%s555 + $0xc8] sm:$0xff] %v4668
        %4701 = vst [vmem:[%s555 + $0xd0] sm:$0xff] %v4669
        %4702 = vst [vmem:[%s555 + $0xd8] sm:$0xff] %v4670
        %4703 = vst [vmem:[%s555 + $0xe0] sm:$0xff] %v4671
        %4704 = vst [vmem:[%s555 + $0xe8] sm:$0xff] %v4672
        %4705 = vst [vmem:[%s555 + $0xf0] sm:$0xff] %v4673
        %4706 = vst [vmem:[%s555 + $0xf8] sm:$0xff] %v4674
        %4707 = vst [vmem:[%s562] sm:$0xff] %v4579
        %4708 = vst [vmem:[%s562 + $0x8] sm:$0xff] %v4580
        %4709 = vst [vmem:[%s562 + $0x10] sm:$0xff] %v4581
        %4710 = vst [vmem:[%s562 + $0x18] sm:$0xff] %v4582
        %4711 = vst [vmem:[%s562 + $0x20] sm:$0xff] %v4583
        %4712 = vst [vmem:[%s562 + $0x28] sm:$0xff] %v4584
        %4713 = vst [vmem:[%s562 + $0x30] sm:$0xff] %v4585
        %4714 = vst [vmem:[%s562 + $0x38] sm:$0xff] %v4586
        %4715 = vst [vmem:[%s562 + $0x40] sm:$0xff] %v4587
        %4716 = vst [vmem:[%s562 + $0x48] sm:$0xff] %v4588
        %4717 = vst [vmem:[%s562 + $0x50] sm:$0xff] %v4589
        %4718 = vst [vmem:[%s562 + $0x58] sm:$0xff] %v4590
        %4719 = vst [vmem:[%s562 + $0x60] sm:$0xff] %v4591
        %4720 = vst [vmem:[%s562 + $0x68] sm:$0xff] %v4592
        %4721 = vst [vmem:[%s562 + $0x70] sm:$0xff] %v4593
        %4722 = vst [vmem:[%s562 + $0x78] sm:$0xff] %v4594
        %4723 = vst [vmem:[%s562 + $0x80] sm:$0xff] %v4595
        %4724 = vst [vmem:[%s562 + $0x88] sm:$0xff] %v4596
        %4725 = vst [vmem:[%s562 + $0x90] sm:$0xff] %v4597
        %4726 = vst [vmem:[%s562 + $0x98] sm:$0xff] %v4598
        %4727 = vst [vmem:[%s562 + $0xa0] sm:$0xff] %v4599
        %4728 = vst [vmem:[%s562 + $0xa8] sm:$0xff] %v4600
        %4729 = vst [vmem:[%s562 + $0xb0] sm:$0xff] %v4601
        %4730 = vst [vmem:[%s562 + $0xb8] sm:$0xff] %v4602
        %4731 = vst [vmem:[%s562 + $0xc0] sm:$0xff] %v4603
        %4732 = vst [vmem:[%s562 + $0xc8] sm:$0xff] %v4604
        %4733 = vst [vmem:[%s562 + $0xd0] sm:$0xff] %v4605
        %4734 = vst [vmem:[%s562 + $0xd8] sm:$0xff] %v4606
        %4735 = vst [vmem:[%s562 + $0xe0] sm:$0xff] %v4607
        %4736 = vst [vmem:[%s562 + $0xe8] sm:$0xff] %v4608
        %4737 = vst [vmem:[%s562 + $0xf0] sm:$0xff] %v4609
        %4738 = vst [vmem:[%s562 + $0xf8] sm:$0xff] %v4610
        %v4739 = vpack.c.bf16 %v4644, %v4643
        %v4740 = vpack.c.bf16 %v4646, %v4645
        %v4741 = vpack.c.bf16 %v4648, %v4647
        %v4742 = vpack.c.bf16 %v4650, %v4649
        %v4743 = vpack.c.bf16 %v4652, %v4651
        %v4744 = vpack.c.bf16 %v4654, %v4653
        %v4745 = vpack.c.bf16 %v4656, %v4655
        %v4746 = vpack.c.bf16 %v4658, %v4657
        %v4747 = vpack.c.bf16 %v4660, %v4659
        %v4748 = vpack.c.bf16 %v4662, %v4661
        %v4749 = vpack.c.bf16 %v4664, %v4663
        %v4750 = vpack.c.bf16 %v4666, %v4665
        %v4751 = vpack.c.bf16 %v4668, %v4667
        %v4752 = vpack.c.bf16 %v4670, %v4669
        %v4753 = vpack.c.bf16 %v4672, %v4671
        %v4754 = vpack.c.bf16 %v4674, %v4673
        %v4755 = vld [vmem:[#allocation11] sm:$0xff]
        %v4756 = vld [vmem:[#allocation11 + $0x8] sm:$0xff]
        %v4757 = vld [vmem:[#allocation11 + $0x10] sm:$0xff]
        %v4758 = vld [vmem:[#allocation11 + $0x18] sm:$0xff]
        %v4759 = vld [vmem:[#allocation11 + $0x20] sm:$0xff]
        %v4760 = vld [vmem:[#allocation11 + $0x28] sm:$0xff]
        %v4761 = vld [vmem:[#allocation11 + $0x30] sm:$0xff]
        %v4762 = vld [vmem:[#allocation11 + $0x38] sm:$0xff]
        %v4763 = vld [vmem:[#allocation11 + $0x40] sm:$0xff]
        %v4764 = vld [vmem:[#allocation11 + $0x48] sm:$0xff]
        %v4765 = vld [vmem:[#allocation11 + $0x50] sm:$0xff]
        %v4766 = vld [vmem:[#allocation11 + $0x58] sm:$0xff]
        %v4767 = vld [vmem:[#allocation11 + $0x60] sm:$0xff]
        %v4768 = vld [vmem:[#allocation11 + $0x68] sm:$0xff]
        %v4769 = vld [vmem:[#allocation11 + $0x70] sm:$0xff]
        %v4770 = vld [vmem:[#allocation11 + $0x78] sm:$0xff]
        %v4771 = vld [vmem:[#allocation11 + $0x80] sm:$0xff]
        %v4772 = vld [vmem:[#allocation11 + $0x88] sm:$0xff]
        %v4773 = vld [vmem:[#allocation11 + $0x90] sm:$0xff]
        %v4774 = vld [vmem:[#allocation11 + $0x98] sm:$0xff]
        %v4775 = vld [vmem:[#allocation11 + $0xa0] sm:$0xff]
        %v4776 = vld [vmem:[#allocation11 + $0xa8] sm:$0xff]
        %v4777 = vld [vmem:[#allocation11 + $0xb0] sm:$0xff]
        %v4778 = vld [vmem:[#allocation11 + $0xb8] sm:$0xff]
        %v4779 = vld [vmem:[#allocation11 + $0xc0] sm:$0xff]
        %v4780 = vld [vmem:[#allocation11 + $0xc8] sm:$0xff]
        %v4781 = vld [vmem:[#allocation11 + $0xd0] sm:$0xff]
        %v4782 = vld [vmem:[#allocation11 + $0xd8] sm:$0xff]
        %v4783 = vld [vmem:[#allocation11 + $0xe0] sm:$0xff]
        %v4784 = vld [vmem:[#allocation11 + $0xe8] sm:$0xff]
        %v4785 = vld [vmem:[#allocation11 + $0xf0] sm:$0xff]
        %v4786 = vld [vmem:[#allocation11 + $0xf8] sm:$0xff]
        %v4787 = vld [vmem:[#allocation12] sm:$0xf]
        %v4789 = vperm.slane %v4787, 0
        %v4790 = vperm.slane %v4787, 1
        %v4791 = vperm.slane %v4787, 2
        %v4792 = vperm.slane %v4787, 3
        %v4829 = vunpack.c.l.b16 %v4755
        %v4830 = vunpack.c.h.b16 %v4755
        %v4831 = vunpack.c.l.b16 %v4756
        %v4832 = vunpack.c.h.b16 %v4756
        %v4833 = vunpack.c.l.b16 %v4757
        %v4834 = vunpack.c.h.b16 %v4757
        %v4835 = vunpack.c.l.b16 %v4758
        %v4836 = vunpack.c.h.b16 %v4758
        %v4837 = vunpack.c.l.b16 %v4759
        %v4838 = vunpack.c.h.b16 %v4759
        %v4839 = vunpack.c.l.b16 %v4760
        %v4840 = vunpack.c.h.b16 %v4760
        %v4841 = vunpack.c.l.b16 %v4761
        %v4842 = vunpack.c.h.b16 %v4761
        %v4843 = vunpack.c.l.b16 %v4762
        %v4844 = vunpack.c.h.b16 %v4762
        %v4845 = vunpack.c.l.b16 %v4763
        %v4846 = vunpack.c.h.b16 %v4763
        %v4847 = vunpack.c.l.b16 %v4764
        %v4848 = vunpack.c.h.b16 %v4764
        %v4849 = vunpack.c.l.b16 %v4765
        %v4850 = vunpack.c.h.b16 %v4765
        %v4851 = vunpack.c.l.b16 %v4766
        %v4852 = vunpack.c.h.b16 %v4766
        %v4853 = vunpack.c.l.b16 %v4767
        %v4854 = vunpack.c.h.b16 %v4767
        %v4855 = vunpack.c.l.b16 %v4768
        %v4856 = vunpack.c.h.b16 %v4768
        %v4857 = vunpack.c.l.b16 %v4769
        %v4858 = vunpack.c.h.b16 %v4769
        %v4859 = vunpack.c.l.b16 %v4770
        %v4860 = vunpack.c.h.b16 %v4770
        %v4861 = vunpack.c.l.b16 %v4771
        %v4862 = vunpack.c.h.b16 %v4771
        %v4863 = vunpack.c.l.b16 %v4772
        %v4864 = vunpack.c.h.b16 %v4772
        %v4865 = vunpack.c.l.b16 %v4773
        %v4866 = vunpack.c.h.b16 %v4773
        %v4867 = vunpack.c.l.b16 %v4774
        %v4868 = vunpack.c.h.b16 %v4774
        %v4869 = vunpack.c.l.b16 %v4775
        %v4870 = vunpack.c.h.b16 %v4775
        %v4871 = vunpack.c.l.b16 %v4776
        %v4872 = vunpack.c.h.b16 %v4776
        %v4873 = vunpack.c.l.b16 %v4777
        %v4874 = vunpack.c.h.b16 %v4777
        %v4875 = vunpack.c.l.b16 %v4778
        %v4876 = vunpack.c.h.b16 %v4778
        %v4877 = vunpack.c.l.b16 %v4779
        %v4878 = vunpack.c.h.b16 %v4779
        %v4879 = vunpack.c.l.b16 %v4780
        %v4880 = vunpack.c.h.b16 %v4780
        %v4881 = vunpack.c.l.b16 %v4781
        %v4882 = vunpack.c.h.b16 %v4781
        %v4883 = vunpack.c.l.b16 %v4782
        %v4884 = vunpack.c.h.b16 %v4782
        %v4885 = vunpack.c.l.b16 %v4783
        %v4886 = vunpack.c.h.b16 %v4783
        %v4887 = vunpack.c.l.b16 %v4784
        %v4888 = vunpack.c.h.b16 %v4784
        %v4889 = vunpack.c.l.b16 %v4785
        %v4890 = vunpack.c.h.b16 %v4785
        %v4891 = vunpack.c.l.b16 %v4786
        %v4892 = vunpack.c.h.b16 %v4786
        %v4893 = vpack.c.b16 %v4833, %v4829
        %v4894 = vpack.c.b16 %v4834, %v4830
        %v4895 = vpack.c.b16 %v4835, %v4831
        %v4896 = vpack.c.b16 %v4836, %v4832
        %v4897 = vpack.c.b16 %v4841, %v4837
        %v4898 = vpack.c.b16 %v4842, %v4838
        %v4899 = vpack.c.b16 %v4843, %v4839
        %v4900 = vpack.c.b16 %v4844, %v4840
        %v4901 = vpack.c.b16 %v4849, %v4845
        %v4902 = vpack.c.b16 %v4850, %v4846
        %v4903 = vpack.c.b16 %v4851, %v4847
        %v4904 = vpack.c.b16 %v4852, %v4848
        %v4905 = vpack.c.b16 %v4857, %v4853
        %v4906 = vpack.c.b16 %v4858, %v4854
        %v4907 = vpack.c.b16 %v4859, %v4855
        %v4908 = vpack.c.b16 %v4860, %v4856
        %v4909 = vpack.c.b16 %v4865, %v4861
        %v4910 = vpack.c.b16 %v4866, %v4862
        %v4911 = vpack.c.b16 %v4867, %v4863
        %v4912 = vpack.c.b16 %v4868, %v4864
        %v4913 = vpack.c.b16 %v4873, %v4869
        %v4914 = vpack.c.b16 %v4874, %v4870
        %v4915 = vpack.c.b16 %v4875, %v4871
        %v4916 = vpack.c.b16 %v4876, %v4872
        %v4917 = vpack.c.b16 %v4881, %v4877
        %v4918 = vpack.c.b16 %v4882, %v4878
        %v4919 = vpack.c.b16 %v4883, %v4879
        %v4920 = vpack.c.b16 %v4884, %v4880
        %v4921 = vpack.c.b16 %v4889, %v4885
        %v4922 = vpack.c.b16 %v4890, %v4886
        %v4923 = vpack.c.b16 %v4891, %v4887
        %v4924 = vpack.c.b16 %v4892, %v4888
        %4957 = vmatpush.bf16.msra.mxu0 %v4921
        %4958 = vmatpush.bf16.msra.mxu0 %v4917
        %4959 = vmatpush.bf16.msra.mxu0 %v4913
        %4960 = vmatpush.bf16.msra.mxu0 %v4909
        %4961 = vmatpush.bf16.msra.mxu0 %v4905
        %4962 = vmatpush.bf16.msra.mxu0 %v4901
        %4963 = vmatpush.bf16.msra.mxu0 %v4897
        %4964 = vmatpush.bf16.msra.mxu0 %v4893
        %4965 = vmatmul.bf16.gmra.mxu0 %v4739
        %v4966 = vpop.f32.mrf.mxu0
        %v4967 = vadd.f32 %v4789, %v4966
        %v4968 = vpop.f32.mrf.mxu0
        %v4969 = vadd.f32 %v4789, %v4968
        %4970 = vmatmul.bf16.gmra.mxu0 %v4740
        %v4971 = vpop.f32.mrf.mxu0
        %v4972 = vadd.f32 %v4789, %v4971
        %v4973 = vpop.f32.mrf.mxu0
        %v4974 = vadd.f32 %v4789, %v4973
        %4975 = vmatmul.bf16.gmra.mxu0 %v4741
        %v4976 = vpop.f32.mrf.mxu0
        %v4977 = vadd.f32 %v4789, %v4976
        %v4978 = vpop.f32.mrf.mxu0
        %v4979 = vadd.f32 %v4789, %v4978
        %4980 = vmatmul.bf16.gmra.mxu0 %v4742
        %v4981 = vpop.f32.mrf.mxu0
        %v4982 = vadd.f32 %v4789, %v4981
        %v4983 = vpop.f32.mrf.mxu0
        %v4984 = vadd.f32 %v4789, %v4983
        %4985 = vmatmul.bf16.gmra.mxu0 %v4743
        %v4986 = vpop.f32.mrf.mxu0
        %v4987 = vadd.f32 %v4789, %v4986
        %v4988 = vpop.f32.mrf.mxu0
        %v4989 = vadd.f32 %v4789, %v4988
        %4990 = vmatmul.bf16.gmra.mxu0 %v4744
        %v4991 = vpop.f32.mrf.mxu0
        %v4992 = vadd.f32 %v4789, %v4991
        %v4993 = vpop.f32.mrf.mxu0
        %v4994 = vadd.f32 %v4789, %v4993
        %4995 = vmatmul.bf16.gmra.mxu0 %v4745
        %v4996 = vpop.f32.mrf.mxu0
        %v4997 = vadd.f32 %v4789, %v4996
        %v4998 = vpop.f32.mrf.mxu0
        %v4999 = vadd.f32 %v4789, %v4998
        %5000 = vmatmul.bf16.gmra.mxu0 %v4746
        %v5001 = vpop.f32.mrf.mxu0
        %v5002 = vadd.f32 %v4789, %v5001
        %v5003 = vpop.f32.mrf.mxu0
        %v5004 = vadd.f32 %v4789, %v5003
        %5005 = vmatmul.bf16.gmra.mxu0 %v4747
        %v5006 = vpop.f32.mrf.mxu0
        %v5007 = vadd.f32 %v4789, %v5006
        %v5008 = vpop.f32.mrf.mxu0
        %v5009 = vadd.f32 %v4789, %v5008
        %5010 = vmatmul.bf16.gmra.mxu0 %v4748
        %v5011 = vpop.f32.mrf.mxu0
        %v5012 = vadd.f32 %v4789, %v5011
        %v5013 = vpop.f32.mrf.mxu0
        %v5014 = vadd.f32 %v4789, %v5013
        %5015 = vmatmul.bf16.gmra.mxu0 %v4749
        %v5016 = vpop.f32.mrf.mxu0
        %v5017 = vadd.f32 %v4789, %v5016
        %v5018 = vpop.f32.mrf.mxu0
        %v5019 = vadd.f32 %v4789, %v5018
        %5020 = vmatmul.bf16.gmra.mxu0 %v4750
        %v5021 = vpop.f32.mrf.mxu0
        %v5022 = vadd.f32 %v4789, %v5021
        %v5023 = vpop.f32.mrf.mxu0
        %v5024 = vadd.f32 %v4789, %v5023
        %5025 = vmatmul.bf16.gmra.mxu0 %v4751
        %v5026 = vpop.f32.mrf.mxu0
        %v5027 = vadd.f32 %v4789, %v5026
        %v5028 = vpop.f32.mrf.mxu0
        %v5029 = vadd.f32 %v4789, %v5028
        %5030 = vmatmul.bf16.gmra.mxu0 %v4752
        %v5031 = vpop.f32.mrf.mxu0
        %v5032 = vadd.f32 %v4789, %v5031
        %v5033 = vpop.f32.mrf.mxu0
        %v5034 = vadd.f32 %v4789, %v5033
        %5035 = vmatmul.bf16.gmra.mxu0 %v4753
        %v5036 = vpop.f32.mrf.mxu0
        %v5037 = vadd.f32 %v4789, %v5036
        %v5038 = vpop.f32.mrf.mxu0
        %v5039 = vadd.f32 %v4789, %v5038
        %5040 = vmatmul.bf16.gmra.mxu0 %v4754
        %v5041 = vpop.f32.mrf.mxu0
        %v5042 = vadd.f32 %v4789, %v5041
        %v5043 = vpop.f32.mrf.mxu0
        %v5044 = vadd.f32 %v4789, %v5043
        %5045 = vdwg.mxu0
        %5046 = vmatpush.bf16.msra.mxu0 %v4922
        %5047 = vmatpush.bf16.msra.mxu0 %v4918
        %5048 = vmatpush.bf16.msra.mxu0 %v4914
        %5049 = vmatpush.bf16.msra.mxu0 %v4910
        %5050 = vmatpush.bf16.msra.mxu0 %v4906
        %5051 = vmatpush.bf16.msra.mxu0 %v4902
        %5052 = vmatpush.bf16.msra.mxu0 %v4898
        %5053 = vmatpush.bf16.msra.mxu0 %v4894
        %5054 = vmatmul.bf16.gmra.mxu0 %v4739
        %v5055 = vpop.f32.mrf.mxu0
        %v5056 = vadd.f32 %v4790, %v5055
        %v5057 = vpop.f32.mrf.mxu0
        %v5058 = vadd.f32 %v4790, %v5057
        %5059 = vmatmul.bf16.gmra.mxu0 %v4740
        %v5060 = vpop.f32.mrf.mxu0
        %v5061 = vadd.f32 %v4790, %v5060
        %v5062 = vpop.f32.mrf.mxu0
        %v5063 = vadd.f32 %v4790, %v5062
        %5064 = vmatmul.bf16.gmra.mxu0 %v4741
        %v5065 = vpop.f32.mrf.mxu0
        %v5066 = vadd.f32 %v4790, %v5065
        %v5067 = vpop.f32.mrf.mxu0
        %v5068 = vadd.f32 %v4790, %v5067
        %5069 = vmatmul.bf16.gmra.mxu0 %v4742
        %v5070 = vpop.f32.mrf.mxu0
        %v5071 = vadd.f32 %v4790, %v5070
        %v5072 = vpop.f32.mrf.mxu0
        %v5073 = vadd.f32 %v4790, %v5072
        %5074 = vmatmul.bf16.gmra.mxu0 %v4743
        %v5075 = vpop.f32.mrf.mxu0
        %v5076 = vadd.f32 %v4790, %v5075
        %v5077 = vpop.f32.mrf.mxu0
        %v5078 = vadd.f32 %v4790, %v5077
        %5079 = vmatmul.bf16.gmra.mxu0 %v4744
        %v5080 = vpop.f32.mrf.mxu0
        %v5081 = vadd.f32 %v4790, %v5080
        %v5082 = vpop.f32.mrf.mxu0
        %v5083 = vadd.f32 %v4790, %v5082
        %5084 = vmatmul.bf16.gmra.mxu0 %v4745
        %v5085 = vpop.f32.mrf.mxu0
        %v5086 = vadd.f32 %v4790, %v5085
        %v5087 = vpop.f32.mrf.mxu0
        %v5088 = vadd.f32 %v4790, %v5087
        %5089 = vmatmul.bf16.gmra.mxu0 %v4746
        %v5090 = vpop.f32.mrf.mxu0
        %v5091 = vadd.f32 %v4790, %v5090
        %v5092 = vpop.f32.mrf.mxu0
        %v5093 = vadd.f32 %v4790, %v5092
        %5094 = vmatmul.bf16.gmra.mxu0 %v4747
        %v5095 = vpop.f32.mrf.mxu0
        %v5096 = vadd.f32 %v4790, %v5095
        %v5097 = vpop.f32.mrf.mxu0
        %v5098 = vadd.f32 %v4790, %v5097
        %5099 = vmatmul.bf16.gmra.mxu0 %v4748
        %v5100 = vpop.f32.mrf.mxu0
        %v5101 = vadd.f32 %v4790, %v5100
        %v5102 = vpop.f32.mrf.mxu0
        %v5103 = vadd.f32 %v4790, %v5102
        %5104 = vmatmul.bf16.gmra.mxu0 %v4749
        %v5105 = vpop.f32.mrf.mxu0
        %v5106 = vadd.f32 %v4790, %v5105
        %v5107 = vpop.f32.mrf.mxu0
        %v5108 = vadd.f32 %v4790, %v5107
        %5109 = vmatmul.bf16.gmra.mxu0 %v4750
        %v5110 = vpop.f32.mrf.mxu0
        %v5111 = vadd.f32 %v4790, %v5110
        %v5112 = vpop.f32.mrf.mxu0
        %v5113 = vadd.f32 %v4790, %v5112
        %5114 = vmatmul.bf16.gmra.mxu0 %v4751
        %v5115 = vpop.f32.mrf.mxu0
        %v5116 = vadd.f32 %v4790, %v5115
        %v5117 = vpop.f32.mrf.mxu0
        %v5118 = vadd.f32 %v4790, %v5117
        %5119 = vmatmul.bf16.gmra.mxu0 %v4752
        %v5120 = vpop.f32.mrf.mxu0
        %v5121 = vadd.f32 %v4790, %v5120
        %v5122 = vpop.f32.mrf.mxu0
        %v5123 = vadd.f32 %v4790, %v5122
        %5124 = vmatmul.bf16.gmra.mxu0 %v4753
        %v5125 = vpop.f32.mrf.mxu0
        %v5126 = vadd.f32 %v4790, %v5125
        %v5127 = vpop.f32.mrf.mxu0
        %v5128 = vadd.f32 %v4790, %v5127
        %5129 = vmatmul.bf16.gmra.mxu0 %v4754
        %v5130 = vpop.f32.mrf.mxu0
        %v5131 = vadd.f32 %v4790, %v5130
        %v5132 = vpop.f32.mrf.mxu0
        %v5133 = vadd.f32 %v4790, %v5132
        %5134 = vdwg.mxu0
        %5135 = vmatpush.bf16.msra.mxu0 %v4923
        %5136 = vmatpush.bf16.msra.mxu0 %v4919
        %5137 = vmatpush.bf16.msra.mxu0 %v4915
        %5138 = vmatpush.bf16.msra.mxu0 %v4911
        %5139 = vmatpush.bf16.msra.mxu0 %v4907
        %5140 = vmatpush.bf16.msra.mxu0 %v4903
        %5141 = vmatpush.bf16.msra.mxu0 %v4899
        %5142 = vmatpush.bf16.msra.mxu0 %v4895
        %5143 = vmatmul.bf16.gmra.mxu0 %v4739
        %v5144 = vpop.f32.mrf.mxu0
        %v5145 = vadd.f32 %v4791, %v5144
        %v5146 = vpop.f32.mrf.mxu0
        %v5147 = vadd.f32 %v4791, %v5146
        %5148 = vmatmul.bf16.gmra.mxu0 %v4740
        %v5149 = vpop.f32.mrf.mxu0
        %v5150 = vadd.f32 %v4791, %v5149
        %v5151 = vpop.f32.mrf.mxu0
        %v5152 = vadd.f32 %v4791, %v5151
        %5153 = vmatmul.bf16.gmra.mxu0 %v4741
        %v5154 = vpop.f32.mrf.mxu0
        %v5155 = vadd.f32 %v4791, %v5154
        %v5156 = vpop.f32.mrf.mxu0
        %v5157 = vadd.f32 %v4791, %v5156
        %5158 = vmatmul.bf16.gmra.mxu0 %v4742
        %v5159 = vpop.f32.mrf.mxu0
        %v5160 = vadd.f32 %v4791, %v5159
        %v5161 = vpop.f32.mrf.mxu0
        %v5162 = vadd.f32 %v4791, %v5161
        %5163 = vmatmul.bf16.gmra.mxu0 %v4743
        %v5164 = vpop.f32.mrf.mxu0
        %v5165 = vadd.f32 %v4791, %v5164
        %v5166 = vpop.f32.mrf.mxu0
        %v5167 = vadd.f32 %v4791, %v5166
        %5168 = vmatmul.bf16.gmra.mxu0 %v4744
        %v5169 = vpop.f32.mrf.mxu0
        %v5170 = vadd.f32 %v4791, %v5169
        %v5171 = vpop.f32.mrf.mxu0
        %v5172 = vadd.f32 %v4791, %v5171
        %5173 = vmatmul.bf16.gmra.mxu0 %v4745
        %v5174 = vpop.f32.mrf.mxu0
        %v5175 = vadd.f32 %v4791, %v5174
        %v5176 = vpop.f32.mrf.mxu0
        %v5177 = vadd.f32 %v4791, %v5176
        %5178 = vmatmul.bf16.gmra.mxu0 %v4746
        %v5179 = vpop.f32.mrf.mxu0
        %v5180 = vadd.f32 %v4791, %v5179
        %v5181 = vpop.f32.mrf.mxu0
        %v5182 = vadd.f32 %v4791, %v5181
        %5183 = vmatmul.bf16.gmra.mxu0 %v4747
        %v5184 = vpop.f32.mrf.mxu0
        %v5185 = vadd.f32 %v4791, %v5184
        %v5186 = vpop.f32.mrf.mxu0
        %v5187 = vadd.f32 %v4791, %v5186
        %5188 = vmatmul.bf16.gmra.mxu0 %v4748
        %v5189 = vpop.f32.mrf.mxu0
        %v5190 = vadd.f32 %v4791, %v5189
        %v5191 = vpop.f32.mrf.mxu0
        %v5192 = vadd.f32 %v4791, %v5191
        %5193 = vmatmul.bf16.gmra.mxu0 %v4749
        %v5194 = vpop.f32.mrf.mxu0
        %v5195 = vadd.f32 %v4791, %v5194
        %v5196 = vpop.f32.mrf.mxu0
        %v5197 = vadd.f32 %v4791, %v5196
        %5198 = vmatmul.bf16.gmra.mxu0 %v4750
        %v5199 = vpop.f32.mrf.mxu0
        %v5200 = vadd.f32 %v4791, %v5199
        %v5201 = vpop.f32.mrf.mxu0
        %v5202 = vadd.f32 %v4791, %v5201
        %5203 = vmatmul.bf16.gmra.mxu0 %v4751
        %v5204 = vpop.f32.mrf.mxu0
        %v5205 = vadd.f32 %v4791, %v5204
        %v5206 = vpop.f32.mrf.mxu0
        %v5207 = vadd.f32 %v4791, %v5206
        %5208 = vmatmul.bf16.gmra.mxu0 %v4752
        %v5209 = vpop.f32.mrf.mxu0
        %v5210 = vadd.f32 %v4791, %v5209
        %v5211 = vpop.f32.mrf.mxu0
        %v5212 = vadd.f32 %v4791, %v5211
        %5213 = vmatmul.bf16.gmra.mxu0 %v4753
        %v5214 = vpop.f32.mrf.mxu0
        %v5215 = vadd.f32 %v4791, %v5214
        %v5216 = vpop.f32.mrf.mxu0
        %v5217 = vadd.f32 %v4791, %v5216
        %5218 = vmatmul.bf16.gmra.mxu0 %v4754
        %v5219 = vpop.f32.mrf.mxu0
        %v5220 = vadd.f32 %v4791, %v5219
        %v5221 = vpop.f32.mrf.mxu0
        %v5222 = vadd.f32 %v4791, %v5221
        %5223 = vdwg.mxu0
        %5224 = vmatpush.bf16.msra.mxu0 %v4924
        %5225 = vmatpush.bf16.msra.mxu0 %v4920
        %5226 = vmatpush.bf16.msra.mxu0 %v4916
        %5227 = vmatpush.bf16.msra.mxu0 %v4912
        %5228 = vmatpush.bf16.msra.mxu0 %v4908
        %5229 = vmatpush.bf16.msra.mxu0 %v4904
        %5230 = vmatpush.bf16.msra.mxu0 %v4900
        %5231 = vmatpush.bf16.msra.mxu0 %v4896
        %5232 = vmatmul.bf16.gmra.mxu0 %v4739
        %v5233 = vpop.f32.mrf.mxu0
        %v5234 = vadd.f32 %v4792, %v5233
        %v5235 = vpop.f32.mrf.mxu0
        %v5236 = vadd.f32 %v4792, %v5235
        %5237 = vmatmul.bf16.gmra.mxu0 %v4740
        %v5238 = vpop.f32.mrf.mxu0
        %v5239 = vadd.f32 %v4792, %v5238
        %v5240 = vpop.f32.mrf.mxu0
        %v5241 = vadd.f32 %v4792, %v5240
        %5242 = vmatmul.bf16.gmra.mxu0 %v4741
        %v5243 = vpop.f32.mrf.mxu0
        %v5244 = vadd.f32 %v4792, %v5243
        %v5245 = vpop.f32.mrf.mxu0
        %v5246 = vadd.f32 %v4792, %v5245
        %5247 = vmatmul.bf16.gmra.mxu0 %v4742
        %v5248 = vpop.f32.mrf.mxu0
        %v5249 = vadd.f32 %v4792, %v5248
        %v5250 = vpop.f32.mrf.mxu0
        %v5251 = vadd.f32 %v4792, %v5250
        %5252 = vmatmul.bf16.gmra.mxu0 %v4743
        %v5253 = vpop.f32.mrf.mxu0
        %v5254 = vadd.f32 %v4792, %v5253
        %v5255 = vpop.f32.mrf.mxu0
        %v5256 = vadd.f32 %v4792, %v5255
        %5257 = vmatmul.bf16.gmra.mxu0 %v4744
        %v5258 = vpop.f32.mrf.mxu0
        %v5259 = vadd.f32 %v4792, %v5258
        %v5260 = vpop.f32.mrf.mxu0
        %v5261 = vadd.f32 %v4792, %v5260
        %5262 = vmatmul.bf16.gmra.mxu0 %v4745
        %v5263 = vpop.f32.mrf.mxu0
        %v5264 = vadd.f32 %v4792, %v5263
        %v5265 = vpop.f32.mrf.mxu0
        %v5266 = vadd.f32 %v4792, %v5265
        %5267 = vmatmul.bf16.gmra.mxu0 %v4746
        %v5268 = vpop.f32.mrf.mxu0
        %v5269 = vadd.f32 %v4792, %v5268
        %v5270 = vpop.f32.mrf.mxu0
        %v5271 = vadd.f32 %v4792, %v5270
        %5272 = vmatmul.bf16.gmra.mxu0 %v4747
        %v5273 = vpop.f32.mrf.mxu0
        %v5274 = vadd.f32 %v4792, %v5273
        %v5275 = vpop.f32.mrf.mxu0
        %v5276 = vadd.f32 %v4792, %v5275
        %5277 = vmatmul.bf16.gmra.mxu0 %v4748
        %v5278 = vpop.f32.mrf.mxu0
        %v5279 = vadd.f32 %v4792, %v5278
        %v5280 = vpop.f32.mrf.mxu0
        %v5281 = vadd.f32 %v4792, %v5280
        %5282 = vmatmul.bf16.gmra.mxu0 %v4749
        %v5283 = vpop.f32.mrf.mxu0
        %v5284 = vadd.f32 %v4792, %v5283
        %v5285 = vpop.f32.mrf.mxu0
        %v5286 = vadd.f32 %v4792, %v5285
        %5287 = vmatmul.bf16.gmra.mxu0 %v4750
        %v5288 = vpop.f32.mrf.mxu0
        %v5289 = vadd.f32 %v4792, %v5288
        %v5290 = vpop.f32.mrf.mxu0
        %v5291 = vadd.f32 %v4792, %v5290
        %5292 = vmatmul.bf16.gmra.mxu0 %v4751
        %v5293 = vpop.f32.mrf.mxu0
        %v5294 = vadd.f32 %v4792, %v5293
        %v5295 = vpop.f32.mrf.mxu0
        %v5296 = vadd.f32 %v4792, %v5295
        %5297 = vmatmul.bf16.gmra.mxu0 %v4752
        %v5298 = vpop.f32.mrf.mxu0
        %v5299 = vadd.f32 %v4792, %v5298
        %v5300 = vpop.f32.mrf.mxu0
        %v5301 = vadd.f32 %v4792, %v5300
        %5302 = vmatmul.bf16.gmra.mxu0 %v4753
        %v5303 = vpop.f32.mrf.mxu0
        %v5304 = vadd.f32 %v4792, %v5303
        %v5305 = vpop.f32.mrf.mxu0
        %v5306 = vadd.f32 %v4792, %v5305
        %5307 = vmatmul.bf16.gmra.mxu0 %v4754
        %v5308 = vpop.f32.mrf.mxu0
        %v5309 = vadd.f32 %v4792, %v5308
        %v5310 = vpop.f32.mrf.mxu0
        %v5311 = vadd.f32 %v4792, %v5310
        %5312 = vdwg.mxu0
        %v5313 = vmax.f32 %v4967, %v5056
        %v5314 = vmax.f32 %v5313, %v5145
        %v5315 = vmax.f32 %v5314, %v5234
        %5316 = vmax.xlane.f32.xlu0 %v5315
        %v5317 = vpop.xlane.xlu0 %5316
        %v5318 = vmax.f32 %v4969, %v5058
        %v5319 = vmax.f32 %v5318, %v5147
        %v5320 = vmax.f32 %v5319, %v5236
        %5321 = vmax.xlane.f32.xlu0 %v5320
        %v5322 = vpop.xlane.xlu0 %5321
        %v5323 = vmax.f32 %v4972, %v5061
        %v5324 = vmax.f32 %v5323, %v5150
        %v5325 = vmax.f32 %v5324, %v5239
        %5326 = vmax.xlane.f32.xlu0 %v5325
        %v5327 = vpop.xlane.xlu0 %5326
        %v5328 = vmax.f32 %v4974, %v5063
        %v5329 = vmax.f32 %v5328, %v5152
        %v5330 = vmax.f32 %v5329, %v5241
        %5331 = vmax.xlane.f32.xlu0 %v5330
        %v5332 = vpop.xlane.xlu0 %5331
        %v5333 = vmax.f32 %v4977, %v5066
        %v5334 = vmax.f32 %v5333, %v5155
        %v5335 = vmax.f32 %v5334, %v5244
        %5336 = vmax.xlane.f32.xlu0 %v5335
        %v5337 = vpop.xlane.xlu0 %5336
        %v5338 = vmax.f32 %v4979, %v5068
        %v5339 = vmax.f32 %v5338, %v5157
        %v5340 = vmax.f32 %v5339, %v5246
        %5341 = vmax.xlane.f32.xlu0 %v5340
        %v5342 = vpop.xlane.xlu0 %5341
        %v5343 = vmax.f32 %v4982, %v5071
        %v5344 = vmax.f32 %v5343, %v5160
        %v5345 = vmax.f32 %v5344, %v5249
        %5346 = vmax.xlane.f32.xlu0 %v5345
        %v5347 = vpop.xlane.xlu0 %5346
        %v5348 = vmax.f32 %v4984, %v5073
        %v5349 = vmax.f32 %v5348, %v5162
        %v5350 = vmax.f32 %v5349, %v5251
        %5351 = vmax.xlane.f32.xlu0 %v5350
        %v5352 = vpop.xlane.xlu0 %5351
        %v5353 = vmax.f32 %v4987, %v5076
        %v5354 = vmax.f32 %v5353, %v5165
        %v5355 = vmax.f32 %v5354, %v5254
        %5356 = vmax.xlane.f32.xlu0 %v5355
        %v5357 = vpop.xlane.xlu0 %5356
        %v5358 = vmax.f32 %v4989, %v5078
        %v5359 = vmax.f32 %v5358, %v5167
        %v5360 = vmax.f32 %v5359, %v5256
        %5361 = vmax.xlane.f32.xlu0 %v5360
        %v5362 = vpop.xlane.xlu0 %5361
        %v5363 = vmax.f32 %v4992, %v5081
        %v5364 = vmax.f32 %v5363, %v5170
        %v5365 = vmax.f32 %v5364, %v5259
        %5366 = vmax.xlane.f32.xlu0 %v5365
        %v5367 = vpop.xlane.xlu0 %5366
        %v5368 = vmax.f32 %v4994, %v5083
        %v5369 = vmax.f32 %v5368, %v5172
        %v5370 = vmax.f32 %v5369, %v5261
        %5371 = vmax.xlane.f32.xlu0 %v5370
        %v5372 = vpop.xlane.xlu0 %5371
        %v5373 = vmax.f32 %v4997, %v5086
        %v5374 = vmax.f32 %v5373, %v5175
        %v5375 = vmax.f32 %v5374, %v5264
        %5376 = vmax.xlane.f32.xlu0 %v5375
        %v5377 = vpop.xlane.xlu0 %5376
        %v5378 = vmax.f32 %v4999, %v5088
        %v5379 = vmax.f32 %v5378, %v5177
        %v5380 = vmax.f32 %v5379, %v5266
        %5381 = vmax.xlane.f32.xlu0 %v5380
        %v5382 = vpop.xlane.xlu0 %5381
        %v5383 = vmax.f32 %v5002, %v5091
        %v5384 = vmax.f32 %v5383, %v5180
        %v5385 = vmax.f32 %v5384, %v5269
        %5386 = vmax.xlane.f32.xlu0 %v5385
        %v5387 = vpop.xlane.xlu0 %5386
        %v5388 = vmax.f32 %v5004, %v5093
        %v5389 = vmax.f32 %v5388, %v5182
        %v5390 = vmax.f32 %v5389, %v5271
        %5391 = vmax.xlane.f32.xlu0 %v5390
        %v5392 = vpop.xlane.xlu0 %5391
        %v5393 = vmax.f32 %v5007, %v5096
        %v5394 = vmax.f32 %v5393, %v5185
        %v5395 = vmax.f32 %v5394, %v5274
        %5396 = vmax.xlane.f32.xlu0 %v5395
        %v5397 = vpop.xlane.xlu0 %5396
        %v5398 = vmax.f32 %v5009, %v5098
        %v5399 = vmax.f32 %v5398, %v5187
        %v5400 = vmax.f32 %v5399, %v5276
        %5401 = vmax.xlane.f32.xlu0 %v5400
        %v5402 = vpop.xlane.xlu0 %5401
        %v5403 = vmax.f32 %v5012, %v5101
        %v5404 = vmax.f32 %v5403, %v5190
        %v5405 = vmax.f32 %v5404, %v5279
        %5406 = vmax.xlane.f32.xlu0 %v5405
        %v5407 = vpop.xlane.xlu0 %5406
        %v5408 = vmax.f32 %v5014, %v5103
        %v5409 = vmax.f32 %v5408, %v5192
        %v5410 = vmax.f32 %v5409, %v5281
        %5411 = vmax.xlane.f32.xlu0 %v5410
        %v5412 = vpop.xlane.xlu0 %5411
        %v5413 = vmax.f32 %v5017, %v5106
        %v5414 = vmax.f32 %v5413, %v5195
        %v5415 = vmax.f32 %v5414, %v5284
        %5416 = vmax.xlane.f32.xlu0 %v5415
        %v5417 = vpop.xlane.xlu0 %5416
        %v5418 = vmax.f32 %v5019, %v5108
        %v5419 = vmax.f32 %v5418, %v5197
        %v5420 = vmax.f32 %v5419, %v5286
        %5421 = vmax.xlane.f32.xlu0 %v5420
        %v5422 = vpop.xlane.xlu0 %5421
        %v5423 = vmax.f32 %v5022, %v5111
        %v5424 = vmax.f32 %v5423, %v5200
        %v5425 = vmax.f32 %v5424, %v5289
        %5426 = vmax.xlane.f32.xlu0 %v5425
        %v5427 = vpop.xlane.xlu0 %5426
        %v5428 = vmax.f32 %v5024, %v5113
        %v5429 = vmax.f32 %v5428, %v5202
        %v5430 = vmax.f32 %v5429, %v5291
        %5431 = vmax.xlane.f32.xlu0 %v5430
        %v5432 = vpop.xlane.xlu0 %5431
        %v5433 = vmax.f32 %v5027, %v5116
        %v5434 = vmax.f32 %v5433, %v5205
        %v5435 = vmax.f32 %v5434, %v5294
        %5436 = vmax.xlane.f32.xlu0 %v5435
        %v5437 = vpop.xlane.xlu0 %5436
        %v5438 = vmax.f32 %v5029, %v5118
        %v5439 = vmax.f32 %v5438, %v5207
        %v5440 = vmax.f32 %v5439, %v5296
        %5441 = vmax.xlane.f32.xlu0 %v5440
        %v5442 = vpop.xlane.xlu0 %5441
        %v5443 = vmax.f32 %v5032, %v5121
        %v5444 = vmax.f32 %v5443, %v5210
        %v5445 = vmax.f32 %v5444, %v5299
        %5446 = vmax.xlane.f32.xlu0 %v5445
        %v5447 = vpop.xlane.xlu0 %5446
        %v5448 = vmax.f32 %v5034, %v5123
        %v5449 = vmax.f32 %v5448, %v5212
        %v5450 = vmax.f32 %v5449, %v5301
        %5451 = vmax.xlane.f32.xlu0 %v5450
        %v5452 = vpop.xlane.xlu0 %5451
        %v5453 = vmax.f32 %v5037, %v5126
        %v5454 = vmax.f32 %v5453, %v5215
        %v5455 = vmax.f32 %v5454, %v5304
        %5456 = vmax.xlane.f32.xlu0 %v5455
        %v5457 = vpop.xlane.xlu0 %5456
        %v5458 = vmax.f32 %v5039, %v5128
        %v5459 = vmax.f32 %v5458, %v5217
        %v5460 = vmax.f32 %v5459, %v5306
        %5461 = vmax.xlane.f32.xlu0 %v5460
        %v5462 = vpop.xlane.xlu0 %5461
        %v5463 = vmax.f32 %v5042, %v5131
        %v5464 = vmax.f32 %v5463, %v5220
        %v5465 = vmax.f32 %v5464, %v5309
        %5466 = vmax.xlane.f32.xlu0 %v5465
        %v5467 = vpop.xlane.xlu0 %5466
        %v5468 = vmax.f32 %v5044, %v5133
        %v5469 = vmax.f32 %v5468, %v5222
        %v5470 = vmax.f32 %v5469, %v5311
        %5471 = vmax.xlane.f32.xlu0 %v5470
        %v5472 = vpop.xlane.xlu0 %5471
        %v5473 = vsub.f32 %v4967, %v5317
        %v5474 = vsub.f32 %v5056, %v5317
        %v5475 = vsub.f32 %v5145, %v5317
        %v5476 = vsub.f32 %v5234, %v5317
        %v5477 = vsub.f32 %v4969, %v5322
        %v5478 = vsub.f32 %v5058, %v5322
        %v5479 = vsub.f32 %v5147, %v5322
        %v5480 = vsub.f32 %v5236, %v5322
        %v5481 = vsub.f32 %v4972, %v5327
        %v5482 = vsub.f32 %v5061, %v5327
        %v5483 = vsub.f32 %v5150, %v5327
        %v5484 = vsub.f32 %v5239, %v5327
        %v5485 = vsub.f32 %v4974, %v5332
        %v5486 = vsub.f32 %v5063, %v5332
        %v5487 = vsub.f32 %v5152, %v5332
        %v5488 = vsub.f32 %v5241, %v5332
        %v5489 = vsub.f32 %v4977, %v5337
        %v5490 = vsub.f32 %v5066, %v5337
        %v5491 = vsub.f32 %v5155, %v5337
        %v5492 = vsub.f32 %v5244, %v5337
        %v5493 = vsub.f32 %v4979, %v5342
        %v5494 = vsub.f32 %v5068, %v5342
        %v5495 = vsub.f32 %v5157, %v5342
        %v5496 = vsub.f32 %v5246, %v5342
        %v5497 = vsub.f32 %v4982, %v5347
        %v5498 = vsub.f32 %v5071, %v5347
        %v5499 = vsub.f32 %v5160, %v5347
        %v5500 = vsub.f32 %v5249, %v5347
        %v5501 = vsub.f32 %v4984, %v5352
        %v5502 = vsub.f32 %v5073, %v5352
        %v5503 = vsub.f32 %v5162, %v5352
        %v5504 = vsub.f32 %v5251, %v5352
        %v5505 = vsub.f32 %v4987, %v5357
        %v5506 = vsub.f32 %v5076, %v5357
        %v5507 = vsub.f32 %v5165, %v5357
        %v5508 = vsub.f32 %v5254, %v5357
        %v5509 = vsub.f32 %v4989, %v5362
        %v5510 = vsub.f32 %v5078, %v5362
        %v5511 = vsub.f32 %v5167, %v5362
        %v5512 = vsub.f32 %v5256, %v5362
        %v5513 = vsub.f32 %v4992, %v5367
        %v5514 = vsub.f32 %v5081, %v5367
        %v5515 = vsub.f32 %v5170, %v5367
        %v5516 = vsub.f32 %v5259, %v5367
        %v5517 = vsub.f32 %v4994, %v5372
        %v5518 = vsub.f32 %v5083, %v5372
        %v5519 = vsub.f32 %v5172, %v5372
        %v5520 = vsub.f32 %v5261, %v5372
        %v5521 = vsub.f32 %v4997, %v5377
        %v5522 = vsub.f32 %v5086, %v5377
        %v5523 = vsub.f32 %v5175, %v5377
        %v5524 = vsub.f32 %v5264, %v5377
        %v5525 = vsub.f32 %v4999, %v5382
        %v5526 = vsub.f32 %v5088, %v5382
        %v5527 = vsub.f32 %v5177, %v5382
        %v5528 = vsub.f32 %v5266, %v5382
        %v5529 = vsub.f32 %v5002, %v5387
        %v5530 = vsub.f32 %v5091, %v5387
        %v5531 = vsub.f32 %v5180, %v5387
        %v5532 = vsub.f32 %v5269, %v5387
        %v5533 = vsub.f32 %v5004, %v5392
        %v5534 = vsub.f32 %v5093, %v5392
        %v5535 = vsub.f32 %v5182, %v5392
        %v5536 = vsub.f32 %v5271, %v5392
        %v5537 = vsub.f32 %v5007, %v5397
        %v5538 = vsub.f32 %v5096, %v5397
        %v5539 = vsub.f32 %v5185, %v5397
        %v5540 = vsub.f32 %v5274, %v5397
        %v5541 = vsub.f32 %v5009, %v5402
        %v5542 = vsub.f32 %v5098, %v5402
        %v5543 = vsub.f32 %v5187, %v5402
        %v5544 = vsub.f32 %v5276, %v5402
        %v5545 = vsub.f32 %v5012, %v5407
        %v5546 = vsub.f32 %v5101, %v5407
        %v5547 = vsub.f32 %v5190, %v5407
        %v5548 = vsub.f32 %v5279, %v5407
        %v5549 = vsub.f32 %v5014, %v5412
        %v5550 = vsub.f32 %v5103, %v5412
        %v5551 = vsub.f32 %v5192, %v5412
        %v5552 = vsub.f32 %v5281, %v5412
        %v5553 = vsub.f32 %v5017, %v5417
        %v5554 = vsub.f32 %v5106, %v5417
        %v5555 = vsub.f32 %v5195, %v5417
        %v5556 = vsub.f32 %v5284, %v5417
        %v5557 = vsub.f32 %v5019, %v5422
        %v5558 = vsub.f32 %v5108, %v5422
        %v5559 = vsub.f32 %v5197, %v5422
        %v5560 = vsub.f32 %v5286, %v5422
        %v5561 = vsub.f32 %v5022, %v5427
        %v5562 = vsub.f32 %v5111, %v5427
        %v5563 = vsub.f32 %v5200, %v5427
        %v5564 = vsub.f32 %v5289, %v5427
        %v5565 = vsub.f32 %v5024, %v5432
        %v5566 = vsub.f32 %v5113, %v5432
        %v5567 = vsub.f32 %v5202, %v5432
        %v5568 = vsub.f32 %v5291, %v5432
        %v5569 = vsub.f32 %v5027, %v5437
        %v5570 = vsub.f32 %v5116, %v5437
        %v5571 = vsub.f32 %v5205, %v5437
        %v5572 = vsub.f32 %v5294, %v5437
        %v5573 = vsub.f32 %v5029, %v5442
        %v5574 = vsub.f32 %v5118, %v5442
        %v5575 = vsub.f32 %v5207, %v5442
        %v5576 = vsub.f32 %v5296, %v5442
        %v5577 = vsub.f32 %v5032, %v5447
        %v5578 = vsub.f32 %v5121, %v5447
        %v5579 = vsub.f32 %v5210, %v5447
        %v5580 = vsub.f32 %v5299, %v5447
        %v5581 = vsub.f32 %v5034, %v5452
        %v5582 = vsub.f32 %v5123, %v5452
        %v5583 = vsub.f32 %v5212, %v5452
        %v5584 = vsub.f32 %v5301, %v5452
        %v5585 = vsub.f32 %v5037, %v5457
        %v5586 = vsub.f32 %v5126, %v5457
        %v5587 = vsub.f32 %v5215, %v5457
        %v5588 = vsub.f32 %v5304, %v5457
        %v5589 = vsub.f32 %v5039, %v5462
        %v5590 = vsub.f32 %v5128, %v5462
        %v5591 = vsub.f32 %v5217, %v5462
        %v5592 = vsub.f32 %v5306, %v5462
        %v5593 = vsub.f32 %v5042, %v5467
        %v5594 = vsub.f32 %v5131, %v5467
        %v5595 = vsub.f32 %v5220, %v5467
        %v5596 = vsub.f32 %v5309, %v5467
        %v5597 = vsub.f32 %v5044, %v5472
        %v5598 = vsub.f32 %v5133, %v5472
        %v5599 = vsub.f32 %v5222, %v5472
        %v5600 = vsub.f32 %v5311, %v5472
        %v5601 = vmul.f32 %v5473, 1.442695
        %v5602 = vpow.pop %v5601
        %v5603 = vmul.f32 %v5474, 1.442695
        %v5604 = vpow.pop %v5603
        %v5605 = vmul.f32 %v5475, 1.442695
        %v5606 = vpow.pop %v5605
        %v5607 = vmul.f32 %v5476, 1.442695
        %v5608 = vpow.pop %v5607
        %v5609 = vmul.f32 %v5477, 1.442695
        %v5610 = vpow.pop %v5609
        %v5611 = vmul.f32 %v5478, 1.442695
        %v5612 = vpow.pop %v5611
        %v5613 = vmul.f32 %v5479, 1.442695
        %v5614 = vpow.pop %v5613
        %v5615 = vmul.f32 %v5480, 1.442695
        %v5616 = vpow.pop %v5615
        %v5617 = vmul.f32 %v5481, 1.442695
        %v5618 = vpow.pop %v5617
        %v5619 = vmul.f32 %v5482, 1.442695
        %v5620 = vpow.pop %v5619
        %v5621 = vmul.f32 %v5483, 1.442695
        %v5622 = vpow.pop %v5621
        %v5623 = vmul.f32 %v5484, 1.442695
        %v5624 = vpow.pop %v5623
        %v5625 = vmul.f32 %v5485, 1.442695
        %v5626 = vpow.pop %v5625
        %v5627 = vmul.f32 %v5486, 1.442695
        %v5628 = vpow.pop %v5627
        %v5629 = vmul.f32 %v5487, 1.442695
        %v5630 = vpow.pop %v5629
        %v5631 = vmul.f32 %v5488, 1.442695
        %v5632 = vpow.pop %v5631
        %v5633 = vmul.f32 %v5489, 1.442695
        %v5634 = vpow.pop %v5633
        %v5635 = vmul.f32 %v5490, 1.442695
        %v5636 = vpow.pop %v5635
        %v5637 = vmul.f32 %v5491, 1.442695
        %v5638 = vpow.pop %v5637
        %v5639 = vmul.f32 %v5492, 1.442695
        %v5640 = vpow.pop %v5639
        %v5641 = vmul.f32 %v5493, 1.442695
        %v5642 = vpow.pop %v5641
        %v5643 = vmul.f32 %v5494, 1.442695
        %v5644 = vpow.pop %v5643
        %v5645 = vmul.f32 %v5495, 1.442695
        %v5646 = vpow.pop %v5645
        %v5647 = vmul.f32 %v5496, 1.442695
        %v5648 = vpow.pop %v5647
        %v5649 = vmul.f32 %v5497, 1.442695
        %v5650 = vpow.pop %v5649
        %v5651 = vmul.f32 %v5498, 1.442695
        %v5652 = vpow.pop %v5651
        %v5653 = vmul.f32 %v5499, 1.442695
        %v5654 = vpow.pop %v5653
        %v5655 = vmul.f32 %v5500, 1.442695
        %v5656 = vpow.pop %v5655
        %v5657 = vmul.f32 %v5501, 1.442695
        %v5658 = vpow.pop %v5657
        %v5659 = vmul.f32 %v5502, 1.442695
        %v5660 = vpow.pop %v5659
        %v5661 = vmul.f32 %v5503, 1.442695
        %v5662 = vpow.pop %v5661
        %v5663 = vmul.f32 %v5504, 1.442695
        %v5664 = vpow.pop %v5663
        %v5665 = vmul.f32 %v5505, 1.442695
        %v5666 = vpow.pop %v5665
        %v5667 = vmul.f32 %v5506, 1.442695
        %v5668 = vpow.pop %v5667
        %v5669 = vmul.f32 %v5507, 1.442695
        %v5670 = vpow.pop %v5669
        %v5671 = vmul.f32 %v5508, 1.442695
        %v5672 = vpow.pop %v5671
        %v5673 = vmul.f32 %v5509, 1.442695
        %v5674 = vpow.pop %v5673
        %v5675 = vmul.f32 %v5510, 1.442695
        %v5676 = vpow.pop %v5675
        %v5677 = vmul.f32 %v5511, 1.442695
        %v5678 = vpow.pop %v5677
        %v5679 = vmul.f32 %v5512, 1.442695
        %v5680 = vpow.pop %v5679
        %v5681 = vmul.f32 %v5513, 1.442695
        %v5682 = vpow.pop %v5681
        %v5683 = vmul.f32 %v5514, 1.442695
        %v5684 = vpow.pop %v5683
        %v5685 = vmul.f32 %v5515, 1.442695
        %v5686 = vpow.pop %v5685
        %v5687 = vmul.f32 %v5516, 1.442695
        %v5688 = vpow.pop %v5687
        %v5689 = vmul.f32 %v5517, 1.442695
        %v5690 = vpow.pop %v5689
        %v5691 = vmul.f32 %v5518, 1.442695
        %v5692 = vpow.pop %v5691
        %v5693 = vmul.f32 %v5519, 1.442695
        %v5694 = vpow.pop %v5693
        %v5695 = vmul.f32 %v5520, 1.442695
        %v5696 = vpow.pop %v5695
        %v5697 = vmul.f32 %v5521, 1.442695
        %v5698 = vpow.pop %v5697
        %v5699 = vmul.f32 %v5522, 1.442695
        %v5700 = vpow.pop %v5699
        %v5701 = vmul.f32 %v5523, 1.442695
        %v5702 = vpow.pop %v5701
        %v5703 = vmul.f32 %v5524, 1.442695
        %v5704 = vpow.pop %v5703
        %v5705 = vmul.f32 %v5525, 1.442695
        %v5706 = vpow.pop %v5705
        %v5707 = vmul.f32 %v5526, 1.442695
        %v5708 = vpow.pop %v5707
        %v5709 = vmul.f32 %v5527, 1.442695
        %v5710 = vpow.pop %v5709
        %v5711 = vmul.f32 %v5528, 1.442695
        %v5712 = vpow.pop %v5711
        %v5713 = vmul.f32 %v5529, 1.442695
        %v5714 = vpow.pop %v5713
        %v5715 = vmul.f32 %v5530, 1.442695
        %v5716 = vpow.pop %v5715
        %v5717 = vmul.f32 %v5531, 1.442695
        %v5718 = vpow.pop %v5717
        %v5719 = vmul.f32 %v5532, 1.442695
        %v5720 = vpow.pop %v5719
        %v5721 = vmul.f32 %v5533, 1.442695
        %v5722 = vpow.pop %v5721
        %v5723 = vmul.f32 %v5534, 1.442695
        %v5724 = vpow.pop %v5723
        %v5725 = vmul.f32 %v5535, 1.442695
        %v5726 = vpow.pop %v5725
        %v5727 = vmul.f32 %v5536, 1.442695
        %v5728 = vpow.pop %v5727
        %v5729 = vmul.f32 %v5537, 1.442695
        %v5730 = vpow.pop %v5729
        %v5731 = vmul.f32 %v5538, 1.442695
        %v5732 = vpow.pop %v5731
        %v5733 = vmul.f32 %v5539, 1.442695
        %v5734 = vpow.pop %v5733
        %v5735 = vmul.f32 %v5540, 1.442695
        %v5736 = vpow.pop %v5735
        %v5737 = vmul.f32 %v5541, 1.442695
        %v5738 = vpow.pop %v5737
        %v5739 = vmul.f32 %v5542, 1.442695
        %v5740 = vpow.pop %v5739
        %v5741 = vmul.f32 %v5543, 1.442695
        %v5742 = vpow.pop %v5741
        %v5743 = vmul.f32 %v5544, 1.442695
        %v5744 = vpow.pop %v5743
        %v5745 = vmul.f32 %v5545, 1.442695
        %v5746 = vpow.pop %v5745
        %v5747 = vmul.f32 %v5546, 1.442695
        %v5748 = vpow.pop %v5747
        %v5749 = vmul.f32 %v5547, 1.442695
        %v5750 = vpow.pop %v5749
        %v5751 = vmul.f32 %v5548, 1.442695
        %v5752 = vpow.pop %v5751
        %v5753 = vmul.f32 %v5549, 1.442695
        %v5754 = vpow.pop %v5753
        %v5755 = vmul.f32 %v5550, 1.442695
        %v5756 = vpow.pop %v5755
        %v5757 = vmul.f32 %v5551, 1.442695
        %v5758 = vpow.pop %v5757
        %v5759 = vmul.f32 %v5552, 1.442695
        %v5760 = vpow.pop %v5759
        %v5761 = vmul.f32 %v5553, 1.442695
        %v5762 = vpow.pop %v5761
        %v5763 = vmul.f32 %v5554, 1.442695
        %v5764 = vpow.pop %v5763
        %v5765 = vmul.f32 %v5555, 1.442695
        %v5766 = vpow.pop %v5765
        %v5767 = vmul.f32 %v5556, 1.442695
        %v5768 = vpow.pop %v5767
        %v5769 = vmul.f32 %v5557, 1.442695
        %v5770 = vpow.pop %v5769
        %v5771 = vmul.f32 %v5558, 1.442695
        %v5772 = vpow.pop %v5771
        %v5773 = vmul.f32 %v5559, 1.442695
        %v5774 = vpow.pop %v5773
        %v5775 = vmul.f32 %v5560, 1.442695
        %v5776 = vpow.pop %v5775
        %v5777 = vmul.f32 %v5561, 1.442695
        %v5778 = vpow.pop %v5777
        %v5779 = vmul.f32 %v5562, 1.442695
        %v5780 = vpow.pop %v5779
        %v5781 = vmul.f32 %v5563, 1.442695
        %v5782 = vpow.pop %v5781
        %v5783 = vmul.f32 %v5564, 1.442695
        %v5784 = vpow.pop %v5783
        %v5785 = vmul.f32 %v5565, 1.442695
        %v5786 = vpow.pop %v5785
        %v5787 = vmul.f32 %v5566, 1.442695
        %v5788 = vpow.pop %v5787
        %v5789 = vmul.f32 %v5567, 1.442695
        %v5790 = vpow.pop %v5789
        %v5791 = vmul.f32 %v5568, 1.442695
        %v5792 = vpow.pop %v5791
        %v5793 = vmul.f32 %v5569, 1.442695
        %v5794 = vpow.pop %v5793
        %v5795 = vmul.f32 %v5570, 1.442695
        %v5796 = vpow.pop %v5795
        %v5797 = vmul.f32 %v5571, 1.442695
        %v5798 = vpow.pop %v5797
        %v5799 = vmul.f32 %v5572, 1.442695
        %v5800 = vpow.pop %v5799
        %v5801 = vmul.f32 %v5573, 1.442695
        %v5802 = vpow.pop %v5801
        %v5803 = vmul.f32 %v5574, 1.442695
        %v5804 = vpow.pop %v5803
        %v5805 = vmul.f32 %v5575, 1.442695
        %v5806 = vpow.pop %v5805
        %v5807 = vmul.f32 %v5576, 1.442695
        %v5808 = vpow.pop %v5807
        %v5809 = vmul.f32 %v5577, 1.442695
        %v5810 = vpow.pop %v5809
        %v5811 = vmul.f32 %v5578, 1.442695
        %v5812 = vpow.pop %v5811
        %v5813 = vmul.f32 %v5579, 1.442695
        %v5814 = vpow.pop %v5813
        %v5815 = vmul.f32 %v5580, 1.442695
        %v5816 = vpow.pop %v5815
        %v5817 = vmul.f32 %v5581, 1.442695
        %v5818 = vpow.pop %v5817
        %v5819 = vmul.f32 %v5582, 1.442695
        %v5820 = vpow.pop %v5819
        %v5821 = vmul.f32 %v5583, 1.442695
        %v5822 = vpow.pop %v5821
        %v5823 = vmul.f32 %v5584, 1.442695
        %v5824 = vpow.pop %v5823
        %v5825 = vmul.f32 %v5585, 1.442695
        %v5826 = vpow.pop %v5825
        %v5827 = vmul.f32 %v5586, 1.442695
        %v5828 = vpow.pop %v5827
        %v5829 = vmul.f32 %v5587, 1.442695
        %v5830 = vpow.pop %v5829
        %v5831 = vmul.f32 %v5588, 1.442695
        %v5832 = vpow.pop %v5831
        %v5833 = vmul.f32 %v5589, 1.442695
        %v5834 = vpow.pop %v5833
        %v5835 = vmul.f32 %v5590, 1.442695
        %v5836 = vpow.pop %v5835
        %v5837 = vmul.f32 %v5591, 1.442695
        %v5838 = vpow.pop %v5837
        %v5839 = vmul.f32 %v5592, 1.442695
        %v5840 = vpow.pop %v5839
        %v5841 = vmul.f32 %v5593, 1.442695
        %v5842 = vpow.pop %v5841
        %v5843 = vmul.f32 %v5594, 1.442695
        %v5844 = vpow.pop %v5843
        %v5845 = vmul.f32 %v5595, 1.442695
        %v5846 = vpow.pop %v5845
        %v5847 = vmul.f32 %v5596, 1.442695
        %v5848 = vpow.pop %v5847
        %v5849 = vmul.f32 %v5597, 1.442695
        %v5850 = vpow.pop %v5849
        %v5851 = vmul.f32 %v5598, 1.442695
        %v5852 = vpow.pop %v5851
        %v5853 = vmul.f32 %v5599, 1.442695
        %v5854 = vpow.pop %v5853
        %v5855 = vmul.f32 %v5600, 1.442695
        %v5856 = vpow.pop %v5855
        %v5857 = vadd.f32 %v5602, %v5604
        %v5858 = vadd.f32 %v5857, %v5606
        %v5859 = vadd.f32 %v5858, %v5608
        %5860 = vadd.xlane.f32.xlu0 %v5859
        %v5861 = vpop.xlane.xlu0 %5860
        %v5862 = vadd.f32 %v5610, %v5612
        %v5863 = vadd.f32 %v5862, %v5614
        %v5864 = vadd.f32 %v5863, %v5616
        %5865 = vadd.xlane.f32.xlu0 %v5864
        %v5866 = vpop.xlane.xlu0 %5865
        %v5867 = vadd.f32 %v5618, %v5620
        %v5868 = vadd.f32 %v5867, %v5622
        %v5869 = vadd.f32 %v5868, %v5624
        %5870 = vadd.xlane.f32.xlu0 %v5869
        %v5871 = vpop.xlane.xlu0 %5870
        %v5872 = vadd.f32 %v5626, %v5628
        %v5873 = vadd.f32 %v5872, %v5630
        %v5874 = vadd.f32 %v5873, %v5632
        %5875 = vadd.xlane.f32.xlu0 %v5874
        %v5876 = vpop.xlane.xlu0 %5875
        %v5877 = vadd.f32 %v5634, %v5636
        %v5878 = vadd.f32 %v5877, %v5638
        %v5879 = vadd.f32 %v5878, %v5640
        %5880 = vadd.xlane.f32.xlu0 %v5879
        %v5881 = vpop.xlane.xlu0 %5880
        %v5882 = vadd.f32 %v5642, %v5644
        %v5883 = vadd.f32 %v5882, %v5646
        %v5884 = vadd.f32 %v5883, %v5648
        %5885 = vadd.xlane.f32.xlu0 %v5884
        %v5886 = vpop.xlane.xlu0 %5885
        %v5887 = vadd.f32 %v5650, %v5652
        %v5888 = vadd.f32 %v5887, %v5654
        %v5889 = vadd.f32 %v5888, %v5656
        %5890 = vadd.xlane.f32.xlu0 %v5889
        %v5891 = vpop.xlane.xlu0 %5890
        %v5892 = vadd.f32 %v5658, %v5660
        %v5893 = vadd.f32 %v5892, %v5662
        %v5894 = vadd.f32 %v5893, %v5664
        %5895 = vadd.xlane.f32.xlu0 %v5894
        %v5896 = vpop.xlane.xlu0 %5895
        %v5897 = vadd.f32 %v5666, %v5668
        %v5898 = vadd.f32 %v5897, %v5670
        %v5899 = vadd.f32 %v5898, %v5672
        %5900 = vadd.xlane.f32.xlu0 %v5899
        %v5901 = vpop.xlane.xlu0 %5900
        %v5902 = vadd.f32 %v5674, %v5676
        %v5903 = vadd.f32 %v5902, %v5678
        %v5904 = vadd.f32 %v5903, %v5680
        %5905 = vadd.xlane.f32.xlu0 %v5904
        %v5906 = vpop.xlane.xlu0 %5905
        %v5907 = vadd.f32 %v5682, %v5684
        %v5908 = vadd.f32 %v5907, %v5686
        %v5909 = vadd.f32 %v5908, %v5688
        %5910 = vadd.xlane.f32.xlu0 %v5909
        %v5911 = vpop.xlane.xlu0 %5910
        %v5912 = vadd.f32 %v5690, %v5692
        %v5913 = vadd.f32 %v5912, %v5694
        %v5914 = vadd.f32 %v5913, %v5696
        %5915 = vadd.xlane.f32.xlu0 %v5914
        %v5916 = vpop.xlane.xlu0 %5915
        %v5917 = vadd.f32 %v5698, %v5700
        %v5918 = vadd.f32 %v5917, %v5702
        %v5919 = vadd.f32 %v5918, %v5704
        %5920 = vadd.xlane.f32.xlu0 %v5919
        %v5921 = vpop.xlane.xlu0 %5920
        %v5922 = vadd.f32 %v5706, %v5708
        %v5923 = vadd.f32 %v5922, %v5710
        %v5924 = vadd.f32 %v5923, %v5712
        %5925 = vadd.xlane.f32.xlu0 %v5924
        %v5926 = vpop.xlane.xlu0 %5925
        %v5927 = vadd.f32 %v5714, %v5716
        %v5928 = vadd.f32 %v5927, %v5718
        %v5929 = vadd.f32 %v5928, %v5720
        %5930 = vadd.xlane.f32.xlu0 %v5929
        %v5931 = vpop.xlane.xlu0 %5930
        %v5932 = vadd.f32 %v5722, %v5724
        %v5933 = vadd.f32 %v5932, %v5726
        %v5934 = vadd.f32 %v5933, %v5728
        %5935 = vadd.xlane.f32.xlu0 %v5934
        %v5936 = vpop.xlane.xlu0 %5935
        %v5937 = vadd.f32 %v5730, %v5732
        %v5938 = vadd.f32 %v5937, %v5734
        %v5939 = vadd.f32 %v5938, %v5736
        %5940 = vadd.xlane.f32.xlu0 %v5939
        %v5941 = vpop.xlane.xlu0 %5940
        %v5942 = vadd.f32 %v5738, %v5740
        %v5943 = vadd.f32 %v5942, %v5742
        %v5944 = vadd.f32 %v5943, %v5744
        %5945 = vadd.xlane.f32.xlu0 %v5944
        %v5946 = vpop.xlane.xlu0 %5945
        %v5947 = vadd.f32 %v5746, %v5748
        %v5948 = vadd.f32 %v5947, %v5750
        %v5949 = vadd.f32 %v5948, %v5752
        %5950 = vadd.xlane.f32.xlu0 %v5949
        %v5951 = vpop.xlane.xlu0 %5950
        %v5952 = vadd.f32 %v5754, %v5756
        %v5953 = vadd.f32 %v5952, %v5758
        %v5954 = vadd.f32 %v5953, %v5760
        %5955 = vadd.xlane.f32.xlu0 %v5954
        %v5956 = vpop.xlane.xlu0 %5955
        %v5957 = vadd.f32 %v5762, %v5764
        %v5958 = vadd.f32 %v5957, %v5766
        %v5959 = vadd.f32 %v5958, %v5768
        %5960 = vadd.xlane.f32.xlu0 %v5959
        %v5961 = vpop.xlane.xlu0 %5960
        %v5962 = vadd.f32 %v5770, %v5772
        %v5963 = vadd.f32 %v5962, %v5774
        %v5964 = vadd.f32 %v5963, %v5776
        %5965 = vadd.xlane.f32.xlu0 %v5964
        %v5966 = vpop.xlane.xlu0 %5965
        %v5967 = vadd.f32 %v5778, %v5780
        %v5968 = vadd.f32 %v5967, %v5782
        %v5969 = vadd.f32 %v5968, %v5784
        %5970 = vadd.xlane.f32.xlu0 %v5969
        %v5971 = vpop.xlane.xlu0 %5970
        %v5972 = vadd.f32 %v5786, %v5788
        %v5973 = vadd.f32 %v5972, %v5790
        %v5974 = vadd.f32 %v5973, %v5792
        %5975 = vadd.xlane.f32.xlu0 %v5974
        %v5976 = vpop.xlane.xlu0 %5975
        %v5977 = vadd.f32 %v5794, %v5796
        %v5978 = vadd.f32 %v5977, %v5798
        %v5979 = vadd.f32 %v5978, %v5800
        %5980 = vadd.xlane.f32.xlu0 %v5979
        %v5981 = vpop.xlane.xlu0 %5980
        %v5982 = vadd.f32 %v5802, %v5804
        %v5983 = vadd.f32 %v5982, %v5806
        %v5984 = vadd.f32 %v5983, %v5808
        %5985 = vadd.xlane.f32.xlu0 %v5984
        %v5986 = vpop.xlane.xlu0 %5985
        %v5987 = vadd.f32 %v5810, %v5812
        %v5988 = vadd.f32 %v5987, %v5814
        %v5989 = vadd.f32 %v5988, %v5816
        %5990 = vadd.xlane.f32.xlu0 %v5989
        %v5991 = vpop.xlane.xlu0 %5990
        %v5992 = vadd.f32 %v5818, %v5820
        %v5993 = vadd.f32 %v5992, %v5822
        %v5994 = vadd.f32 %v5993, %v5824
        %5995 = vadd.xlane.f32.xlu0 %v5994
        %v5996 = vpop.xlane.xlu0 %5995
        %v5997 = vadd.f32 %v5826, %v5828
        %v5998 = vadd.f32 %v5997, %v5830
        %v5999 = vadd.f32 %v5998, %v5832
        %6000 = vadd.xlane.f32.xlu0 %v5999
        %v6001 = vpop.xlane.xlu0 %6000
        %v6002 = vadd.f32 %v5834, %v5836
        %v6003 = vadd.f32 %v6002, %v5838
        %v6004 = vadd.f32 %v6003, %v5840
        %6005 = vadd.xlane.f32.xlu0 %v6004
        %v6006 = vpop.xlane.xlu0 %6005
        %v6007 = vadd.f32 %v5842, %v5844
        %v6008 = vadd.f32 %v6007, %v5846
        %v6009 = vadd.f32 %v6008, %v5848
        %6010 = vadd.xlane.f32.xlu0 %v6009
        %v6011 = vpop.xlane.xlu0 %6010
        %v6012 = vadd.f32 %v5850, %v5852
        %v6013 = vadd.f32 %v6012, %v5854
        %v6014 = vadd.f32 %v6013, %v5856
        %6015 = vadd.xlane.f32.xlu0 %v6014
        %v6016 = vpop.xlane.xlu0 %6015
        %v6017 = vlog2.pop %v5861
        %v6018 = vmul.f32 %v6017, 0.6931472
        %v6019 = vlog2.pop %v5866
        %v6020 = vmul.f32 %v6019, 0.6931472
        %v6021 = vlog2.pop %v5871
        %v6022 = vmul.f32 %v6021, 0.6931472
        %v6023 = vlog2.pop %v5876
        %v6024 = vmul.f32 %v6023, 0.6931472
        %v6025 = vlog2.pop %v5881
        %v6026 = vmul.f32 %v6025, 0.6931472
        %v6027 = vlog2.pop %v5886
        %v6028 = vmul.f32 %v6027, 0.6931472
        %v6029 = vlog2.pop %v5891
        %v6030 = vmul.f32 %v6029, 0.6931472
        %v6031 = vlog2.pop %v5896
        %v6032 = vmul.f32 %v6031, 0.6931472
        %v6033 = vlog2.pop %v5901
        %v6034 = vmul.f32 %v6033, 0.6931472
        %v6035 = vlog2.pop %v5906
        %v6036 = vmul.f32 %v6035, 0.6931472
        %v6037 = vlog2.pop %v5911
        %v6038 = vmul.f32 %v6037, 0.6931472
        %v6039 = vlog2.pop %v5916
        %v6040 = vmul.f32 %v6039, 0.6931472
        %v6041 = vlog2.pop %v5921
        %v6042 = vmul.f32 %v6041, 0.6931472
        %v6043 = vlog2.pop %v5926
        %v6044 = vmul.f32 %v6043, 0.6931472
        %v6045 = vlog2.pop %v5931
        %v6046 = vmul.f32 %v6045, 0.6931472
        %v6047 = vlog2.pop %v5936
        %v6048 = vmul.f32 %v6047, 0.6931472
        %v6049 = vlog2.pop %v5941
        %v6050 = vmul.f32 %v6049, 0.6931472
        %v6051 = vlog2.pop %v5946
        %v6052 = vmul.f32 %v6051, 0.6931472
        %v6053 = vlog2.pop %v5951
        %v6054 = vmul.f32 %v6053, 0.6931472
        %v6055 = vlog2.pop %v5956
        %v6056 = vmul.f32 %v6055, 0.6931472
        %v6057 = vlog2.pop %v5961
        %v6058 = vmul.f32 %v6057, 0.6931472
        %v6059 = vlog2.pop %v5966
        %v6060 = vmul.f32 %v6059, 0.6931472
        %v6061 = vlog2.pop %v5971
        %v6062 = vmul.f32 %v6061, 0.6931472
        %v6063 = vlog2.pop %v5976
        %v6064 = vmul.f32 %v6063, 0.6931472
        %v6065 = vlog2.pop %v5981
        %v6066 = vmul.f32 %v6065, 0.6931472
        %v6067 = vlog2.pop %v5986
        %v6068 = vmul.f32 %v6067, 0.6931472
        %v6069 = vlog2.pop %v5991
        %v6070 = vmul.f32 %v6069, 0.6931472
        %v6071 = vlog2.pop %v5996
        %v6072 = vmul.f32 %v6071, 0.6931472
        %v6073 = vlog2.pop %v6001
        %v6074 = vmul.f32 %v6073, 0.6931472
        %v6075 = vlog2.pop %v6006
        %v6076 = vmul.f32 %v6075, 0.6931472
        %v6077 = vlog2.pop %v6011
        %v6078 = vmul.f32 %v6077, 0.6931472
        %v6079 = vlog2.pop %v6016
        %v6080 = vmul.f32 %v6079, 0.6931472
        %v6081 = vadd.f32 %v5317, %v6018
        %v6082 = vadd.f32 %v5322, %v6020
        %v6083 = vadd.f32 %v5327, %v6022
        %v6084 = vadd.f32 %v5332, %v6024
        %v6085 = vadd.f32 %v5337, %v6026
        %v6086 = vadd.f32 %v5342, %v6028
        %v6087 = vadd.f32 %v5347, %v6030
        %v6088 = vadd.f32 %v5352, %v6032
        %v6089 = vadd.f32 %v5357, %v6034
        %v6090 = vadd.f32 %v5362, %v6036
        %v6091 = vadd.f32 %v5367, %v6038
        %v6092 = vadd.f32 %v5372, %v6040
        %v6093 = vadd.f32 %v5377, %v6042
        %v6094 = vadd.f32 %v5382, %v6044
        %v6095 = vadd.f32 %v5387, %v6046
        %v6096 = vadd.f32 %v5392, %v6048
        %v6097 = vadd.f32 %v5397, %v6050
        %v6098 = vadd.f32 %v5402, %v6052
        %v6099 = vadd.f32 %v5407, %v6054
        %v6100 = vadd.f32 %v5412, %v6056
        %v6101 = vadd.f32 %v5417, %v6058
        %v6102 = vadd.f32 %v5422, %v6060
        %v6103 = vadd.f32 %v5427, %v6062
        %v6104 = vadd.f32 %v5432, %v6064
        %v6105 = vadd.f32 %v5437, %v6066
        %v6106 = vadd.f32 %v5442, %v6068
        %v6107 = vadd.f32 %v5447, %v6070
        %v6108 = vadd.f32 %v5452, %v6072
        %v6109 = vadd.f32 %v5457, %v6074
        %v6110 = vadd.f32 %v5462, %v6076
        %v6111 = vadd.f32 %v5467, %v6078
        %v6112 = vadd.f32 %v5472, %v6080
        %v6113 = vsub.f32 %v4967, %v6081
        %v6114 = vsub.f32 %v5056, %v6081
        %v6115 = vsub.f32 %v5145, %v6081
        %v6116 = vsub.f32 %v5234, %v6081
        %v6117 = vsub.f32 %v4969, %v6082
        %v6118 = vsub.f32 %v5058, %v6082
        %v6119 = vsub.f32 %v5147, %v6082
        %v6120 = vsub.f32 %v5236, %v6082
        %v6121 = vsub.f32 %v4972, %v6083
        %v6122 = vsub.f32 %v5061, %v6083
        %v6123 = vsub.f32 %v5150, %v6083
        %v6124 = vsub.f32 %v5239, %v6083
        %v6125 = vsub.f32 %v4974, %v6084
        %v6126 = vsub.f32 %v5063, %v6084
        %v6127 = vsub.f32 %v5152, %v6084
        %v6128 = vsub.f32 %v5241, %v6084
        %v6129 = vsub.f32 %v4977, %v6085
        %v6130 = vsub.f32 %v5066, %v6085
        %v6131 = vsub.f32 %v5155, %v6085
        %v6132 = vsub.f32 %v5244, %v6085
        %v6133 = vsub.f32 %v4979, %v6086
        %v6134 = vsub.f32 %v5068, %v6086
        %v6135 = vsub.f32 %v5157, %v6086
        %v6136 = vsub.f32 %v5246, %v6086
        %v6137 = vsub.f32 %v4982, %v6087
        %v6138 = vsub.f32 %v5071, %v6087
        %v6139 = vsub.f32 %v5160, %v6087
        %v6140 = vsub.f32 %v5249, %v6087
        %v6141 = vsub.f32 %v4984, %v6088
        %v6142 = vsub.f32 %v5073, %v6088
        %v6143 = vsub.f32 %v5162, %v6088
        %v6144 = vsub.f32 %v5251, %v6088
        %v6145 = vsub.f32 %v4987, %v6089
        %v6146 = vsub.f32 %v5076, %v6089
        %v6147 = vsub.f32 %v5165, %v6089
        %v6148 = vsub.f32 %v5254, %v6089
        %v6149 = vsub.f32 %v4989, %v6090
        %v6150 = vsub.f32 %v5078, %v6090
        %v6151 = vsub.f32 %v5167, %v6090
        %v6152 = vsub.f32 %v5256, %v6090
        %v6153 = vsub.f32 %v4992, %v6091
        %v6154 = vsub.f32 %v5081, %v6091
        %v6155 = vsub.f32 %v5170, %v6091
        %v6156 = vsub.f32 %v5259, %v6091
        %v6157 = vsub.f32 %v4994, %v6092
        %v6158 = vsub.f32 %v5083, %v6092
        %v6159 = vsub.f32 %v5172, %v6092
        %v6160 = vsub.f32 %v5261, %v6092
        %v6161 = vsub.f32 %v4997, %v6093
        %v6162 = vsub.f32 %v5086, %v6093
        %v6163 = vsub.f32 %v5175, %v6093
        %v6164 = vsub.f32 %v5264, %v6093
        %v6165 = vsub.f32 %v4999, %v6094
        %v6166 = vsub.f32 %v5088, %v6094
        %v6167 = vsub.f32 %v5177, %v6094
        %v6168 = vsub.f32 %v5266, %v6094
        %v6169 = vsub.f32 %v5002, %v6095
        %v6170 = vsub.f32 %v5091, %v6095
        %v6171 = vsub.f32 %v5180, %v6095
        %v6172 = vsub.f32 %v5269, %v6095
        %v6173 = vsub.f32 %v5004, %v6096
        %v6174 = vsub.f32 %v5093, %v6096
        %v6175 = vsub.f32 %v5182, %v6096
        %v6176 = vsub.f32 %v5271, %v6096
        %v6177 = vsub.f32 %v5007, %v6097
        %v6178 = vsub.f32 %v5096, %v6097
        %v6179 = vsub.f32 %v5185, %v6097
        %v6180 = vsub.f32 %v5274, %v6097
        %v6181 = vsub.f32 %v5009, %v6098
        %v6182 = vsub.f32 %v5098, %v6098
        %v6183 = vsub.f32 %v5187, %v6098
        %v6184 = vsub.f32 %v5276, %v6098
        %v6185 = vsub.f32 %v5012, %v6099
        %v6186 = vsub.f32 %v5101, %v6099
        %v6187 = vsub.f32 %v5190, %v6099
        %v6188 = vsub.f32 %v5279, %v6099
        %v6189 = vsub.f32 %v5014, %v6100
        %v6190 = vsub.f32 %v5103, %v6100
        %v6191 = vsub.f32 %v5192, %v6100
        %v6192 = vsub.f32 %v5281, %v6100
        %v6193 = vsub.f32 %v5017, %v6101
        %v6194 = vsub.f32 %v5106, %v6101
        %v6195 = vsub.f32 %v5195, %v6101
        %v6196 = vsub.f32 %v5284, %v6101
        %v6197 = vsub.f32 %v5019, %v6102
        %v6198 = vsub.f32 %v5108, %v6102
        %v6199 = vsub.f32 %v5197, %v6102
        %v6200 = vsub.f32 %v5286, %v6102
        %v6201 = vsub.f32 %v5022, %v6103
        %v6202 = vsub.f32 %v5111, %v6103
        %v6203 = vsub.f32 %v5200, %v6103
        %v6204 = vsub.f32 %v5289, %v6103
        %v6205 = vsub.f32 %v5024, %v6104
        %v6206 = vsub.f32 %v5113, %v6104
        %v6207 = vsub.f32 %v5202, %v6104
        %v6208 = vsub.f32 %v5291, %v6104
        %v6209 = vsub.f32 %v5027, %v6105
        %v6210 = vsub.f32 %v5116, %v6105
        %v6211 = vsub.f32 %v5205, %v6105
        %v6212 = vsub.f32 %v5294, %v6105
        %v6213 = vsub.f32 %v5029, %v6106
        %v6214 = vsub.f32 %v5118, %v6106
        %v6215 = vsub.f32 %v5207, %v6106
        %v6216 = vsub.f32 %v5296, %v6106
        %v6217 = vsub.f32 %v5032, %v6107
        %v6218 = vsub.f32 %v5121, %v6107
        %v6219 = vsub.f32 %v5210, %v6107
        %v6220 = vsub.f32 %v5299, %v6107
        %v6221 = vsub.f32 %v5034, %v6108
        %v6222 = vsub.f32 %v5123, %v6108
        %v6223 = vsub.f32 %v5212, %v6108
        %v6224 = vsub.f32 %v5301, %v6108
        %v6225 = vsub.f32 %v5037, %v6109
        %v6226 = vsub.f32 %v5126, %v6109
        %v6227 = vsub.f32 %v5215, %v6109
        %v6228 = vsub.f32 %v5304, %v6109
        %v6229 = vsub.f32 %v5039, %v6110
        %v6230 = vsub.f32 %v5128, %v6110
        %v6231 = vsub.f32 %v5217, %v6110
        %v6232 = vsub.f32 %v5306, %v6110
        %v6233 = vsub.f32 %v5042, %v6111
        %v6234 = vsub.f32 %v5131, %v6111
        %v6235 = vsub.f32 %v5220, %v6111
        %v6236 = vsub.f32 %v5309, %v6111
        %v6237 = vsub.f32 %v5044, %v6112
        %v6238 = vsub.f32 %v5133, %v6112
        %v6239 = vsub.f32 %v5222, %v6112
        %v6240 = vsub.f32 %v5311, %v6112
        %v6241 = vpack.c.bf16 %v6114, %v6113
        %v6242 = vpack.c.bf16 %v6116, %v6115
        %v6243 = vpack.c.bf16 %v6118, %v6117
        %v6244 = vpack.c.bf16 %v6120, %v6119
        %v6245 = vpack.c.bf16 %v6122, %v6121
        %v6246 = vpack.c.bf16 %v6124, %v6123
        %v6247 = vpack.c.bf16 %v6126, %v6125
        %v6248 = vpack.c.bf16 %v6128, %v6127
        %v6249 = vpack.c.bf16 %v6130, %v6129
        %v6250 = vpack.c.bf16 %v6132, %v6131
        %v6251 = vpack.c.bf16 %v6134, %v6133
        %v6252 = vpack.c.bf16 %v6136, %v6135
        %v6253 = vpack.c.bf16 %v6138, %v6137
        %v6254 = vpack.c.bf16 %v6140, %v6139
        %v6255 = vpack.c.bf16 %v6142, %v6141
        %v6256 = vpack.c.bf16 %v6144, %v6143
        %v6257 = vpack.c.bf16 %v6146, %v6145
        %v6258 = vpack.c.bf16 %v6148, %v6147
        %v6259 = vpack.c.bf16 %v6150, %v6149
        %v6260 = vpack.c.bf16 %v6152, %v6151
        %v6261 = vpack.c.bf16 %v6154, %v6153
        %v6262 = vpack.c.bf16 %v6156, %v6155
        %v6263 = vpack.c.bf16 %v6158, %v6157
        %v6264 = vpack.c.bf16 %v6160, %v6159
        %v6265 = vpack.c.bf16 %v6162, %v6161
        %v6266 = vpack.c.bf16 %v6164, %v6163
        %v6267 = vpack.c.bf16 %v6166, %v6165
        %v6268 = vpack.c.bf16 %v6168, %v6167
        %v6269 = vpack.c.bf16 %v6170, %v6169
        %v6270 = vpack.c.bf16 %v6172, %v6171
        %v6271 = vpack.c.bf16 %v6174, %v6173
        %v6272 = vpack.c.bf16 %v6176, %v6175
        %v6273 = vpack.c.bf16 %v6178, %v6177
        %v6274 = vpack.c.bf16 %v6180, %v6179
        %v6275 = vpack.c.bf16 %v6182, %v6181
        %v6276 = vpack.c.bf16 %v6184, %v6183
        %v6277 = vpack.c.bf16 %v6186, %v6185
        %v6278 = vpack.c.bf16 %v6188, %v6187
        %v6279 = vpack.c.bf16 %v6190, %v6189
        %v6280 = vpack.c.bf16 %v6192, %v6191
        %v6281 = vpack.c.bf16 %v6194, %v6193
        %v6282 = vpack.c.bf16 %v6196, %v6195
        %v6283 = vpack.c.bf16 %v6198, %v6197
        %v6284 = vpack.c.bf16 %v6200, %v6199
        %v6285 = vpack.c.bf16 %v6202, %v6201
        %v6286 = vpack.c.bf16 %v6204, %v6203
        %v6287 = vpack.c.bf16 %v6206, %v6205
        %v6288 = vpack.c.bf16 %v6208, %v6207
        %v6289 = vpack.c.bf16 %v6210, %v6209
        %v6290 = vpack.c.bf16 %v6212, %v6211
        %v6291 = vpack.c.bf16 %v6214, %v6213
        %v6292 = vpack.c.bf16 %v6216, %v6215
        %v6293 = vpack.c.bf16 %v6218, %v6217
        %v6294 = vpack.c.bf16 %v6220, %v6219
        %v6295 = vpack.c.bf16 %v6222, %v6221
        %v6296 = vpack.c.bf16 %v6224, %v6223
        %v6297 = vpack.c.bf16 %v6226, %v6225
        %v6298 = vpack.c.bf16 %v6228, %v6227
        %v6299 = vpack.c.bf16 %v6230, %v6229
        %v6300 = vpack.c.bf16 %v6232, %v6231
        %v6301 = vpack.c.bf16 %v6234, %v6233
        %v6302 = vpack.c.bf16 %v6236, %v6235
        %v6303 = vpack.c.bf16 %v6238, %v6237
        %v6304 = vpack.c.bf16 %v6240, %v6239
        %6305 = vst [vmem:[%s548] sm:$0xff] %v6241
        %6306 = vst [vmem:[%s548 + $0x8] sm:$0xff] %v6242
        %6307 = vst [vmem:[%s548 + $0x10] sm:$0xff] %v6243
        %6308 = vst [vmem:[%s548 + $0x18] sm:$0xff] %v6244
        %6309 = vst [vmem:[%s548 + $0x20] sm:$0xff] %v6245
        %6310 = vst [vmem:[%s548 + $0x28] sm:$0xff] %v6246
        %6311 = vst [vmem:[%s548 + $0x30] sm:$0xff] %v6247
        %6312 = vst [vmem:[%s548 + $0x38] sm:$0xff] %v6248
        %6313 = vst [vmem:[%s548 + $0x40] sm:$0xff] %v6249
        %6314 = vst [vmem:[%s548 + $0x48] sm:$0xff] %v6250
        %6315 = vst [vmem:[%s548 + $0x50] sm:$0xff] %v6251
        %6316 = vst [vmem:[%s548 + $0x58] sm:$0xff] %v6252
        %6317 = vst [vmem:[%s548 + $0x60] sm:$0xff] %v6253
        %6318 = vst [vmem:[%s548 + $0x68] sm:$0xff] %v6254
        %6319 = vst [vmem:[%s548 + $0x70] sm:$0xff] %v6255
        %6320 = vst [vmem:[%s548 + $0x78] sm:$0xff] %v6256
        %6321 = vst [vmem:[%s548 + $0x80] sm:$0xff] %v6257
        %6322 = vst [vmem:[%s548 + $0x88] sm:$0xff] %v6258
        %6323 = vst [vmem:[%s548 + $0x90] sm:$0xff] %v6259
        %6324 = vst [vmem:[%s548 + $0x98] sm:$0xff] %v6260
        %6325 = vst [vmem:[%s548 + $0xa0] sm:$0xff] %v6261
        %6326 = vst [vmem:[%s548 + $0xa8] sm:$0xff] %v6262
        %6327 = vst [vmem:[%s548 + $0xb0] sm:$0xff] %v6263
        %6328 = vst [vmem:[%s548 + $0xb8] sm:$0xff] %v6264
        %6329 = vst [vmem:[%s548 + $0xc0] sm:$0xff] %v6265
        %6330 = vst [vmem:[%s548 + $0xc8] sm:$0xff] %v6266
        %6331 = vst [vmem:[%s548 + $0xd0] sm:$0xff] %v6267
        %6332 = vst [vmem:[%s548 + $0xd8] sm:$0xff] %v6268
        %6333 = vst [vmem:[%s548 + $0xe0] sm:$0xff] %v6269
        %6334 = vst [vmem:[%s548 + $0xe8] sm:$0xff] %v6270
        %6335 = vst [vmem:[%s548 + $0xf0] sm:$0xff] %v6271
        %6336 = vst [vmem:[%s548 + $0xf8] sm:$0xff] %v6272
        %6337 = vst [vmem:[%s548 + $0x100] sm:$0xff] %v6273
        %6338 = vst [vmem:[%s548 + $0x108] sm:$0xff] %v6274
        %6339 = vst [vmem:[%s548 + $0x110] sm:$0xff] %v6275
        %6340 = vst [vmem:[%s548 + $0x118] sm:$0xff] %v6276
        %6341 = vst [vmem:[%s548 + $0x120] sm:$0xff] %v6277
        %6342 = vst [vmem:[%s548 + $0x128] sm:$0xff] %v6278
        %6343 = vst [vmem:[%s548 + $0x130] sm:$0xff] %v6279
        %6344 = vst [vmem:[%s548 + $0x138] sm:$0xff] %v6280
        %6345 = vst [vmem:[%s548 + $0x140] sm:$0xff] %v6281
        %6346 = vst [vmem:[%s548 + $0x148] sm:$0xff] %v6282
        %6347 = vst [vmem:[%s548 + $0x150] sm:$0xff] %v6283
        %6348 = vst [vmem:[%s548 + $0x158] sm:$0xff] %v6284
        %6349 = vst [vmem:[%s548 + $0x160] sm:$0xff] %v6285
        %6350 = vst [vmem:[%s548 + $0x168] sm:$0xff] %v6286
        %6351 = vst [vmem:[%s548 + $0x170] sm:$0xff] %v6287
        %6352 = vst [vmem:[%s548 + $0x178] sm:$0xff] %v6288
        %6353 = vst [vmem:[%s548 + $0x180] sm:$0xff] %v6289
        %6354 = vst [vmem:[%s548 + $0x188] sm:$0xff] %v6290
        %6355 = vst [vmem:[%s548 + $0x190] sm:$0xff] %v6291
        %6356 = vst [vmem:[%s548 + $0x198] sm:$0xff] %v6292
        %6357 = vst [vmem:[%s548 + $0x1a0] sm:$0xff] %v6293
        %6358 = vst [vmem:[%s548 + $0x1a8] sm:$0xff] %v6294
        %6359 = vst [vmem:[%s548 + $0x1b0] sm:$0xff] %v6295
        %6360 = vst [vmem:[%s548 + $0x1b8] sm:$0xff] %v6296
        %6361 = vst [vmem:[%s548 + $0x1c0] sm:$0xff] %v6297
        %6362 = vst [vmem:[%s548 + $0x1c8] sm:$0xff] %v6298
        %6363 = vst [vmem:[%s548 + $0x1d0] sm:$0xff] %v6299
        %6364 = vst [vmem:[%s548 + $0x1d8] sm:$0xff] %v6300
        %6365 = vst [vmem:[%s548 + $0x1e0] sm:$0xff] %v6301
        %6366 = vst [vmem:[%s548 + $0x1e8] sm:$0xff] %v6302
        %6367 = vst [vmem:[%s548 + $0x1f0] sm:$0xff] %v6303
        %6368 = vst [vmem:[%s548 + $0x1f8] sm:$0xff] %v6304
        %s6369 = sand.u32 %s254, 1
        %s6370 = scalar_lea.sflag [#allocation5], %s6369
        %s6371 = sand.u32 %s254, 1
        %s6372 = smul.addr %s6371, 512
        %s6373 = scalar_lea.vmem [#allocation14], %s6372
        %s6374 = sand.u32 %s37, 1
        %s6375 = scalar_lea.sflag [#allocation16], %s6374
        %s6376 = sand.u32 %s280, 1
        %s6377 = smul.addr %s6376, 256
        %s6378 = scalar_lea.vmem [#allocation15], %s6377
        %s6379 = sand.u32 %s37, 1
        %s6380 = scalar_lea.sflag [#allocation16], %s6379
        %s6381 = sand.u32 %s306, 1
        %s6382 = smul.addr %s6381, 256
        %s6383 = scalar_lea.vmem [#allocation17], %s6382
        // Predicated region
        $region81: #{tpu_custom_call.1} parent=55 // pred_check
          %p6384 = pneg %p264
        $region82: #{tpu_custom_call.1} parent=55 // pred_check_branch
          %6386 = sbr.rel (%p6384) target = $region84
        $region83: #{tpu_custom_call.1} parent=55 // pred_region
          %s6387 = smul.u32 32, %s37
          %6389 = vsyncadd %s6370, 0
          %s6390 = smul.addr %s6387, 4
          %s6391 = smul.addr %s6390, 4
          %s6392 = scalar_lea.hbm %s9, %s6391
          %s6393 = sshll.u32 %s6373, 4
          %s6394 = int_to_ptr.vmem [resolvable:$true] %s6393
          %s6395 = sshll.u32 %s6392, 4
          %s6396 = int_to_ptr.hbm [resolvable:$true] %s6395
          %6401 = dma.vmem_to_hbm [thread:$0]  %s6394, 8192, %s6396, %s6370, 256, 256, 16
        $region84: #{tpu_custom_call.1} parent=55 // pred_fallthru
          _
        // Predicated region
        $region85: #{tpu_custom_call.1} parent=55 // pred_check
          %p6402 = pneg %p290
        $region86: #{tpu_custom_call.1} parent=55 // pred_check_branch
          %6404 = sbr.rel (%p6402) target = $region88
        $region87: #{tpu_custom_call.1} parent=55 // pred_region
          %s6405 = smul.u32 32, %s37
          %6407 = vsyncadd %s6375, 0
          %s6408 = smul.addr %s6405, 8
          %s6409 = scalar_lea.hbm %s10, %s6408
          %s6410 = sshll.u32 %s6378, 4
          %s6411 = int_to_ptr.vmem [resolvable:$true] %s6410
          %s6412 = sshll.u32 %s6409, 4
          %s6413 = int_to_ptr.hbm [resolvable:$true] %s6412
          %6418 = dma.vmem_to_hbm [thread:$0]  %s6411, 4096, %s6413, %s6375, 128, 128, 8
        $region88: #{tpu_custom_call.1} parent=55 // pred_fallthru
          _
        // Predicated region
        $region89: #{tpu_custom_call.1} parent=55 // pred_check
          %p6419 = pneg %p316
        $region90: #{tpu_custom_call.1} parent=55 // pred_check_branch
          %6421 = sbr.rel (%p6419) target = $region92
        $region91: #{tpu_custom_call.1} parent=55 // pred_region
          %s6422 = smul.u32 32, %s37
          %6424 = vsyncadd %s6380, 0
          %s6425 = smul.addr %s6422, 8
          %s6426 = scalar_lea.hbm %s11, %s6425
          %s6427 = sshll.u32 %s6383, 4
          %s6428 = int_to_ptr.vmem [resolvable:$true] %s6427
          %s6429 = sshll.u32 %s6426, 4
          %s6430 = int_to_ptr.hbm [resolvable:$true] %s6429
          %6435 = dma.vmem_to_hbm [thread:$0]  %s6428, 4096, %s6430, %s6380, 128, 128, 8
        $region92: #{tpu_custom_call.1} parent=55 // pred_fallthru
          _
      $region56: #{tpu_custom_call.1} parent=5 // pred_fallthru
        _
      %p6436 = scmp.le.s32.totalorder 2, %s32
      // Predicated region
      $region93: #{tpu_custom_call.1} parent=5 // pred_check
        %p6437 = pneg %p6436
      $region94: #{tpu_custom_call.1} parent=5 // pred_check_branch
        %6439 = sbr.rel (%p6437) target = $region96
      $region95: #{tpu_custom_call.1} parent=5 // pred_region
        %s6440 = ssub.s32 %s32, 2
        // Predicated region
        $region97: #{tpu_custom_call.1} parent=95 // pred_check
          %p6441 = pneg %p270
        $region98: #{tpu_custom_call.1} parent=95 // pred_check_branch
          %6443 = sbr.rel (%p6441) target = $region100
        $region99: #{tpu_custom_call.1} parent=95 // pred_region
          %s6444 = sand.u32 %s255, 1
          %s6445 = scalar_lea.sflag [#allocation5], %s6444
          %s6446 = sand.u32 %s255, 1
          %s6447 = smul.addr %s6446, 512
          %s6448 = scalar_lea.vmem [#allocation14], %s6447
          %6450 = dma.done %s6445, 8192
        $region100: #{tpu_custom_call.1} parent=95 // pred_fallthru
          _
        // Predicated region
        $region101: #{tpu_custom_call.1} parent=95 // pred_check
          %p6451 = pneg %p296
        $region102: #{tpu_custom_call.1} parent=95 // pred_check_branch
          %6453 = sbr.rel (%p6451) target = $region104
        $region103: #{tpu_custom_call.1} parent=95 // pred_region
          %s6454 = sand.u32 %s38, 1
          %s6455 = scalar_lea.sflag [#allocation16], %s6454
          %s6456 = sand.u32 %s281, 1
          %s6457 = smul.addr %s6456, 256
          %s6458 = scalar_lea.vmem [#allocation15], %s6457
          %6460 = dma.done %s6455, 4096
        $region104: #{tpu_custom_call.1} parent=95 // pred_fallthru
          _
        // Predicated region
        $region105: #{tpu_custom_call.1} parent=95 // pred_check
          %p6461 = pneg %p322
        $region106: #{tpu_custom_call.1} parent=95 // pred_check_branch
          %6463 = sbr.rel (%p6461) target = $region108
        $region107: #{tpu_custom_call.1} parent=95 // pred_region
          %s6464 = sand.u32 %s38, 1
          %s6465 = scalar_lea.sflag [#allocation16], %s6464
          %s6466 = sand.u32 %s307, 1
          %s6467 = smul.addr %s6466, 256
          %s6468 = scalar_lea.vmem [#allocation17], %s6467
          %6470 = dma.done %s6465, 4096
        $region108: #{tpu_custom_call.1} parent=95 // pred_fallthru
          _
      $region96: #{tpu_custom_call.1} parent=5 // pred_fallthru
        _
    $region6: #{tpu_custom_call.1} parent=1 // loop_footer
      %s36 = sadd.s32 1, %s32
    $region7: #{tpu_custom_call.1} parent=1 // loop_footer_branch
      %31 = sbr.rel target = $region3
    $region8: #{tpu_custom_call.1} parent=1 // loop_exit
      _
    %6471 = vsyncpa [#allocation4], 1
    %s6472 = scalar_lea.sflag [#allocation4], 1
    %6473 = vsyncpa %s6472, 1
    %6474 = vsyncpa [#allocation7], 1
    %s6475 = scalar_lea.sflag [#allocation7], 1
    %6476 = vsyncpa %s6475, 1
    %6477 = vsyncpa [#allocation10], 1
    %6478 = vsyncpa [#allocation13], 1
    %6479 = vsyncpa [#allocation5], 1
    %s6480 = scalar_lea.sflag [#allocation5], 1
    %6481 = vsyncpa %s6480, 1
    %6482 = vsyncpa [#allocation16], 1
    %s6483 = scalar_lea.sflag [#allocation16], 1
    %6484 = vsyncpa %s6483, 1

</llo_original>
